<compile_context>
chip_gen: v7x
topology: tpu7x:2x2x1
jax: 0.10.0
libtpu: 0.0.40
codegen_flags: <defaults>
</compile_context>

<pallas_src>
import jax
import jax.numpy as jnp
from jax.experimental import pallas as pl
from jax.experimental.pallas import tpu as pltpu

LRELU_SLOPE = 0.2  # Conv2dLayer activation assumed to be LeakyReLU(0.2)


# -----------------------------------------------------------------------------
# Pallas kernel: fused  (W @ cols) + bias -> LeakyReLU -> *scale -> +residual
# cols has the spatial axis (multiple of 128) on lanes; single MXU contraction.
# -----------------------------------------------------------------------------
def _pick_spatial_tile(hw, cap=2048):
    """Largest multiple-of-128 divisor of hw that is <= cap (else hw itself)."""
    if hw % 128 != 0:
        return hw
    best, t = 128, 128
    while t <= min(hw, cap):
        if hw % t == 0:
            best = t
        t += 128
    return best


def _matmul_cols(cols, w, b, *, act, out_scale=1.0, residual=None):
    """cols: (N, R, HW) bf16 (R = K*K*Cin, tap-major then channel)
       w:    (Cout, R)  bf16
       b:    (Cout, 1)  f32
       residual: optional (N, Cout, HW) f32
       returns (N, Cout, HW) f32 = act(w @ cols + b) * out_scale + residual."""
    N, R, HW = cols.shape
    Cout = w.shape[0]
    T = _pick_spatial_tile(HW)
    grid = (N, HW // T)
    has_res = residual is not None

    def kernel(c_ref, w_ref, b_ref, *rest):
        if has_res:
            r_ref, o_ref = rest
        else:
            (o_ref,) = rest
        # Single lane-dense contraction on the MXU, f32 accumulation.
        acc = jnp.dot(w_ref[...], c_ref[0], preferred_element_type=jnp.float32)
        acc = acc + b_ref[...]                       # f32 epilogue (v5e-safe)
        if act:
            acc = jnp.where(acc >= 0, acc, LRELU_SLOPE * acc)
        if out_scale != 1.0:
            acc = acc * out_scale
        if has_res:
            acc = acc + r_ref[0]
        o_ref[0] = acc

    in_specs = [
        pl.BlockSpec((1, R, T), lambda n, t: (n, 0, t)),
        pl.BlockSpec((Cout, R), lambda n, t: (0, 0)),
        pl.BlockSpec((Cout, 1), lambda n, t: (0, 0)),
    ]
    args = [cols, w, b]
    if has_res:
        in_specs.append(pl.BlockSpec((1, Cout, T), lambda n, t: (n, 0, t)))
        args.append(residual)

    return pl.pallas_call(
        kernel,
        out_shape=jax.ShapeDtypeStruct((N, Cout, HW), jnp.float32),
        grid=grid,
        in_specs=in_specs,
        out_specs=pl.BlockSpec((1, Cout, T), lambda n, t: (n, 0, t)),
        compiler_params=pltpu.CompilerParams(
            dimension_semantics=("parallel", "parallel"),
            vmem_limit_bytes=32 * 1024 * 1024),
    )(*args)


def _im2col(x, K):
    """x: (N, C, H, W) -> (N, K*K*C, H*W); rows ordered (ky, kx, c).
    One contiguous rectangle per block DMA (bf16 cast happens at the caller)."""
    N, C, H, W = x.shape
    if K == 1:
        return x.reshape(N, C, H * W)
    pad = K // 2
    xp = jnp.pad(x, ((0, 0), (0, 0), (pad, pad), (pad, pad)))
    taps = [xp[:, :, ky:ky + H, kx:kx + W] for ky in range(K) for kx in range(K)]
    cols = jnp.stack(taps, axis=1)               # (N, K*K, C, H, W)
    return cols.reshape(N, K * K * C, H * W)


def conv2d_same(x, w, b, *, act, out_scale=1.0, residual=None):
    """'same' zero-padded stride-1 conv with fused epilogue.
       x: (N, Cin, H, W) f32; w: (K, K, Cin, Cout) HWIO; b: (Cout,)."""
    N, Cin, H, W = x.shape
    K = w.shape[0]
    Cout = w.shape[-1]
    cols = _im2col(x, K).astype(jnp.bfloat16)
    w2 = w.reshape(K * K * Cin, Cout).T.astype(jnp.bfloat16)   # (Cout, K*K*Cin)
    b2 = b.reshape(Cout, 1).astype(jnp.float32)
    res = (None if residual is None
           else residual.reshape(N, Cout, H * W).astype(jnp.float32))
    out = _matmul_cols(cols, w2, b2, act=act, out_scale=out_scale, residual=res)
    return out.reshape(N, Cout, H, W)


# -----------------------------------------------------------------------------
# Bilinear x8 upsample as two interpolation matmuls (MXU-friendly, no gathers)
# -----------------------------------------------------------------------------
def upsample_bilinear_x8(x):
    """Matches F.interpolate(scale_factor=(8,8), mode='bilinear',
    align_corners=False) on an NCHW tensor."""
    N, C, h, w = x.shape

    def interp_matrix(L):
        out = L * 8
        src = (jnp.arange(out, dtype=jnp.float32) + 0.5) / 8.0 - 0.5
        src = jnp.clip(src, 0.0, float(L - 1))
        i0 = jnp.clip(jnp.floor(src).astype(jnp.int32), 0, L - 1)
        frac = src - i0.astype(jnp.float32)
        i1 = jnp.clip(i0 + 1, 0, L - 1)
        return (jax.nn.one_hot(i0, L, dtype=jnp.float32) * (1.0 - frac)[:, None]
                + jax.nn.one_hot(i1, L, dtype=jnp.float32) * frac[:, None])

    Ah = interp_matrix(h)       # (8h, h)
    Aw = interp_matrix(w)       # (8w, w)
    return jnp.einsum('nchw,ph,qw->ncpq', x, Ah, Aw)


# -----------------------------------------------------------------------------
# Blocks
# -----------------------------------------------------------------------------
def rdb1(x, p):
    # 0.2 * lrelu(conv(x)) + x, residual fused into the conv kernel epilogue.
    return conv2d_same(x, p['w1'], p['b1'], act=True, out_scale=0.2, residual=x)


def rdb5(x, p):
    # TODO(synk): fully fusing the 5 densely-connected convs into a single
    # pallas_call (weights VMEM-resident) needs in-kernel halo handling and a
    # lane/sublane reshape of shifted slices; kept as separate fused-conv calls.
    x1 = conv2d_same(x, p['w1'], p['b1'], act=True)
    x2 = conv2d_same(jnp.concatenate([x, x1], 1), p['w2'], p['b2'], act=True)
    x3 = conv2d_same(jnp.concatenate([x, x1, x2], 1), p['w3'], p['b3'], act=True)
    x4 = conv2d_same(jnp.concatenate([x, x1, x2, x3], 1), p['w4'], p['b4'], act=True)
    return conv2d_same(jnp.concatenate([x, x1, x2, x3, x4], 1), p['w5'], p['b5'],
                       act=False, out_scale=0.2, residual=x)


def deformable_conv_block(feature, x, p):
    """DCNv1: offsets from concat(feature, x); deformable 3x3 conv of x."""
    N, C, H, W = x.shape
    HW = H * W
    off = conv2d_same(jnp.concatenate([feature, x], axis=1),
                      p['w_off'], p['b_off'], act=False)          # (N, 18, H, W)
    off = off.reshape(N, 9, 2, H, W)

    kidx = jnp.arange(9)
    tap_dy = (kidx // 3).astype(jnp.float32) - 1.0                 # (9,)
    tap_dx = (kidx % 3).astype(jnp.float32) - 1.0
    base_y = jnp.arange(H, dtype=jnp.float32)[None, None, :, None]
    base_x = jnp.arange(W, dtype=jnp.float32)[None, None, None, :]
    ys = base_y + tap_dy[None, :, None, None] + off[:, :, 0]       # (N, 9, H, W)
    xs = base_x + tap_dx[None, :, None, None] + off[:, :, 1]

    y0 = jnp.floor(ys)
    x0 = jnp.floor(xs)
    wy1 = ys - y0
    wx1 = xs - x0
    cy = jnp.stack([y0, y0, y0 + 1.0, y0 + 1.0], axis=2)           # (N, 9, 4, H, W)
    cx = jnp.stack([x0, x0 + 1.0, x0, x0 + 1.0], axis=2)
    cw = jnp.stack([(1 - wy1) * (1 - wx1), (1 - wy1) * wx1,
                    wy1 * (1 - wx1), wy1 * wx1], axis=2)
    valid = ((cy >= 0) & (cy <= H - 1) & (cx >= 0) & (cx <= W - 1)).astype(x.dtype)
    cyc = jnp.clip(cy, 0, H - 1).astype(jnp.int32)
    cxc = jnp.clip(cx, 0, W - 1).astype(jnp.int32)

    # TODO(synk): the data-dependent bilinear gather stays in XLA as ONE fused
    # take_along_axis per block; an in-kernel version would need manual DMA
    # gather that a BlockSpec index_map cannot express.
    flat = (cyc * W + cxc).reshape(N, 1, 9 * 4 * HW)
    x_flat = x.reshape(N, C, HW)
    gathered = jnp.take_along_axis(
        x_flat, jnp.broadcast_to(flat, (N, C, 9 * 4 * HW)), axis=2)
    gathered = gathered.reshape(N, C, 9, 4, H, W)
    weights = (cw * valid)[:, None]                                # (N, 1, 9, 4, H, W)
    sampled = jnp.sum(gathered * weights, axis=3)                  # (N, C, 9, H, W)

    # Channel mixing with the DCN weights == 1x1 conv over 9*C "columns",
    # reusing the lane-dense Pallas matmul kernel.
    cols = jnp.transpose(sampled, (0, 2, 1, 3, 4)).reshape(N, 9 * C, HW)
    cols = cols.astype(jnp.bfloat16)
    w_mix = p['w_dcn'].reshape(9 * C, C).T.astype(jnp.bfloat16)    # (C, 9*C)
    b_mix = p['b_dcn'].reshape(C, 1).astype(jnp.float32)
    out = _matmul_cols(cols, w_mix, b_mix, act=False)
    return out.reshape(N, C, H, W)


# -----------------------------------------------------------------------------
# Parameters (deterministic synthetic init); weights stored HWIO (K, K, Cin, Cout)
# -----------------------------------------------------------------------------
def init_params(key, in_ch, out_ch, c):
    keys = iter(jax.random.split(key, 128))

    def conv_p(cin, cout, k):
        w = 0.05 * jax.random.normal(next(keys), (k, k, cin, cout), jnp.float32)
        b = 0.01 * jax.random.normal(next(keys), (cout,), jnp.float32)
        return w, b

    def rdb5_p(nf, gc):
        p = {}
        cins = [nf, nf + gc, nf + 2 * gc, nf + 3 * gc, nf + 4 * gc]
        couts = [gc, gc, gc, gc, nf]
        for i, (ci, co) in enumerate(zip(cins, couts), 1):
            p[f'w{i}'], p[f'b{i}'] = conv_p(ci, co, 3)
        return p

    params = {}
    params['bot1'] = conv_p(3, c, 1)
    w1, b1 = conv_p(c, c, 3)
    params['bot31'] = {'w1': w1, 'b1': b1}
    params['main1'] = conv_p(in_ch, c, 3)
    for name in ('main31', 'main32', 'main33', 'main34'):
        params[name] = rdb5_p(c, c)
    params['main4'] = conv_p(c, out_ch, 3)
    w_off, b_off = conv_p(2 * c, 2 * 3 * 3, 3)
    w_dcn, b_dcn = conv_p(c, c, 3)
    params['defconv'] = {'w_off': w_off, 'b_off': b_off,
                         'w_dcn': w_dcn, 'b_dcn': b_dcn}
    return params


# -----------------------------------------------------------------------------
# SGN forward (NCHW in, NCHW out — no layout transposes needed)
# -----------------------------------------------------------------------------
def sgn_forward(params, x_nchw, x_hyper_nchw):
    x = x_nchw.astype(jnp.float32)
    xh = upsample_bilinear_x8(x_hyper_nchw.astype(jnp.float32))
    residule = xh

    # bot1 / bot31 first so that the "main1(xh) + bot1(x)" add fuses into the
    # main1 conv epilogue (same math as the reference ordering).
    xb = conv2d_same(x, *params['bot1'], act=True)
    spatial_feature = rdb1(xb, params['bot31'])

    xh = conv2d_same(xh, *params['main1'], act=True, residual=xb)
    xh = rdb5(xh, params['main31'])
    xh = deformable_conv_block(spatial_feature, xh, params['defconv'])
    xh = rdb5(xh, params['main32'])
    xh = deformable_conv_block(spatial_feature, xh, params['defconv'])
    xh = rdb5(xh, params['main33'])
    xh = deformable_conv_block(spatial_feature, xh, params['defconv'])
    xh = rdb5(xh, params['main34'])
    xh = deformable_conv_block(spatial_feature, xh, params['defconv'])
    # final conv with the residual add fused into its epilogue
    xh = conv2d_same(xh, *params['main4'], act=True, residual=residule)
    return xh


if __name__ == "__main__":
    key = jax.random.PRNGKey(0)
    k1, k2, k3 = jax.random.split(key, 3)

    N = 2
    IN_CH = 4        # opt.in_channels  (== opt.out_channels for final residual)
    OUT_CH = 4       # opt.out_channels
    START_CH = 8     # opt.start_channels
    H, W = 16, 16    # x spatial; x_hyper is 8x smaller

    x = jax.random.normal(k1, (N, 3, H, W), jnp.float32)
    x_hyper = jax.random.normal(k2, (N, IN_CH, H // 8, W // 8), jnp.float32)
    params = init_params(k3, IN_CH, OUT_CH, START_CH)

    out = jax.jit(sgn_forward)(params, x, x_hyper)
    out = jax.block_until_ready(out)
    assert out.shape == (N, OUT_CH, H, W)
    assert jnp.all(jnp.isfinite(out))
    print("KERNEL_OK")
</pallas_src>

<mosaic_0001>
module attributes {stable_mosaic.version = 11 : i64} {
  func.func @kernel(%arg0: i32, %arg1: i32, %arg2: memref<1x3x256xbf16, #tpu.memory_space<vmem>>, %arg3: memref<8x3xbf16, #tpu.memory_space<vmem>>, %arg4: memref<8x1xf32, #tpu.memory_space<vmem>>, %arg5: memref<1x8x256xf32, #tpu.memory_space<vmem>>) attributes {dimension_semantics = [#tpu.dimension_semantics<parallel>, #tpu.dimension_semantics<parallel>], iteration_bounds = array<i64: 2, 1>, scalar_prefetch = 0 : i64, scratch_operands = 0 : i64, tpu.core_type = #tpu.core_type<tc>, window_params = [{transform_indices = @transform_0, window_bounds = array<i64: 1, 3, 256>}, {pipeline_mode = #tpu.pipeline_mode<synchronous>, transform_indices = @transform_1, window_bounds = array<i64: 8, 3>}, {pipeline_mode = #tpu.pipeline_mode<synchronous>, transform_indices = @transform_2, window_bounds = array<i64: 8, 1>}, {transform_indices = @transform_3, window_bounds = array<i64: 1, 8, 256>}]} {
    %c0 = arith.constant 0 : index
    %c0_0 = arith.constant 0 : index
    %0 = vector.load %arg3[%c0, %c0_0] : memref<8x3xbf16, #tpu.memory_space<vmem>>, vector<8x3xbf16>
    %c0_1 = arith.constant 0 : index
    %c0_2 = arith.constant 0 : index
    %c0_3 = arith.constant 0 : index
    %1 = vector.load %arg2[%c0_1, %c0_2, %c0_3] : memref<1x3x256xbf16, #tpu.memory_space<vmem>>, vector<1x3x256xbf16>
    %2 = vector.shape_cast %1 : vector<1x3x256xbf16> to vector<3x256xbf16>
    %cst = arith.constant dense<0.000000e+00> : vector<8x256xf32>
    %3 = tpu.matmul %0, %2, %cst {dimension_numbers = #tpu.dot_dimension_numbers<[1], [0], [0], [1], [0, 0, 1, 1], [], []>} : vector<8x3xbf16>, vector<3x256xbf16>, vector<8x256xf32> -> vector<8x256xf32>
    %c0_4 = arith.constant 0 : index
    %c0_5 = arith.constant 0 : index
    %4 = vector.load %arg4[%c0_4, %c0_5] : memref<8x1xf32, #tpu.memory_space<vmem>>, vector<8x1xf32>
    %5 = vector.broadcast %4 : vector<8x1xf32> to vector<8x256xf32>
    %6 = arith.addf %3, %5 : vector<8x256xf32>
    %cst_6 = arith.constant 0.000000e+00 : f32
    %7 = vector.broadcast %cst_6 : f32 to vector<8x256xf32>
    %8 = arith.cmpf oge, %6, %7 : vector<8x256xf32>
    %cst_7 = arith.constant 2.000000e-01 : f32
    %9 = vector.broadcast %cst_7 : f32 to vector<8x256xf32>
    %10 = arith.mulf %9, %6 : vector<8x256xf32>
    %11 = arith.select %8, %6, %10 : vector<8x256xi1>, vector<8x256xf32>
    %c0_8 = arith.constant 0 : index
    %c0_9 = arith.constant 0 : index
    %c0_10 = arith.constant 0 : index
    %12 = vector.load %arg5[%c0_8, %c0_9, %c0_10] : memref<1x8x256xf32, #tpu.memory_space<vmem>>, vector<1x8x256xf32>
    %13 = vector.shape_cast %12 : vector<1x8x256xf32> to vector<8x256xf32>
    %14 = vector.shape_cast %11 : vector<8x256xf32> to vector<1x8x256xf32>
    tpu.vector_store %arg5[%c0_8, %c0_9, %c0_10], %14 {strides = array<i32>} : memref<1x8x256xf32, #tpu.memory_space<vmem>>, vector<1x8x256xf32>,
    return
  }
  func.func @transform_0(%arg0: i32, %arg1: i32) -> (i32, i32, i32) {
    %c0_i32 = arith.constant 0 : i32
    %c0_i32_0 = arith.constant 0 : i32
    return %arg0, %c0_i32, %arg1 : i32, i32, i32
  }
  func.func @transform_1(%arg0: i32, %arg1: i32) -> (i32, i32) {
    %c0_i32 = arith.constant 0 : i32
    %c0_i32_0 = arith.constant 0 : i32
    %c0_i32_1 = arith.constant 0 : i32
    return %c0_i32, %c0_i32_0 : i32, i32
  }
  func.func @transform_2(%arg0: i32, %arg1: i32) -> (i32, i32) {
    %c0_i32 = arith.constant 0 : i32
    %c0_i32_0 = arith.constant 0 : i32
    %c0_i32_1 = arith.constant 0 : i32
    return %c0_i32, %c0_i32_0 : i32, i32
  }
  func.func @transform_3(%arg0: i32, %arg1: i32) -> (i32, i32, i32) {
    %c0_i32 = arith.constant 0 : i32
    %c0_i32_0 = arith.constant 0 : i32
    return %arg0, %c0_i32, %arg1 : i32, i32, i32
  }
}

module attributes {stable_mosaic.version = 11 : i64} {
  func.func @kernel(%arg0: i32, %arg1: i32, %arg2: memref<1x36x256xbf16, #tpu.memory_space<vmem>>, %arg3: memref<8x36xbf16, #tpu.memory_space<vmem>>, %arg4: memref<8x1xf32, #tpu.memory_space<vmem>>, %arg5: memref<1x8x256xf32, #tpu.memory_space<vmem>>, %arg6: memref<1x8x256xf32, #tpu.memory_space<vmem>>) attributes {dimension_semantics = [#tpu.dimension_semantics<parallel>, #tpu.dimension_semantics<parallel>], iteration_bounds = array<i64: 2, 1>, scalar_prefetch = 0 : i64, scratch_operands = 0 : i64, tpu.core_type = #tpu.core_type<tc>, window_params = [{transform_indices = @transform_0, window_bounds = array<i64: 1, 36, 256>}, {pipeline_mode = #tpu.pipeline_mode<synchronous>, transform_indices = @transform_1, window_bounds = array<i64: 8, 36>}, {pipeline_mode = #tpu.pipeline_mode<synchronous>, transform_indices = @transform_2, window_bounds = array<i64: 8, 1>}, {transform_indices = @transform_3, window_bounds = array<i64: 1, 8, 256>}, {transform_indices = @transform_4, window_bounds = array<i64: 1, 8, 256>}]} {
    %c0 = arith.constant 0 : index
    %c0_0 = arith.constant 0 : index
    %0 = vector.load %arg3[%c0, %c0_0] : memref<8x36xbf16, #tpu.memory_space<vmem>>, vector<8x36xbf16>
    %c0_1 = arith.constant 0 : index
    %c0_2 = arith.constant 0 : index
    %c0_3 = arith.constant 0 : index
    %1 = vector.load %arg2[%c0_1, %c0_2, %c0_3] : memref<1x36x256xbf16, #tpu.memory_space<vmem>>, vector<1x36x256xbf16>
    %2 = vector.shape_cast %1 : vector<1x36x256xbf16> to vector<36x256xbf16>
    %cst = arith.constant dense<0.000000e+00> : vector<8x256xf32>
    %3 = tpu.matmul %0, %2, %cst {dimension_numbers = #tpu.dot_dimension_numbers<[1], [0], [0], [1], [0, 0, 1, 1], [], []>} : vector<8x36xbf16>, vector<36x256xbf16>, vector<8x256xf32> -> vector<8x256xf32>
    %c0_4 = arith.constant 0 : index
    %c0_5 = arith.constant 0 : index
    %4 = vector.load %arg4[%c0_4, %c0_5] : memref<8x1xf32, #tpu.memory_space<vmem>>, vector<8x1xf32>
    %5 = vector.broadcast %4 : vector<8x1xf32> to vector<8x256xf32>
    %6 = arith.addf %3, %5 : vector<8x256xf32>
    %cst_6 = arith.constant 0.000000e+00 : f32
    %7 = vector.broadcast %cst_6 : f32 to vector<8x256xf32>
    %8 = arith.cmpf oge, %6, %7 : vector<8x256xf32>
    %cst_7 = arith.constant 2.000000e-01 : f32
    %9 = vector.broadcast %cst_7 : f32 to vector<8x256xf32>
    %10 = arith.mulf %9, %6 : vector<8x256xf32>
    %11 = arith.select %8, %6, %10 : vector<8x256xi1>, vector<8x256xf32>
    %c0_8 = arith.constant 0 : index
    %c0_9 = arith.constant 0 : index
    %c0_10 = arith.constant 0 : index
    %12 = vector.load %arg5[%c0_8, %c0_9, %c0_10] : memref<1x8x256xf32, #tpu.memory_space<vmem>>, vector<1x8x256xf32>
    %13 = vector.shape_cast %12 : vector<1x8x256xf32> to vector<8x256xf32>
    %14 = arith.addf %11, %13 : vector<8x256xf32>
    %c0_11 = arith.constant 0 : index
    %c0_12 = arith.constant 0 : index
    %c0_13 = arith.constant 0 : index
    %15 = vector.load %arg6[%c0_11, %c0_12, %c0_13] : memref<1x8x256xf32, #tpu.memory_space<vmem>>, vector<1x8x256xf32>
    %16 = vector.shape_cast %15 : vector<1x8x256xf32> to vector<8x256xf32>
    %17 = vector.shape_cast %14 : vector<8x256xf32> to vector<1x8x256xf32>
    tpu.vector_store %arg6[%c0_11, %c0_12, %c0_13], %17 {strides = array<i32>} : memref<1x8x256xf32, #tpu.memory_space<vmem>>, vector<1x8x256xf32>,
    return
  }
  func.func @transform_0(%arg0: i32, %arg1: i32) -> (i32, i32, i32) {
    %c0_i32 = arith.constant 0 : i32
    %c0_i32_0 = arith.constant 0 : i32
    return %arg0, %c0_i32, %arg1 : i32, i32, i32
  }
  func.func @transform_1(%arg0: i32, %arg1: i32) -> (i32, i32) {
    %c0_i32 = arith.constant 0 : i32
    %c0_i32_0 = arith.constant 0 : i32
    %c0_i32_1 = arith.constant 0 : i32
    return %c0_i32, %c0_i32_0 : i32, i32
  }
  func.func @transform_2(%arg0: i32, %arg1: i32) -> (i32, i32) {
    %c0_i32 = arith.constant 0 : i32
    %c0_i32_0 = arith.constant 0 : i32
    %c0_i32_1 = arith.constant 0 : i32
    return %c0_i32, %c0_i32_0 : i32, i32
  }
  func.func @transform_3(%arg0: i32, %arg1: i32) -> (i32, i32, i32) {
    %c0_i32 = arith.constant 0 : i32
    %c0_i32_0 = arith.constant 0 : i32
    return %arg0, %c0_i32, %arg1 : i32, i32, i32
  }
  func.func @transform_4(%arg0: i32, %arg1: i32) -> (i32, i32, i32) {
    %c0_i32 = arith.constant 0 : i32
    %c0_i32_0 = arith.constant 0 : i32
    return %arg0, %c0_i32, %arg1 : i32, i32, i32
  }
}

module attributes {stable_mosaic.version = 11 : i64} {
  func.func @kernel(%arg0: i32, %arg1: i32, %arg2: memref<1x72x256xbf16, #tpu.memory_space<vmem>>, %arg3: memref<8x72xbf16, #tpu.memory_space<vmem>>, %arg4: memref<8x1xf32, #tpu.memory_space<vmem>>, %arg5: memref<1x8x256xf32, #tpu.memory_space<vmem>>) attributes {dimension_semantics = [#tpu.dimension_semantics<parallel>, #tpu.dimension_semantics<parallel>], iteration_bounds = array<i64: 2, 1>, scalar_prefetch = 0 : i64, scratch_operands = 0 : i64, tpu.core_type = #tpu.core_type<tc>, window_params = [{transform_indices = @transform_0, window_bounds = array<i64: 1, 72, 256>}, {pipeline_mode = #tpu.pipeline_mode<synchronous>, transform_indices = @transform_1, window_bounds = array<i64: 8, 72>}, {pipeline_mode = #tpu.pipeline_mode<synchronous>, transform_indices = @transform_2, window_bounds = array<i64: 8, 1>}, {transform_indices = @transform_3, window_bounds = array<i64: 1, 8, 256>}]} {
    %c0 = arith.constant 0 : index
    %c0_0 = arith.constant 0 : index
    %0 = vector.load %arg3[%c0, %c0_0] : memref<8x72xbf16, #tpu.memory_space<vmem>>, vector<8x72xbf16>
    %c0_1 = arith.constant 0 : index
    %c0_2 = arith.constant 0 : index
    %c0_3 = arith.constant 0 : index
    %1 = vector.load %arg2[%c0_1, %c0_2, %c0_3] : memref<1x72x256xbf16, #tpu.memory_space<vmem>>, vector<1x72x256xbf16>
    %2 = vector.shape_cast %1 : vector<1x72x256xbf16> to vector<72x256xbf16>
    %cst = arith.constant dense<0.000000e+00> : vector<8x256xf32>
    %3 = tpu.matmul %0, %2, %cst {dimension_numbers = #tpu.dot_dimension_numbers<[1], [0], [0], [1], [0, 0, 1, 1], [], []>} : vector<8x72xbf16>, vector<72x256xbf16>, vector<8x256xf32> -> vector<8x256xf32>
    %c0_4 = arith.constant 0 : index
    %c0_5 = arith.constant 0 : index
    %4 = vector.load %arg4[%c0_4, %c0_5] : memref<8x1xf32, #tpu.memory_space<vmem>>, vector<8x1xf32>
    %5 = vector.broadcast %4 : vector<8x1xf32> to vector<8x256xf32>
    %6 = arith.addf %3, %5 : vector<8x256xf32>
    %cst_6 = arith.constant 0.000000e+00 : f32
    %7 = vector.broadcast %cst_6 : f32 to vector<8x256xf32>
    %8 = arith.cmpf oge, %6, %7 : vector<8x256xf32>
    %cst_7 = arith.constant 2.000000e-01 : f32
    %9 = vector.broadcast %cst_7 : f32 to vector<8x256xf32>
    %10 = arith.mulf %9, %6 : vector<8x256xf32>
    %11 = arith.select %8, %6, %10 : vector<8x256xi1>, vector<8x256xf32>
    %c0_8 = arith.constant 0 : index
    %c0_9 = arith.constant 0 : index
    %c0_10 = arith.constant 0 : index
    %12 = vector.load %arg5[%c0_8, %c0_9, %c0_10] : memref<1x8x256xf32, #tpu.memory_space<vmem>>, vector<1x8x256xf32>
    %13 = vector.shape_cast %12 : vector<1x8x256xf32> to vector<8x256xf32>
    %14 = vector.shape_cast %11 : vector<8x256xf32> to vector<1x8x256xf32>
    tpu.vector_store %arg5[%c0_8, %c0_9, %c0_10], %14 {strides = array<i32>} : memref<1x8x256xf32, #tpu.memory_space<vmem>>, vector<1x8x256xf32>,
    return
  }
  func.func @transform_0(%arg0: i32, %arg1: i32) -> (i32, i32, i32) {
    %c0_i32 = arith.constant 0 : i32
    %c0_i32_0 = arith.constant 0 : i32
    return %arg0, %c0_i32, %arg1 : i32, i32, i32
  }
  func.func @transform_1(%arg0: i32, %arg1: i32) -> (i32, i32) {
    %c0_i32 = arith.constant 0 : i32
    %c0_i32_0 = arith.constant 0 : i32
    %c0_i32_1 = arith.constant 0 : i32
    return %c0_i32, %c0_i32_0 : i32, i32
  }
  func.func @transform_2(%arg0: i32, %arg1: i32) -> (i32, i32) {
    %c0_i32 = arith.constant 0 : i32
    %c0_i32_0 = arith.constant 0 : i32
    %c0_i32_1 = arith.constant 0 : i32
    return %c0_i32, %c0_i32_0 : i32, i32
  }
  func.func @transform_3(%arg0: i32, %arg1: i32) -> (i32, i32, i32) {
    %c0_i32 = arith.constant 0 : i32
    %c0_i32_0 = arith.constant 0 : i32
    return %arg0, %c0_i32, %arg1 : i32, i32, i32
  }
}

module attributes {stable_mosaic.version = 11 : i64} {
  func.func @kernel(%arg0: i32, %arg1: i32, %arg2: memref<1x144x256xbf16, #tpu.memory_space<vmem>>, %arg3: memref<8x144xbf16, #tpu.memory_space<vmem>>, %arg4: memref<8x1xf32, #tpu.memory_space<vmem>>, %arg5: memref<1x8x256xf32, #tpu.memory_space<vmem>>) attributes {dimension_semantics = [#tpu.dimension_semantics<parallel>, #tpu.dimension_semantics<parallel>], iteration_bounds = array<i64: 2, 1>, scalar_prefetch = 0 : i64, scratch_operands = 0 : i64, tpu.core_type = #tpu.core_type<tc>, window_params = [{transform_indices = @transform_0, window_bounds = array<i64: 1, 144, 256>}, {pipeline_mode = #tpu.pipeline_mode<synchronous>, transform_indices = @transform_1, window_bounds = array<i64: 8, 144>}, {pipeline_mode = #tpu.pipeline_mode<synchronous>, transform_indices = @transform_2, window_bounds = array<i64: 8, 1>}, {transform_indices = @transform_3, window_bounds = array<i64: 1, 8, 256>}]} {
    %c0 = arith.constant 0 : index
    %c0_0 = arith.constant 0 : index
    %0 = vector.load %arg3[%c0, %c0_0] : memref<8x144xbf16, #tpu.memory_space<vmem>>, vector<8x144xbf16>
    %c0_1 = arith.constant 0 : index
    %c0_2 = arith.constant 0 : index
    %c0_3 = arith.constant 0 : index
    %1 = vector.load %arg2[%c0_1, %c0_2, %c0_3] : memref<1x144x256xbf16, #tpu.memory_space<vmem>>, vector<1x144x256xbf16>
    %2 = vector.shape_cast %1 : vector<1x144x256xbf16> to vector<144x256xbf16>
    %cst = arith.constant dense<0.000000e+00> : vector<8x256xf32>
    %3 = tpu.matmul %0, %2, %cst {dimension_numbers = #tpu.dot_dimension_numbers<[1], [0], [0], [1], [0, 0, 1, 1], [], []>} : vector<8x144xbf16>, vector<144x256xbf16>, vector<8x256xf32> -> vector<8x256xf32>
    %c0_4 = arith.constant 0 : index
    %c0_5 = arith.constant 0 : index
    %4 = vector.load %arg4[%c0_4, %c0_5] : memref<8x1xf32, #tpu.memory_space<vmem>>, vector<8x1xf32>
    %5 = vector.broadcast %4 : vector<8x1xf32> to vector<8x256xf32>
    %6 = arith.addf %3, %5 : vector<8x256xf32>
    %cst_6 = arith.constant 0.000000e+00 : f32
    %7 = vector.broadcast %cst_6 : f32 to vector<8x256xf32>
    %8 = arith.cmpf oge, %6, %7 : vector<8x256xf32>
    %cst_7 = arith.constant 2.000000e-01 : f32
    %9 = vector.broadcast %cst_7 : f32 to vector<8x256xf32>
    %10 = arith.mulf %9, %6 : vector<8x256xf32>
    %11 = arith.select %8, %6, %10 : vector<8x256xi1>, vector<8x256xf32>
    %c0_8 = arith.constant 0 : index
    %c0_9 = arith.constant 0 : index
    %c0_10 = arith.constant 0 : index
    %12 = vector.load %arg5[%c0_8, %c0_9, %c0_10] : memref<1x8x256xf32, #tpu.memory_space<vmem>>, vector<1x8x256xf32>
    %13 = vector.shape_cast %12 : vector<1x8x256xf32> to vector<8x256xf32>
    %14 = vector.shape_cast %11 : vector<8x256xf32> to vector<1x8x256xf32>
    tpu.vector_store %arg5[%c0_8, %c0_9, %c0_10], %14 {strides = array<i32>} : memref<1x8x256xf32, #tpu.memory_space<vmem>>, vector<1x8x256xf32>,
    return
  }
  func.func @transform_0(%arg0: i32, %arg1: i32) -> (i32, i32, i32) {
    %c0_i32 = arith.constant 0 : i32
    %c0_i32_0 = arith.constant 0 : i32
    return %arg0, %c0_i32, %arg1 : i32, i32, i32
  }
  func.func @transform_1(%arg0: i32, %arg1: i32) -> (i32, i32) {
    %c0_i32 = arith.constant 0 : i32
    %c0_i32_0 = arith.constant 0 : i32
    %c0_i32_1 = arith.constant 0 : i32
    return %c0_i32, %c0_i32_0 : i32, i32
  }
  func.func @transform_2(%arg0: i32, %arg1: i32) -> (i32, i32) {
    %c0_i32 = arith.constant 0 : i32
    %c0_i32_0 = arith.constant 0 : i32
    %c0_i32_1 = arith.constant 0 : i32
    return %c0_i32, %c0_i32_0 : i32, i32
  }
  func.func @transform_3(%arg0: i32, %arg1: i32) -> (i32, i32, i32) {
    %c0_i32 = arith.constant 0 : i32
    %c0_i32_0 = arith.constant 0 : i32
    return %arg0, %c0_i32, %arg1 : i32, i32, i32
  }
}

module attributes {stable_mosaic.version = 11 : i64} {
  func.func @kernel(%arg0: i32, %arg1: i32, %arg2: memref<1x216x256xbf16, #tpu.memory_space<vmem>>, %arg3: memref<8x216xbf16, #tpu.memory_space<vmem>>, %arg4: memref<8x1xf32, #tpu.memory_space<vmem>>, %arg5: memref<1x8x256xf32, #tpu.memory_space<vmem>>) attributes {dimension_semantics = [#tpu.dimension_semantics<parallel>, #tpu.dimension_semantics<parallel>], iteration_bounds = array<i64: 2, 1>, scalar_prefetch = 0 : i64, scratch_operands = 0 : i64, tpu.core_type = #tpu.core_type<tc>, window_params = [{transform_indices = @transform_0, window_bounds = array<i64: 1, 216, 256>}, {pipeline_mode = #tpu.pipeline_mode<synchronous>, transform_indices = @transform_1, window_bounds = array<i64: 8, 216>}, {pipeline_mode = #tpu.pipeline_mode<synchronous>, transform_indices = @transform_2, window_bounds = array<i64: 8, 1>}, {transform_indices = @transform_3, window_bounds = array<i64: 1, 8, 256>}]} {
    %c0 = arith.constant 0 : index
    %c0_0 = arith.constant 0 : index
    %0 = vector.load %arg3[%c0, %c0_0] : memref<8x216xbf16, #tpu.memory_space<vmem>>, vector<8x216xbf16>
    %c0_1 = arith.constant 0 : index
    %c0_2 = arith.constant 0 : index
    %c0_3 = arith.constant 0 : index
    %1 = vector.load %arg2[%c0_1, %c0_2, %c0_3] : memref<1x216x256xbf16, #tpu.memory_space<vmem>>, vector<1x216x256xbf16>
    %2 = vector.shape_cast %1 : vector<1x216x256xbf16> to vector<216x256xbf16>
    %cst = arith.constant dense<0.000000e+00> : vector<8x256xf32>
    %3 = tpu.matmul %0, %2, %cst {dimension_numbers = #tpu.dot_dimension_numbers<[1], [0], [0], [1], [0, 0, 1, 1], [], []>} : vector<8x216xbf16>, vector<216x256xbf16>, vector<8x256xf32> -> vector<8x256xf32>
    %c0_4 = arith.constant 0 : index
    %c0_5 = arith.constant 0 : index
    %4 = vector.load %arg4[%c0_4, %c0_5] : memref<8x1xf32, #tpu.memory_space<vmem>>, vector<8x1xf32>
    %5 = vector.broadcast %4 : vector<8x1xf32> to vector<8x256xf32>
    %6 = arith.addf %3, %5 : vector<8x256xf32>
    %cst_6 = arith.constant 0.000000e+00 : f32
    %7 = vector.broadcast %cst_6 : f32 to vector<8x256xf32>
    %8 = arith.cmpf oge, %6, %7 : vector<8x256xf32>
    %cst_7 = arith.constant 2.000000e-01 : f32
    %9 = vector.broadcast %cst_7 : f32 to vector<8x256xf32>
    %10 = arith.mulf %9, %6 : vector<8x256xf32>
    %11 = arith.select %8, %6, %10 : vector<8x256xi1>, vector<8x256xf32>
    %c0_8 = arith.constant 0 : index
    %c0_9 = arith.constant 0 : index
    %c0_10 = arith.constant 0 : index
    %12 = vector.load %arg5[%c0_8, %c0_9, %c0_10] : memref<1x8x256xf32, #tpu.memory_space<vmem>>, vector<1x8x256xf32>
    %13 = vector.shape_cast %12 : vector<1x8x256xf32> to vector<8x256xf32>
    %14 = vector.shape_cast %11 : vector<8x256xf32> to vector<1x8x256xf32>
    tpu.vector_store %arg5[%c0_8, %c0_9, %c0_10], %14 {strides = array<i32>} : memref<1x8x256xf32, #tpu.memory_space<vmem>>, vector<1x8x256xf32>,
    return
  }
  func.func @transform_0(%arg0: i32, %arg1: i32) -> (i32, i32, i32) {
    %c0_i32 = arith.constant 0 : i32
    %c0_i32_0 = arith.constant 0 : i32
    return %arg0, %c0_i32, %arg1 : i32, i32, i32
  }
  func.func @transform_1(%arg0: i32, %arg1: i32) -> (i32, i32) {
    %c0_i32 = arith.constant 0 : i32
    %c0_i32_0 = arith.constant 0 : i32
    %c0_i32_1 = arith.constant 0 : i32
    return %c0_i32, %c0_i32_0 : i32, i32
  }
  func.func @transform_2(%arg0: i32, %arg1: i32) -> (i32, i32) {
    %c0_i32 = arith.constant 0 : i32
    %c0_i32_0 = arith.constant 0 : i32
    %c0_i32_1 = arith.constant 0 : i32
    return %c0_i32, %c0_i32_0 : i32, i32
  }
  func.func @transform_3(%arg0: i32, %arg1: i32) -> (i32, i32, i32) {
    %c0_i32 = arith.constant 0 : i32
    %c0_i32_0 = arith.constant 0 : i32
    return %arg0, %c0_i32, %arg1 : i32, i32, i32
  }
}

module attributes {stable_mosaic.version = 11 : i64} {
  func.func @kernel(%arg0: i32, %arg1: i32, %arg2: memref<1x288x256xbf16, #tpu.memory_space<vmem>>, %arg3: memref<8x288xbf16, #tpu.memory_space<vmem>>, %arg4: memref<8x1xf32, #tpu.memory_space<vmem>>, %arg5: memref<1x8x256xf32, #tpu.memory_space<vmem>>) attributes {dimension_semantics = [#tpu.dimension_semantics<parallel>, #tpu.dimension_semantics<parallel>], iteration_bounds = array<i64: 2, 1>, scalar_prefetch = 0 : i64, scratch_operands = 0 : i64, tpu.core_type = #tpu.core_type<tc>, window_params = [{transform_indices = @transform_0, window_bounds = array<i64: 1, 288, 256>}, {pipeline_mode = #tpu.pipeline_mode<synchronous>, transform_indices = @transform_1, window_bounds = array<i64: 8, 288>}, {pipeline_mode = #tpu.pipeline_mode<synchronous>, transform_indices = @transform_2, window_bounds = array<i64: 8, 1>}, {transform_indices = @transform_3, window_bounds = array<i64: 1, 8, 256>}]} {
    %c0 = arith.constant 0 : index
    %c0_0 = arith.constant 0 : index
    %0 = vector.load %arg3[%c0, %c0_0] : memref<8x288xbf16, #tpu.memory_space<vmem>>, vector<8x288xbf16>
    %c0_1 = arith.constant 0 : index
    %c0_2 = arith.constant 0 : index
    %c0_3 = arith.constant 0 : index
    %1 = vector.load %arg2[%c0_1, %c0_2, %c0_3] : memref<1x288x256xbf16, #tpu.memory_space<vmem>>, vector<1x288x256xbf16>
    %2 = vector.shape_cast %1 : vector<1x288x256xbf16> to vector<288x256xbf16>
    %cst = arith.constant dense<0.000000e+00> : vector<8x256xf32>
    %3 = tpu.matmul %0, %2, %cst {dimension_numbers = #tpu.dot_dimension_numbers<[1], [0], [0], [1], [0, 0, 1, 1], [], []>} : vector<8x288xbf16>, vector<288x256xbf16>, vector<8x256xf32> -> vector<8x256xf32>
    %c0_4 = arith.constant 0 : index
    %c0_5 = arith.constant 0 : index
    %4 = vector.load %arg4[%c0_4, %c0_5] : memref<8x1xf32, #tpu.memory_space<vmem>>, vector<8x1xf32>
    %5 = vector.broadcast %4 : vector<8x1xf32> to vector<8x256xf32>
    %6 = arith.addf %3, %5 : vector<8x256xf32>
    %cst_6 = arith.constant 0.000000e+00 : f32
    %7 = vector.broadcast %cst_6 : f32 to vector<8x256xf32>
    %8 = arith.cmpf oge, %6, %7 : vector<8x256xf32>
    %cst_7 = arith.constant 2.000000e-01 : f32
    %9 = vector.broadcast %cst_7 : f32 to vector<8x256xf32>
    %10 = arith.mulf %9, %6 : vector<8x256xf32>
    %11 = arith.select %8, %6, %10 : vector<8x256xi1>, vector<8x256xf32>
    %c0_8 = arith.constant 0 : index
    %c0_9 = arith.constant 0 : index
    %c0_10 = arith.constant 0 : index
    %12 = vector.load %arg5[%c0_8, %c0_9, %c0_10] : memref<1x8x256xf32, #tpu.memory_space<vmem>>, vector<1x8x256xf32>
    %13 = vector.shape_cast %12 : vector<1x8x256xf32> to vector<8x256xf32>
    %14 = vector.shape_cast %11 : vector<8x256xf32> to vector<1x8x256xf32>
    tpu.vector_store %arg5[%c0_8, %c0_9, %c0_10], %14 {strides = array<i32>} : memref<1x8x256xf32, #tpu.memory_space<vmem>>, vector<1x8x256xf32>,
    return
  }
  func.func @transform_0(%arg0: i32, %arg1: i32) -> (i32, i32, i32) {
    %c0_i32 = arith.constant 0 : i32
    %c0_i32_0 = arith.constant 0 : i32
    return %arg0, %c0_i32, %arg1 : i32, i32, i32
  }
  func.func @transform_1(%arg0: i32, %arg1: i32) -> (i32, i32) {
    %c0_i32 = arith.constant 0 : i32
    %c0_i32_0 = arith.constant 0 : i32
    %c0_i32_1 = arith.constant 0 : i32
    return %c0_i32, %c0_i32_0 : i32, i32
  }
  func.func @transform_2(%arg0: i32, %arg1: i32) -> (i32, i32) {
    %c0_i32 = arith.constant 0 : i32
    %c0_i32_0 = arith.constant 0 : i32
    %c0_i32_1 = arith.constant 0 : i32
    return %c0_i32, %c0_i32_0 : i32, i32
  }
  func.func @transform_3(%arg0: i32, %arg1: i32) -> (i32, i32, i32) {
    %c0_i32 = arith.constant 0 : i32
    %c0_i32_0 = arith.constant 0 : i32
    return %arg0, %c0_i32, %arg1 : i32, i32, i32
  }
}

module attributes {stable_mosaic.version = 11 : i64} {
  func.func @kernel(%arg0: i32, %arg1: i32, %arg2: memref<1x360x256xbf16, #tpu.memory_space<vmem>>, %arg3: memref<8x360xbf16, #tpu.memory_space<vmem>>, %arg4: memref<8x1xf32, #tpu.memory_space<vmem>>, %arg5: memref<1x8x256xf32, #tpu.memory_space<vmem>>, %arg6: memref<1x8x256xf32, #tpu.memory_space<vmem>>) attributes {dimension_semantics = [#tpu.dimension_semantics<parallel>, #tpu.dimension_semantics<parallel>], iteration_bounds = array<i64: 2, 1>, scalar_prefetch = 0 : i64, scratch_operands = 0 : i64, tpu.core_type = #tpu.core_type<tc>, window_params = [{transform_indices = @transform_0, window_bounds = array<i64: 1, 360, 256>}, {pipeline_mode = #tpu.pipeline_mode<synchronous>, transform_indices = @transform_1, window_bounds = array<i64: 8, 360>}, {pipeline_mode = #tpu.pipeline_mode<synchronous>, transform_indices = @transform_2, window_bounds = array<i64: 8, 1>}, {transform_indices = @transform_3, window_bounds = array<i64: 1, 8, 256>}, {transform_indices = @transform_4, window_bounds = array<i64: 1, 8, 256>}]} {
    %c0 = arith.constant 0 : index
    %c0_0 = arith.constant 0 : index
    %0 = vector.load %arg3[%c0, %c0_0] : memref<8x360xbf16, #tpu.memory_space<vmem>>, vector<8x360xbf16>
    %c0_1 = arith.constant 0 : index
    %c0_2 = arith.constant 0 : index
    %c0_3 = arith.constant 0 : index
    %1 = vector.load %arg2[%c0_1, %c0_2, %c0_3] : memref<1x360x256xbf16, #tpu.memory_space<vmem>>, vector<1x360x256xbf16>
    %2 = vector.shape_cast %1 : vector<1x360x256xbf16> to vector<360x256xbf16>
    %cst = arith.constant dense<0.000000e+00> : vector<8x256xf32>
    %3 = tpu.matmul %0, %2, %cst {dimension_numbers = #tpu.dot_dimension_numbers<[1], [0], [0], [1], [0, 0, 1, 1], [], []>} : vector<8x360xbf16>, vector<360x256xbf16>, vector<8x256xf32> -> vector<8x256xf32>
    %c0_4 = arith.constant 0 : index
    %c0_5 = arith.constant 0 : index
    %4 = vector.load %arg4[%c0_4, %c0_5] : memref<8x1xf32, #tpu.memory_space<vmem>>, vector<8x1xf32>
    %5 = vector.broadcast %4 : vector<8x1xf32> to vector<8x256xf32>
    %6 = arith.addf %3, %5 : vector<8x256xf32>
    %cst_6 = arith.constant 2.000000e-01 : f32
    %7 = vector.broadcast %cst_6 : f32 to vector<8x256xf32>
    %8 = arith.mulf %6, %7 : vector<8x256xf32>
    %c0_7 = arith.constant 0 : index
    %c0_8 = arith.constant 0 : index
    %c0_9 = arith.constant 0 : index
    %9 = vector.load %arg5[%c0_7, %c0_8, %c0_9] : memref<1x8x256xf32, #tpu.memory_space<vmem>>, vector<1x8x256xf32>
    %10 = vector.shape_cast %9 : vector<1x8x256xf32> to vector<8x256xf32>
    %11 = arith.addf %8, %10 : vector<8x256xf32>
    %c0_10 = arith.constant 0 : index
    %c0_11 = arith.constant 0 : index
    %c0_12 = arith.constant 0 : index
    %12 = vector.load %arg6[%c0_10, %c0_11, %c0_12] : memref<1x8x256xf32, #tpu.memory_space<vmem>>, vector<1x8x256xf32>
    %13 = vector.shape_cast %12 : vector<1x8x256xf32> to vector<8x256xf32>
    %14 = vector.shape_cast %11 : vector<8x256xf32> to vector<1x8x256xf32>
    tpu.vector_store %arg6[%c0_10, %c0_11, %c0_12], %14 {strides = array<i32>} : memref<1x8x256xf32, #tpu.memory_space<vmem>>, vector<1x8x256xf32>,
    return
  }
  func.func @transform_0(%arg0: i32, %arg1: i32) -> (i32, i32, i32) {
    %c0_i32 = arith.constant 0 : i32
    %c0_i32_0 = arith.constant 0 : i32
    return %arg0, %c0_i32, %arg1 : i32, i32, i32
  }
  func.func @transform_1(%arg0: i32, %arg1: i32) -> (i32, i32) {
    %c0_i32 = arith.constant 0 : i32
    %c0_i32_0 = arith.constant 0 : i32
    %c0_i32_1 = arith.constant 0 : i32
    return %c0_i32, %c0_i32_0 : i32, i32
  }
  func.func @transform_2(%arg0: i32, %arg1: i32) -> (i32, i32) {
    %c0_i32 = arith.constant 0 : i32
    %c0_i32_0 = arith.constant 0 : i32
    %c0_i32_1 = arith.constant 0 : i32
    return %c0_i32, %c0_i32_0 : i32, i32
  }
  func.func @transform_3(%arg0: i32, %arg1: i32) -> (i32, i32, i32) {
    %c0_i32 = arith.constant 0 : i32
    %c0_i32_0 = arith.constant 0 : i32
    return %arg0, %c0_i32, %arg1 : i32, i32, i32
  }
  func.func @transform_4(%arg0: i32, %arg1: i32) -> (i32, i32, i32) {
    %c0_i32 = arith.constant 0 : i32
    %c0_i32_0 = arith.constant 0 : i32
    return %arg0, %c0_i32, %arg1 : i32, i32, i32
  }
}

module attributes {stable_mosaic.version = 11 : i64} {
  func.func @kernel(%arg0: i32, %arg1: i32, %arg2: memref<1x72x256xbf16, #tpu.memory_space<vmem>>, %arg3: memref<8x72xbf16, #tpu.memory_space<vmem>>, %arg4: memref<8x1xf32, #tpu.memory_space<vmem>>, %arg5: memref<1x8x256xf32, #tpu.memory_space<vmem>>, %arg6: memref<1x8x256xf32, #tpu.memory_space<vmem>>) attributes {dimension_semantics = [#tpu.dimension_semantics<parallel>, #tpu.dimension_semantics<parallel>], iteration_bounds = array<i64: 2, 1>, scalar_prefetch = 0 : i64, scratch_operands = 0 : i64, tpu.core_type = #tpu.core_type<tc>, window_params = [{transform_indices = @transform_0, window_bounds = array<i64: 1, 72, 256>}, {pipeline_mode = #tpu.pipeline_mode<synchronous>, transform_indices = @transform_1, window_bounds = array<i64: 8, 72>}, {pipeline_mode = #tpu.pipeline_mode<synchronous>, transform_indices = @transform_2, window_bounds = array<i64: 8, 1>}, {transform_indices = @transform_3, window_bounds = array<i64: 1, 8, 256>}, {transform_indices = @transform_4, window_bounds = array<i64: 1, 8, 256>}]} {
    %c0 = arith.constant 0 : index
    %c0_0 = arith.constant 0 : index
    %0 = vector.load %arg3[%c0, %c0_0] : memref<8x72xbf16, #tpu.memory_space<vmem>>, vector<8x72xbf16>
    %c0_1 = arith.constant 0 : index
    %c0_2 = arith.constant 0 : index
    %c0_3 = arith.constant 0 : index
    %1 = vector.load %arg2[%c0_1, %c0_2, %c0_3] : memref<1x72x256xbf16, #tpu.memory_space<vmem>>, vector<1x72x256xbf16>
    %2 = vector.shape_cast %1 : vector<1x72x256xbf16> to vector<72x256xbf16>
    %cst = arith.constant dense<0.000000e+00> : vector<8x256xf32>
    %3 = tpu.matmul %0, %2, %cst {dimension_numbers = #tpu.dot_dimension_numbers<[1], [0], [0], [1], [0, 0, 1, 1], [], []>} : vector<8x72xbf16>, vector<72x256xbf16>, vector<8x256xf32> -> vector<8x256xf32>
    %c0_4 = arith.constant 0 : index
    %c0_5 = arith.constant 0 : index
    %4 = vector.load %arg4[%c0_4, %c0_5] : memref<8x1xf32, #tpu.memory_space<vmem>>, vector<8x1xf32>
    %5 = vector.broadcast %4 : vector<8x1xf32> to vector<8x256xf32>
    %6 = arith.addf %3, %5 : vector<8x256xf32>
    %cst_6 = arith.constant 0.000000e+00 : f32
    %7 = vector.broadcast %cst_6 : f32 to vector<8x256xf32>
    %8 = arith.cmpf oge, %6, %7 : vector<8x256xf32>
    %cst_7 = arith.constant 2.000000e-01 : f32
    %9 = vector.broadcast %cst_7 : f32 to vector<8x256xf32>
    %10 = arith.mulf %9, %6 : vector<8x256xf32>
    %11 = arith.select %8, %6, %10 : vector<8x256xi1>, vector<8x256xf32>
    %cst_8 = arith.constant 2.000000e-01 : f32
    %12 = vector.broadcast %cst_8 : f32 to vector<8x256xf32>
    %13 = arith.mulf %11, %12 : vector<8x256xf32>
    %c0_9 = arith.constant 0 : index
    %c0_10 = arith.constant 0 : index
    %c0_11 = arith.constant 0 : index
    %14 = vector.load %arg5[%c0_9, %c0_10, %c0_11] : memref<1x8x256xf32, #tpu.memory_space<vmem>>, vector<1x8x256xf32>
    %15 = vector.shape_cast %14 : vector<1x8x256xf32> to vector<8x256xf32>
    %16 = arith.addf %13, %15 : vector<8x256xf32>
    %c0_12 = arith.constant 0 : index
    %c0_13 = arith.constant 0 : index
    %c0_14 = arith.constant 0 : index
    %17 = vector.load %arg6[%c0_12, %c0_13, %c0_14] : memref<1x8x256xf32, #tpu.memory_space<vmem>>, vector<1x8x256xf32>
    %18 = vector.shape_cast %17 : vector<1x8x256xf32> to vector<8x256xf32>
    %19 = vector.shape_cast %16 : vector<8x256xf32> to vector<1x8x256xf32>
    tpu.vector_store %arg6[%c0_12, %c0_13, %c0_14], %19 {strides = array<i32>} : memref<1x8x256xf32, #tpu.memory_space<vmem>>, vector<1x8x256xf32>,
    return
  }
  func.func @transform_0(%arg0: i32, %arg1: i32) -> (i32, i32, i32) {
    %c0_i32 = arith.constant 0 : i32
    %c0_i32_0 = arith.constant 0 : i32
    return %arg0, %c0_i32, %arg1 : i32, i32, i32
  }
  func.func @transform_1(%arg0: i32, %arg1: i32) -> (i32, i32) {
    %c0_i32 = arith.constant 0 : i32
    %c0_i32_0 = arith.constant 0 : i32
    %c0_i32_1 = arith.constant 0 : i32
    return %c0_i32, %c0_i32_0 : i32, i32
  }
  func.func @transform_2(%arg0: i32, %arg1: i32) -> (i32, i32) {
    %c0_i32 = arith.constant 0 : i32
    %c0_i32_0 = arith.constant 0 : i32
    %c0_i32_1 = arith.constant 0 : i32
    return %c0_i32, %c0_i32_0 : i32, i32
  }
  func.func @transform_3(%arg0: i32, %arg1: i32) -> (i32, i32, i32) {
    %c0_i32 = arith.constant 0 : i32
    %c0_i32_0 = arith.constant 0 : i32
    return %arg0, %c0_i32, %arg1 : i32, i32, i32
  }
  func.func @transform_4(%arg0: i32, %arg1: i32) -> (i32, i32, i32) {
    %c0_i32 = arith.constant 0 : i32
    %c0_i32_0 = arith.constant 0 : i32
    return %arg0, %c0_i32, %arg1 : i32, i32, i32
  }
}

module attributes {stable_mosaic.version = 11 : i64} {
  func.func @kernel(%arg0: i32, %arg1: i32, %arg2: memref<1x144x256xbf16, #tpu.memory_space<vmem>>, %arg3: memref<18x144xbf16, #tpu.memory_space<vmem>>, %arg4: memref<18x1xf32, #tpu.memory_space<vmem>>, %arg5: memref<1x18x256xf32, #tpu.memory_space<vmem>>) attributes {dimension_semantics = [#tpu.dimension_semantics<parallel>, #tpu.dimension_semantics<parallel>], iteration_bounds = array<i64: 2, 1>, scalar_prefetch = 0 : i64, scratch_operands = 0 : i64, tpu.core_type = #tpu.core_type<tc>, window_params = [{transform_indices = @transform_0, window_bounds = array<i64: 1, 144, 256>}, {pipeline_mode = #tpu.pipeline_mode<synchronous>, transform_indices = @transform_1, window_bounds = array<i64: 18, 144>}, {pipeline_mode = #tpu.pipeline_mode<synchronous>, transform_indices = @transform_2, window_bounds = array<i64: 18, 1>}, {transform_indices = @transform_3, window_bounds = array<i64: 1, 18, 256>}]} {
    %c0 = arith.constant 0 : index
    %c0_0 = arith.constant 0 : index
    %0 = vector.load %arg3[%c0, %c0_0] : memref<18x144xbf16, #tpu.memory_space<vmem>>, vector<18x144xbf16>
    %c0_1 = arith.constant 0 : index
    %c0_2 = arith.constant 0 : index
    %c0_3 = arith.constant 0 : index
    %1 = vector.load %arg2[%c0_1, %c0_2, %c0_3] : memref<1x144x256xbf16, #tpu.memory_space<vmem>>, vector<1x144x256xbf16>
    %2 = vector.shape_cast %1 : vector<1x144x256xbf16> to vector<144x256xbf16>
    %cst = arith.constant dense<0.000000e+00> : vector<18x256xf32>
    %3 = tpu.matmul %0, %2, %cst {dimension_numbers = #tpu.dot_dimension_numbers<[1], [0], [0], [1], [0, 0, 1, 1], [], []>} : vector<18x144xbf16>, vector<144x256xbf16>, vector<18x256xf32> -> vector<18x256xf32>
    %c0_4 = arith.constant 0 : index
    %c0_5 = arith.constant 0 : index
    %4 = vector.load %arg4[%c0_4, %c0_5] : memref<18x1xf32, #tpu.memory_space<vmem>>, vector<18x1xf32>
    %5 = vector.broadcast %4 : vector<18x1xf32> to vector<18x256xf32>
    %6 = arith.addf %3, %5 : vector<18x256xf32>
    %c0_6 = arith.constant 0 : index
    %c0_7 = arith.constant 0 : index
    %c0_8 = arith.constant 0 : index
    %7 = vector.load %arg5[%c0_6, %c0_7, %c0_8] : memref<1x18x256xf32, #tpu.memory_space<vmem>>, vector<1x18x256xf32>
    %8 = vector.shape_cast %7 : vector<1x18x256xf32> to vector<18x256xf32>
    %9 = vector.shape_cast %6 : vector<18x256xf32> to vector<1x18x256xf32>
    tpu.vector_store %arg5[%c0_6, %c0_7, %c0_8], %9 {strides = array<i32>} : memref<1x18x256xf32, #tpu.memory_space<vmem>>, vector<1x18x256xf32>,
    return
  }
  func.func @transform_0(%arg0: i32, %arg1: i32) -> (i32, i32, i32) {
    %c0_i32 = arith.constant 0 : i32
    %c0_i32_0 = arith.constant 0 : i32
    return %arg0, %c0_i32, %arg1 : i32, i32, i32
  }
  func.func @transform_1(%arg0: i32, %arg1: i32) -> (i32, i32) {
    %c0_i32 = arith.constant 0 : i32
    %c0_i32_0 = arith.constant 0 : i32
    %c0_i32_1 = arith.constant 0 : i32
    return %c0_i32, %c0_i32_0 : i32, i32
  }
  func.func @transform_2(%arg0: i32, %arg1: i32) -> (i32, i32) {
    %c0_i32 = arith.constant 0 : i32
    %c0_i32_0 = arith.constant 0 : i32
    %c0_i32_1 = arith.constant 0 : i32
    return %c0_i32, %c0_i32_0 : i32, i32
  }
  func.func @transform_3(%arg0: i32, %arg1: i32) -> (i32, i32, i32) {
    %c0_i32 = arith.constant 0 : i32
    %c0_i32_0 = arith.constant 0 : i32
    return %arg0, %c0_i32, %arg1 : i32, i32, i32
  }
}

module attributes {stable_mosaic.version = 11 : i64} {
  func.func @kernel(%arg0: i32, %arg1: i32, %arg2: memref<1x72x256xbf16, #tpu.memory_space<vmem>>, %arg3: memref<8x72xbf16, #tpu.memory_space<vmem>>, %arg4: memref<8x1xf32, #tpu.memory_space<vmem>>, %arg5: memref<1x8x256xf32, #tpu.memory_space<vmem>>) attributes {dimension_semantics = [#tpu.dimension_semantics<parallel>, #tpu.dimension_semantics<parallel>], iteration_bounds = array<i64: 2, 1>, scalar_prefetch = 0 : i64, scratch_operands = 0 : i64, tpu.core_type = #tpu.core_type<tc>, window_params = [{transform_indices = @transform_0, window_bounds = array<i64: 1, 72, 256>}, {pipeline_mode = #tpu.pipeline_mode<synchronous>, transform_indices = @transform_1, window_bounds = array<i64: 8, 72>}, {pipeline_mode = #tpu.pipeline_mode<synchronous>, transform_indices = @transform_2, window_bounds = array<i64: 8, 1>}, {transform_indices = @transform_3, window_bounds = array<i64: 1, 8, 256>}]} {
    %c0 = arith.constant 0 : index
    %c0_0 = arith.constant 0 : index
    %0 = vector.load %arg3[%c0, %c0_0] : memref<8x72xbf16, #tpu.memory_space<vmem>>, vector<8x72xbf16>
    %c0_1 = arith.constant 0 : index
    %c0_2 = arith.constant 0 : index
    %c0_3 = arith.constant 0 : index
    %1 = vector.load %arg2[%c0_1, %c0_2, %c0_3] : memref<1x72x256xbf16, #tpu.memory_space<vmem>>, vector<1x72x256xbf16>
    %2 = vector.shape_cast %1 : vector<1x72x256xbf16> to vector<72x256xbf16>
    %cst = arith.constant dense<0.000000e+00> : vector<8x256xf32>
    %3 = tpu.matmul %0, %2, %cst {dimension_numbers = #tpu.dot_dimension_numbers<[1], [0], [0], [1], [0, 0, 1, 1], [], []>} : vector<8x72xbf16>, vector<72x256xbf16>, vector<8x256xf32> -> vector<8x256xf32>
    %c0_4 = arith.constant 0 : index
    %c0_5 = arith.constant 0 : index
    %4 = vector.load %arg4[%c0_4, %c0_5] : memref<8x1xf32, #tpu.memory_space<vmem>>, vector<8x1xf32>
    %5 = vector.broadcast %4 : vector<8x1xf32> to vector<8x256xf32>
    %6 = arith.addf %3, %5 : vector<8x256xf32>
    %c0_6 = arith.constant 0 : index
    %c0_7 = arith.constant 0 : index
    %c0_8 = arith.constant 0 : index
    %7 = vector.load %arg5[%c0_6, %c0_7, %c0_8] : memref<1x8x256xf32, #tpu.memory_space<vmem>>, vector<1x8x256xf32>
    %8 = vector.shape_cast %7 : vector<1x8x256xf32> to vector<8x256xf32>
    %9 = vector.shape_cast %6 : vector<8x256xf32> to vector<1x8x256xf32>
    tpu.vector_store %arg5[%c0_6, %c0_7, %c0_8], %9 {strides = array<i32>} : memref<1x8x256xf32, #tpu.memory_space<vmem>>, vector<1x8x256xf32>,
    return
  }
  func.func @transform_0(%arg0: i32, %arg1: i32) -> (i32, i32, i32) {
    %c0_i32 = arith.constant 0 : i32
    %c0_i32_0 = arith.constant 0 : i32
    return %arg0, %c0_i32, %arg1 : i32, i32, i32
  }
  func.func @transform_1(%arg0: i32, %arg1: i32) -> (i32, i32) {
    %c0_i32 = arith.constant 0 : i32
    %c0_i32_0 = arith.constant 0 : i32
    %c0_i32_1 = arith.constant 0 : i32
    return %c0_i32, %c0_i32_0 : i32, i32
  }
  func.func @transform_2(%arg0: i32, %arg1: i32) -> (i32, i32) {
    %c0_i32 = arith.constant 0 : i32
    %c0_i32_0 = arith.constant 0 : i32
    %c0_i32_1 = arith.constant 0 : i32
    return %c0_i32, %c0_i32_0 : i32, i32
  }
  func.func @transform_3(%arg0: i32, %arg1: i32) -> (i32, i32, i32) {
    %c0_i32 = arith.constant 0 : i32
    %c0_i32_0 = arith.constant 0 : i32
    return %arg0, %c0_i32, %arg1 : i32, i32, i32
  }
}

module attributes {stable_mosaic.version = 11 : i64} {
  func.func @kernel(%arg0: i32, %arg1: i32, %arg2: memref<1x72x256xbf16, #tpu.memory_space<vmem>>, %arg3: memref<4x72xbf16, #tpu.memory_space<vmem>>, %arg4: memref<4x1xf32, #tpu.memory_space<vmem>>, %arg5: memref<1x4x256xf32, #tpu.memory_space<vmem>>, %arg6: memref<1x4x256xf32, #tpu.memory_space<vmem>>) attributes {dimension_semantics = [#tpu.dimension_semantics<parallel>, #tpu.dimension_semantics<parallel>], iteration_bounds = array<i64: 2, 1>, scalar_prefetch = 0 : i64, scratch_operands = 0 : i64, tpu.core_type = #tpu.core_type<tc>, window_params = [{transform_indices = @transform_0, window_bounds = array<i64: 1, 72, 256>}, {pipeline_mode = #tpu.pipeline_mode<synchronous>, transform_indices = @transform_1, window_bounds = array<i64: 4, 72>}, {pipeline_mode = #tpu.pipeline_mode<synchronous>, transform_indices = @transform_2, window_bounds = array<i64: 4, 1>}, {transform_indices = @transform_3, window_bounds = array<i64: 1, 4, 256>}, {transform_indices = @transform_4, window_bounds = array<i64: 1, 4, 256>}]} {
    %c0 = arith.constant 0 : index
    %c0_0 = arith.constant 0 : index
    %0 = vector.load %arg3[%c0, %c0_0] : memref<4x72xbf16, #tpu.memory_space<vmem>>, vector<4x72xbf16>
    %c0_1 = arith.constant 0 : index
    %c0_2 = arith.constant 0 : index
    %c0_3 = arith.constant 0 : index
    %1 = vector.load %arg2[%c0_1, %c0_2, %c0_3] : memref<1x72x256xbf16, #tpu.memory_space<vmem>>, vector<1x72x256xbf16>
    %2 = vector.shape_cast %1 : vector<1x72x256xbf16> to vector<72x256xbf16>
    %cst = arith.constant dense<0.000000e+00> : vector<4x256xf32>
    %3 = tpu.matmul %0, %2, %cst {dimension_numbers = #tpu.dot_dimension_numbers<[1], [0], [0], [1], [0, 0, 1, 1], [], []>} : vector<4x72xbf16>, vector<72x256xbf16>, vector<4x256xf32> -> vector<4x256xf32>
    %c0_4 = arith.constant 0 : index
    %c0_5 = arith.constant 0 : index
    %4 = vector.load %arg4[%c0_4, %c0_5] : memref<4x1xf32, #tpu.memory_space<vmem>>, vector<4x1xf32>
    %5 = vector.broadcast %4 : vector<4x1xf32> to vector<4x256xf32>
    %6 = arith.addf %3, %5 : vector<4x256xf32>
    %cst_6 = arith.constant 0.000000e+00 : f32
    %7 = vector.broadcast %cst_6 : f32 to vector<4x256xf32>
    %8 = arith.cmpf oge, %6, %7 : vector<4x256xf32>
    %cst_7 = arith.constant 2.000000e-01 : f32
    %9 = vector.broadcast %cst_7 : f32 to vector<4x256xf32>
    %10 = arith.mulf %9, %6 : vector<4x256xf32>
    %11 = arith.select %8, %6, %10 : vector<4x256xi1>, vector<4x256xf32>
    %c0_8 = arith.constant 0 : index
    %c0_9 = arith.constant 0 : index
    %c0_10 = arith.constant 0 : index
    %12 = vector.load %arg5[%c0_8, %c0_9, %c0_10] : memref<1x4x256xf32, #tpu.memory_space<vmem>>, vector<1x4x256xf32>
    %13 = vector.shape_cast %12 : vector<1x4x256xf32> to vector<4x256xf32>
    %14 = arith.addf %11, %13 : vector<4x256xf32>
    %c0_11 = arith.constant 0 : index
    %c0_12 = arith.constant 0 : index
    %c0_13 = arith.constant 0 : index
    %15 = vector.load %arg6[%c0_11, %c0_12, %c0_13] : memref<1x4x256xf32, #tpu.memory_space<vmem>>, vector<1x4x256xf32>
    %16 = vector.shape_cast %15 : vector<1x4x256xf32> to vector<4x256xf32>
    %17 = vector.shape_cast %14 : vector<4x256xf32> to vector<1x4x256xf32>
    tpu.vector_store %arg6[%c0_11, %c0_12, %c0_13], %17 {strides = array<i32>} : memref<1x4x256xf32, #tpu.memory_space<vmem>>, vector<1x4x256xf32>,
    return
  }
  func.func @transform_0(%arg0: i32, %arg1: i32) -> (i32, i32, i32) {
    %c0_i32 = arith.constant 0 : i32
    %c0_i32_0 = arith.constant 0 : i32
    return %arg0, %c0_i32, %arg1 : i32, i32, i32
  }
  func.func @transform_1(%arg0: i32, %arg1: i32) -> (i32, i32) {
    %c0_i32 = arith.constant 0 : i32
    %c0_i32_0 = arith.constant 0 : i32
    %c0_i32_1 = arith.constant 0 : i32
    return %c0_i32, %c0_i32_0 : i32, i32
  }
  func.func @transform_2(%arg0: i32, %arg1: i32) -> (i32, i32) {
    %c0_i32 = arith.constant 0 : i32
    %c0_i32_0 = arith.constant 0 : i32
    %c0_i32_1 = arith.constant 0 : i32
    return %c0_i32, %c0_i32_0 : i32, i32
  }
  func.func @transform_3(%arg0: i32, %arg1: i32) -> (i32, i32, i32) {
    %c0_i32 = arith.constant 0 : i32
    %c0_i32_0 = arith.constant 0 : i32
    return %arg0, %c0_i32, %arg1 : i32, i32, i32
  }
  func.func @transform_4(%arg0: i32, %arg1: i32) -> (i32, i32, i32) {
    %c0_i32 = arith.constant 0 : i32
    %c0_i32_0 = arith.constant 0 : i32
    return %arg0, %c0_i32, %arg1 : i32, i32, i32
  }
}

</mosaic_0001>

<llo_original>
// kernel: sgn_forward.32
$region0: #{sgn_forward.32}
  #allocation0 [shape = 'u32[]', space=smem, size = 0x4, offset = 0x4, fixed_abs, tag = 'smem constant byte address 0x4 - core index']
  #allocation1 [shape = 'u32[144,128]{1,0:T(1,128)}', space=vmem, size = 0x12000, scoped, tag = 'internal scratch']
  %s0 = inlined_call_operand.vmem [shape: bf16[2,3,256], index: 0, kind: input, shape index: {}]
  %s1 = inlined_call_operand.vmem [shape: bf16[8,3], index: 1, kind: input, shape index: {}]
  %s2 = inlined_call_operand.vmem [shape: f32[8,1], index: 2, kind: input, shape index: {}]
  %s3 = inlined_call_operand.vmem [shape: f32[2,8,256], index: 3, kind: output, shape index: {}]
  %s4 = sld [smem:[#allocation0]]
  $region45: #{sgn_forward.32} parent=0
    _
  %s6 = ssub.s32 1, %s4
  %s7 = scalar_select 0, %s6, %s4
  loop: start=0, step=1, limit=4
  $region2: #{sgn_forward.32} parent=0 // loop_pre_header
    _
  $region3: #{sgn_forward.32} parent=0 // loop_header
    %s9 = sphi 0, %s13
    %p10 = scmp.ge.s32.totalorder %s9, 4
    %s16 = sphi 0, %s28
    %s17 = sphi 0, %s24
    %s18 = sphi 0, %s16
    %s19 = sphi 0, %s17
    %s20 = sphi 0, %s18
    %s21 = sphi 0, %s19
    %s33 = sphi 0, %s35
    %s36 = sphi 0, %s33
    %s37 = sphi 0, %s36
    %s53 = sphi 0, %s37
    %s57 = sphi 0, %s57
    %s59 = sphi 0, %s57
    %s60 = sphi 0, %s59
    %s74 = sphi 0, %s60
    %s78 = sphi 0, %s78
    %s80 = sphi 0, %s78
    %s81 = sphi 0, %s80
    %s95 = sphi 0, %s81
    %s103 = sphi 0, %s105
    %s106 = sphi 0, %s103
    %s107 = sphi 0, %s106
    %s123 = sphi 0, %s107
  $region4: #{sgn_forward.32} parent=0 // loop_header_branch
    %12 = sbr.rel (%p10) target = $region8
  $region5: #{sgn_forward.32} parent=0 // loop_body
    %s14 = ssub.s32 %s9, 1
    %s15 = ssub.s32 %s9, 2
    %s22 = sadd.s32 1, %s17
    %p23 = scmp.ge.s32.totalorder %s22, 1
    %s24 = scalar_select %p23, 0, %s22
    %s25 = sadd.s32 1, %s16
    %s26 = scalar_select %p23, %s25, %s16
    %p27 = scmp.ge.s32.totalorder %s26, 2
    %s28 = scalar_select %p27, 0, %s26
    %s29 = ssub.s32 %s16, %s28
    %s30 = ssub.s32 %s17, %s24
    %s31 = sor.u32 %s29, %s30
    %p32 = scmp.eq.s32.totalorder %s31, 0
    %s34 = sadd.s32 %s33, 1
    %s35 = scalar_select %p32, %s33, %s34
    %p38 = pneg %p32
    %p39 = scmp.eq.s32.totalorder %s9, 1
    %p40 = por %p38, %p39
    %p41 = scmp.ne.s32.totalorder %s33, %s36
    %p42 = scmp.eq.s32.totalorder %s9, 0
    %p43 = por %p41, %p42
    %p44 = scmp.ne.s32.totalorder %s33, %s36
    %p45 = scmp.eq.s32.totalorder %s14, 1
    %p46 = por %p44, %p45
    %p47 = scmp.ne.s32.totalorder %s36, %s37
    %p48 = scmp.eq.s32.totalorder %s14, 0
    %p49 = por %p47, %p48
    %p50 = scmp.ne.s32.totalorder %s36, %s37
    %p51 = scmp.eq.s32.totalorder %s15, 1
    %p52 = por %p50, %p51
    %p54 = scmp.ne.s32.totalorder %s37, %s53
    %p55 = scmp.eq.s32.totalorder %s15, 0
    %p56 = por %p54, %p55
    %s58 = sadd.s32 %s57, 1
    %p61 = scmp.eq.s32.totalorder %s9, 1
    %p62 = scmp.ne.s32.totalorder %s57, %s59
    %p63 = scmp.eq.s32.totalorder %s9, 0
    %p64 = por %p62, %p63
    %p65 = scmp.ne.s32.totalorder %s57, %s59
    %p66 = scmp.eq.s32.totalorder %s14, 1
    %p67 = por %p65, %p66
    %p68 = scmp.ne.s32.totalorder %s59, %s60
    %p69 = scmp.eq.s32.totalorder %s14, 0
    %p70 = por %p68, %p69
    %p71 = scmp.ne.s32.totalorder %s59, %s60
    %p72 = scmp.eq.s32.totalorder %s15, 1
    %p73 = por %p71, %p72
    %p75 = scmp.ne.s32.totalorder %s60, %s74
    %p76 = scmp.eq.s32.totalorder %s15, 0
    %p77 = por %p75, %p76
    %s79 = sadd.s32 %s78, 1
    %p82 = scmp.eq.s32.totalorder %s9, 1
    %p83 = scmp.ne.s32.totalorder %s78, %s80
    %p84 = scmp.eq.s32.totalorder %s9, 0
    %p85 = por %p83, %p84
    %p86 = scmp.ne.s32.totalorder %s78, %s80
    %p87 = scmp.eq.s32.totalorder %s14, 1
    %p88 = por %p86, %p87
    %p89 = scmp.ne.s32.totalorder %s80, %s81
    %p90 = scmp.eq.s32.totalorder %s14, 0
    %p91 = por %p89, %p90
    %p92 = scmp.ne.s32.totalorder %s80, %s81
    %p93 = scmp.eq.s32.totalorder %s15, 1
    %p94 = por %p92, %p93
    %p96 = scmp.ne.s32.totalorder %s81, %s95
    %p97 = scmp.eq.s32.totalorder %s15, 0
    %p98 = por %p96, %p97
    %s99 = ssub.s32 %s16, %s28
    %s100 = ssub.s32 %s17, %s24
    %s101 = sor.u32 %s99, %s100
    %p102 = scmp.eq.s32.totalorder %s101, 0
    %s104 = sadd.s32 %s103, 1
    %s105 = scalar_select %p102, %s103, %s104
    %p108 = pneg %p102
    %p109 = scmp.eq.s32.totalorder %s9, 1
    %p110 = por %p108, %p109
    %p111 = scmp.ne.s32.totalorder %s103, %s106
    %p112 = scmp.eq.s32.totalorder %s9, 0
    %p113 = por %p111, %p112
    %p114 = scmp.ne.s32.totalorder %s103, %s106
    %p115 = scmp.eq.s32.totalorder %s14, 1
    %p116 = por %p114, %p115
    %p117 = scmp.ne.s32.totalorder %s106, %s107
    %p118 = scmp.eq.s32.totalorder %s14, 0
    %p119 = por %p117, %p118
    %p120 = scmp.ne.s32.totalorder %s106, %s107
    %p121 = scmp.eq.s32.totalorder %s15, 1
    %p122 = por %p120, %p121
    %p124 = scmp.ne.s32.totalorder %s107, %s123
    %p125 = scmp.eq.s32.totalorder %s15, 0
    %p126 = por %p124, %p125
    %p127 = scmp.le.s32.totalorder 1, %s9
    %p128 = scmp.lt.s32.totalorder %s9, 3
    %p129 = pnand %p127, %p128
    %p130 = pneg %p129
    // Predicated region
    $region9: #{sgn_forward.32} parent=5 // pred_check
      _
    $region10: #{sgn_forward.32} parent=5 // pred_check_branch
      %132 = sbr.rel (%p129) target = $region12
    $region11: #{sgn_forward.32} parent=5 // pred_region
      %s133 = ssub.s32 %s9, 1
      // Predicated region
      $region13: #{sgn_forward.32} parent=11 // pred_check
        %p134 = pneg %p70
      $region14: #{sgn_forward.32} parent=11 // pred_check_branch
        %136 = sbr.rel (%p134) target = $region16
      $region15: #{sgn_forward.32} parent=11 // pred_region
        _
      $region16: #{sgn_forward.32} parent=11 // pred_fallthru
        _
      // Predicated region
      $region17: #{sgn_forward.32} parent=11 // pred_check
        %p137 = pneg %p91
      $region18: #{sgn_forward.32} parent=11 // pred_check_branch
        %139 = sbr.rel (%p137) target = $region20
      $region19: #{sgn_forward.32} parent=11 // pred_region
        _
      $region20: #{sgn_forward.32} parent=11 // pred_fallthru
        _
    $region12: #{sgn_forward.32} parent=5 // pred_fallthru
      _
    %p140 = scmp.lt.s32.totalorder %s9, 2
    // Predicated region
    $region21: #{sgn_forward.32} parent=5 // pred_check
      %p141 = pneg %p140
    $region22: #{sgn_forward.32} parent=5 // pred_check_branch
      %143 = sbr.rel (%p141) target = $region24
    $region23: #{sgn_forward.32} parent=5 // pred_region
      // Predicated region
      $region25: #{sgn_forward.32} parent=23 // pred_check
        %p144 = pneg %p43
      $region26: #{sgn_forward.32} parent=23 // pred_check_branch
        %146 = sbr.rel (%p144) target = $region28
      $region27: #{sgn_forward.32} parent=23 // pred_region
        %s147 = smul.u32 2, %s17
        %p148 = scmp.lt.s32.totalorder %s16, 1
        %s149 = scalar_select %p148, %s16, 1
        %p150 = scmp.lt.s32.totalorder %s147, 1
        %s151 = scalar_select %p150, %s147, 1
        %s152 = smul.addr %s149, 2
        %s153 = sadd.s32 %s151, %s152
        %s154 = smul.addr %s153, 2
        %s155 = scalar_lea.vmem %s0, %s154
        %s156 = smul.u32 2, %s17
      $region28: #{sgn_forward.32} parent=23 // pred_fallthru
        _
    $region24: #{sgn_forward.32} parent=5 // pred_fallthru
      _
    %p157 = scmp.le.s32.totalorder 1, %s9
    %p158 = scmp.lt.s32.totalorder %s9, 3
    %p159 = pnand %p157, %p158
    %p160 = pneg %p159
    // Predicated region
    $region29: #{sgn_forward.32} parent=5 // pred_check
      _
    $region30: #{sgn_forward.32} parent=5 // pred_check_branch
      %162 = sbr.rel (%p159) target = $region32
    $region31: #{sgn_forward.32} parent=5 // pred_region
      %s163 = ssub.s32 %s9, 1
      %s164 = smul.u32 2, %s19
      %p165 = scmp.lt.s32.totalorder %s18, 1
      %s166 = scalar_select %p165, %s18, 1
      %p167 = scmp.lt.s32.totalorder %s164, 1
      %s168 = scalar_select %p167, %s164, 1
      %s169 = smul.addr %s166, 2
      %s170 = sadd.s32 %s168, %s169
      %s171 = smul.addr %s170, 2
      %s172 = scalar_lea.vmem %s0, %s171
      %p173 = pneg %p49
      %p174 = pneg %p46
      %p175 = pneg %p70
      %p176 = pneg %p67
      %p177 = pneg %p91
      %p178 = pneg %p88
      %p179 = pneg %p119
      %p180 = pneg %p116
      %s181 = smul.u32 2, %s19
      %p182 = scmp.lt.s32.totalorder %s18, 1
      %s183 = scalar_select %p182, %s18, 1
      %p184 = scmp.lt.s32.totalorder %s181, 1
      %s185 = scalar_select %p184, %s181, 1
      %s186 = smul.addr %s183, 2
      %s187 = sadd.s32 %s185, %s186
      %s188 = smul.addr %s187, 8
      %s189 = scalar_lea.vmem %s3, %s188
      %s190 = smul.u32 2, %s19
      %p191 = scmp.lt.s32.totalorder %s18, 1
      %s192 = scalar_select %p191, %s18, 1
      %p193 = scmp.lt.s32.totalorder %s190, 1
      %s194 = scalar_select %p193, %s190, 1
      %s195 = smul.addr %s192, 2
      %s196 = sadd.s32 %s194, %s195
      %s197 = smul.addr %s196, 2
      %s198 = scalar_lea.vmem %s0, %s197
      %s199 = smul.u32 2, %s19
      %s200 = smul.u32 2, %s19
      %p201 = scmp.lt.s32.totalorder %s18, 1
      %s202 = scalar_select %p201, %s18, 1
      %p203 = scmp.lt.s32.totalorder %s200, 1
      %s204 = scalar_select %p203, %s200, 1
      %s205 = smul.addr %s202, 2
      %s206 = sadd.s32 %s204, %s205
      %s207 = smul.addr %s206, 8
      %s208 = scalar_lea.vmem %s3, %s207
      %s209 = smul.u32 2, %s19
      %v211 = vld [vmem:[%s1] sm:$0xf]
      %v212 = vld [vmem:[%s198] sm:$0xf]
      %v213 = vld [vmem:[%s2] sm:$0xff]
      %215 = vset.pattern.permute.xlu0 0
      %216 = vperm.xlu0 %215, %v213
      %v217 = vpop.permute.xlu0 %216
      %v221 = vunpack.c.l.s4 1983009808
      %v222 = vunpack.c.0.s8 %v221
      %v223 = vlaneseq
      %v224 = vshrl.u32 %v223, 7
      %v225 = vsub.s32 %v222, %v224
      %v226 = vrot.slane %v212, %v225
      %v227 = vcombine.high %v226, %v226
      %vm228 = vcmask 23552
      %v230 = vsel %vm228, %v211, 0
      %vm232 = vcmask 1040384
      %vm233 = vcmask 1041408
      %v234 = vsel %vm232, 4294967295, 65535
      %v235 = vsel %vm233, %v234, 0
      %v237 = vand.u32 %v226, %v235
      %v240 = vand.u32 %v227, %v235
      %242 = vmatprep.subr.bf16.mxu0 %v240
      %243 = vmatpush1.bf16.msra.mxu0 %v237
      %244 = vmatprep.subr.bf16.mxu0 0
      %245 = vmatpush1.bf16.msra.mxu0 0
      %246 = vmatprep.subr.bf16.mxu0 0
      %247 = vmatpush1.bf16.msra.mxu0 0
      %248 = vmatprep.subr.bf16.mxu0 0
      %249 = vmatpush1.bf16.msra.mxu0 0
      %250 = vmatprep.subr.bf16.mxu0 0
      %251 = vmatpush1.bf16.msra.mxu0 0
      %252 = vmatprep.subr.bf16.mxu0 0
      %253 = vmatpush1.bf16.msra.mxu0 0
      %254 = vmatprep.subr.bf16.mxu0 0
      %255 = vmatpush1.bf16.msra.mxu0 0
      %256 = vmatprep.subr.bf16.mxu0 0
      %257 = vmatpush1.bf16.msra.mxu0 0
      %258 = vmatprep.subr.bf16.mxu0 0
      %259 = vmatpush1.bf16.msra.mxu0 0
      %260 = vmatprep.subr.bf16.mxu0 0
      %261 = vmatpush1.bf16.msra.mxu0 0
      %262 = vmatprep.subr.bf16.mxu0 0
      %263 = vmatpush1.bf16.msra.mxu0 0
      %264 = vmatprep.subr.bf16.mxu0 0
      %265 = vmatpush1.bf16.msra.mxu0 0
      %266 = vmatprep.subr.bf16.mxu0 0
      %267 = vmatpush1.bf16.msra.mxu0 0
      %268 = vmatprep.subr.bf16.mxu0 0
      %269 = vmatpush1.bf16.msra.mxu0 0
      %270 = vmatprep.subr.bf16.mxu0 0
      %271 = vmatpush1.bf16.msra.mxu0 0
      %272 = vmatprep.subr.bf16.mxu0 0
      %273 = vmatpush1.bf16.msra.mxu0 0
      %274 = vmatprep.mubr.bf16.mxu0 0
      %275 = vmatmul.mubr.bf16.gmra.mrb[0].mxu0 %v230
      %v276 = vpop.f32.mrb[0].mxu0
      %v277 = vadd.f32 %v217, %v276
      %v278 = vpop.f32.mrb[0].mxu0
      %v279 = vadd.f32 %v217, %v278
      %v280 = vpop.f32.mrb[0].mxu0
      %v281 = vpop.f32.mrb[0].mxu0
      %282 = vdwg.mxu0
      %vm283 = vcmp.ge.f32.partialorder %v277, 0.0
      %vm284 = vcmp.ge.f32.partialorder %v279, 0.0
      %v285 = vmul.f32 %v277, 0.2
      %v286 = vmul.f32 %v279, 0.2
      %v287 = vsel %vm283, %v277, %v285
      %v288 = vsel %vm284, %v279, %v286
      %289 = vst [vmem:[%s208] sm:$0xff] %v287
      %290 = vst [vmem:[%s208 + $0x8] sm:$0xff] %v288
      %s291 = smul.u32 2, %s19
      %p292 = scmp.lt.s32.totalorder %s18, 1
      %s293 = scalar_select %p292, %s18, 1
      %p294 = scmp.lt.s32.totalorder %s291, 1
      %s295 = scalar_select %p294, %s291, 1
      %s296 = smul.addr %s293, 2
      %s297 = sadd.s32 %s295, %s296
      %s298 = smul.addr %s297, 8
      %s299 = scalar_lea.vmem %s3, %s298
      // Predicated region
      $region33: #{sgn_forward.32} parent=31 // pred_check
        %p300 = pneg %p116
      $region34: #{sgn_forward.32} parent=31 // pred_check_branch
        %302 = sbr.rel (%p300) target = $region36
      $region35: #{sgn_forward.32} parent=31 // pred_region
        %s303 = smul.u32 2, %s19
      $region36: #{sgn_forward.32} parent=31 // pred_fallthru
        _
    $region32: #{sgn_forward.32} parent=5 // pred_fallthru
      _
    %p304 = scmp.le.s32.totalorder 2, %s9
    // Predicated region
    $region37: #{sgn_forward.32} parent=5 // pred_check
      %p305 = pneg %p304
    $region38: #{sgn_forward.32} parent=5 // pred_check_branch
      %307 = sbr.rel (%p305) target = $region40
    $region39: #{sgn_forward.32} parent=5 // pred_region
      %s308 = ssub.s32 %s9, 2
      // Predicated region
      $region41: #{sgn_forward.32} parent=39 // pred_check
        %p309 = pneg %p122
      $region42: #{sgn_forward.32} parent=39 // pred_check_branch
        %311 = sbr.rel (%p309) target = $region44
      $region43: #{sgn_forward.32} parent=39 // pred_region
        %s312 = smul.u32 2, %s21
        %p313 = scmp.lt.s32.totalorder %s20, 1
        %s314 = scalar_select %p313, %s20, 1
        %p315 = scmp.lt.s32.totalorder %s312, 1
        %s316 = scalar_select %p315, %s312, 1
        %s317 = smul.addr %s314, 2
        %s318 = sadd.s32 %s316, %s317
        %s319 = smul.addr %s318, 8
        %s320 = scalar_lea.vmem %s3, %s319
      $region44: #{sgn_forward.32} parent=39 // pred_fallthru
        _
    $region40: #{sgn_forward.32} parent=5 // pred_fallthru
      _
  $region6: #{sgn_forward.32} parent=0 // loop_footer
    %s13 = sadd.s32 1, %s9
  $region7: #{sgn_forward.32} parent=0 // loop_footer_branch
    %8 = sbr.rel target = $region3
  $region8: #{sgn_forward.32} parent=0 // loop_exit
    _

// kernel: sgn_forward.34
$region0: #{sgn_forward.34}
  #allocation0 [shape = 'u32[]', space=smem, size = 0x4, offset = 0x4, fixed_abs, tag = 'smem constant byte address 0x4 - core index']
  #allocation1 [shape = 'u32[144,128]{1,0:T(1,128)}', space=vmem, size = 0x12000, scoped, tag = 'internal scratch']
  %s0 = inlined_call_operand.vmem [shape: bf16[2,36,256], index: 0, kind: input, shape index: {}]
  %s1 = inlined_call_operand.vmem [shape: bf16[8,36], index: 1, kind: input, shape index: {}]
  %s2 = inlined_call_operand.vmem [shape: f32[8,1], index: 2, kind: input, shape index: {}]
  %s3 = inlined_call_operand.vmem [shape: f32[2,8,256], index: 3, kind: input, shape index: {}]
  %s4 = inlined_call_operand.vmem [shape: f32[2,8,256], index: 4, kind: output, shape index: {}]
  %s5 = sld [smem:[#allocation0]]
  $region49: #{sgn_forward.34} parent=0
    _
  %s7 = ssub.s32 1, %s5
  %s8 = scalar_select 0, %s7, %s5
  loop: start=0, step=1, limit=4
  $region2: #{sgn_forward.34} parent=0 // loop_pre_header
    _
  $region3: #{sgn_forward.34} parent=0 // loop_header
    %s10 = sphi 0, %s14
    %p11 = scmp.ge.s32.totalorder %s10, 4
    %s17 = sphi 0, %s29
    %s18 = sphi 0, %s25
    %s19 = sphi 0, %s17
    %s20 = sphi 0, %s18
    %s21 = sphi 0, %s19
    %s22 = sphi 0, %s20
    %s34 = sphi 0, %s36
    %s37 = sphi 0, %s34
    %s38 = sphi 0, %s37
    %s54 = sphi 0, %s38
    %s58 = sphi 0, %s58
    %s60 = sphi 0, %s58
    %s61 = sphi 0, %s60
    %s75 = sphi 0, %s61
    %s79 = sphi 0, %s79
    %s81 = sphi 0, %s79
    %s82 = sphi 0, %s81
    %s96 = sphi 0, %s82
    %s104 = sphi 0, %s106
    %s107 = sphi 0, %s104
    %s108 = sphi 0, %s107
    %s124 = sphi 0, %s108
    %s132 = sphi 0, %s134
    %s135 = sphi 0, %s132
    %s136 = sphi 0, %s135
    %s152 = sphi 0, %s136
  $region4: #{sgn_forward.34} parent=0 // loop_header_branch
    %13 = sbr.rel (%p11) target = $region8
  $region5: #{sgn_forward.34} parent=0 // loop_body
    %s15 = ssub.s32 %s10, 1
    %s16 = ssub.s32 %s10, 2
    %s23 = sadd.s32 1, %s18
    %p24 = scmp.ge.s32.totalorder %s23, 1
    %s25 = scalar_select %p24, 0, %s23
    %s26 = sadd.s32 1, %s17
    %s27 = scalar_select %p24, %s26, %s17
    %p28 = scmp.ge.s32.totalorder %s27, 2
    %s29 = scalar_select %p28, 0, %s27
    %s30 = ssub.s32 %s17, %s29
    %s31 = ssub.s32 %s18, %s25
    %s32 = sor.u32 %s30, %s31
    %p33 = scmp.eq.s32.totalorder %s32, 0
    %s35 = sadd.s32 %s34, 1
    %s36 = scalar_select %p33, %s34, %s35
    %p39 = pneg %p33
    %p40 = scmp.eq.s32.totalorder %s10, 1
    %p41 = por %p39, %p40
    %p42 = scmp.ne.s32.totalorder %s34, %s37
    %p43 = scmp.eq.s32.totalorder %s10, 0
    %p44 = por %p42, %p43
    %p45 = scmp.ne.s32.totalorder %s34, %s37
    %p46 = scmp.eq.s32.totalorder %s15, 1
    %p47 = por %p45, %p46
    %p48 = scmp.ne.s32.totalorder %s37, %s38
    %p49 = scmp.eq.s32.totalorder %s15, 0
    %p50 = por %p48, %p49
    %p51 = scmp.ne.s32.totalorder %s37, %s38
    %p52 = scmp.eq.s32.totalorder %s16, 1
    %p53 = por %p51, %p52
    %p55 = scmp.ne.s32.totalorder %s38, %s54
    %p56 = scmp.eq.s32.totalorder %s16, 0
    %p57 = por %p55, %p56
    %s59 = sadd.s32 %s58, 1
    %p62 = scmp.eq.s32.totalorder %s10, 1
    %p63 = scmp.ne.s32.totalorder %s58, %s60
    %p64 = scmp.eq.s32.totalorder %s10, 0
    %p65 = por %p63, %p64
    %p66 = scmp.ne.s32.totalorder %s58, %s60
    %p67 = scmp.eq.s32.totalorder %s15, 1
    %p68 = por %p66, %p67
    %p69 = scmp.ne.s32.totalorder %s60, %s61
    %p70 = scmp.eq.s32.totalorder %s15, 0
    %p71 = por %p69, %p70
    %p72 = scmp.ne.s32.totalorder %s60, %s61
    %p73 = scmp.eq.s32.totalorder %s16, 1
    %p74 = por %p72, %p73
    %p76 = scmp.ne.s32.totalorder %s61, %s75
    %p77 = scmp.eq.s32.totalorder %s16, 0
    %p78 = por %p76, %p77
    %s80 = sadd.s32 %s79, 1
    %p83 = scmp.eq.s32.totalorder %s10, 1
    %p84 = scmp.ne.s32.totalorder %s79, %s81
    %p85 = scmp.eq.s32.totalorder %s10, 0
    %p86 = por %p84, %p85
    %p87 = scmp.ne.s32.totalorder %s79, %s81
    %p88 = scmp.eq.s32.totalorder %s15, 1
    %p89 = por %p87, %p88
    %p90 = scmp.ne.s32.totalorder %s81, %s82
    %p91 = scmp.eq.s32.totalorder %s15, 0
    %p92 = por %p90, %p91
    %p93 = scmp.ne.s32.totalorder %s81, %s82
    %p94 = scmp.eq.s32.totalorder %s16, 1
    %p95 = por %p93, %p94
    %p97 = scmp.ne.s32.totalorder %s82, %s96
    %p98 = scmp.eq.s32.totalorder %s16, 0
    %p99 = por %p97, %p98
    %s100 = ssub.s32 %s17, %s29
    %s101 = ssub.s32 %s18, %s25
    %s102 = sor.u32 %s100, %s101
    %p103 = scmp.eq.s32.totalorder %s102, 0
    %s105 = sadd.s32 %s104, 1
    %s106 = scalar_select %p103, %s104, %s105
    %p109 = pneg %p103
    %p110 = scmp.eq.s32.totalorder %s10, 1
    %p111 = por %p109, %p110
    %p112 = scmp.ne.s32.totalorder %s104, %s107
    %p113 = scmp.eq.s32.totalorder %s10, 0
    %p114 = por %p112, %p113
    %p115 = scmp.ne.s32.totalorder %s104, %s107
    %p116 = scmp.eq.s32.totalorder %s15, 1
    %p117 = por %p115, %p116
    %p118 = scmp.ne.s32.totalorder %s107, %s108
    %p119 = scmp.eq.s32.totalorder %s15, 0
    %p120 = por %p118, %p119
    %p121 = scmp.ne.s32.totalorder %s107, %s108
    %p122 = scmp.eq.s32.totalorder %s16, 1
    %p123 = por %p121, %p122
    %p125 = scmp.ne.s32.totalorder %s108, %s124
    %p126 = scmp.eq.s32.totalorder %s16, 0
    %p127 = por %p125, %p126
    %s128 = ssub.s32 %s17, %s29
    %s129 = ssub.s32 %s18, %s25
    %s130 = sor.u32 %s128, %s129
    %p131 = scmp.eq.s32.totalorder %s130, 0
    %s133 = sadd.s32 %s132, 1
    %s134 = scalar_select %p131, %s132, %s133
    %p137 = pneg %p131
    %p138 = scmp.eq.s32.totalorder %s10, 1
    %p139 = por %p137, %p138
    %p140 = scmp.ne.s32.totalorder %s132, %s135
    %p141 = scmp.eq.s32.totalorder %s10, 0
    %p142 = por %p140, %p141
    %p143 = scmp.ne.s32.totalorder %s132, %s135
    %p144 = scmp.eq.s32.totalorder %s15, 1
    %p145 = por %p143, %p144
    %p146 = scmp.ne.s32.totalorder %s135, %s136
    %p147 = scmp.eq.s32.totalorder %s15, 0
    %p148 = por %p146, %p147
    %p149 = scmp.ne.s32.totalorder %s135, %s136
    %p150 = scmp.eq.s32.totalorder %s16, 1
    %p151 = por %p149, %p150
    %p153 = scmp.ne.s32.totalorder %s136, %s152
    %p154 = scmp.eq.s32.totalorder %s16, 0
    %p155 = por %p153, %p154
    %p156 = scmp.le.s32.totalorder 1, %s10
    %p157 = scmp.lt.s32.totalorder %s10, 3
    %p158 = pnand %p156, %p157
    %p159 = pneg %p158
    // Predicated region
    $region9: #{sgn_forward.34} parent=5 // pred_check
      _
    $region10: #{sgn_forward.34} parent=5 // pred_check_branch
      %161 = sbr.rel (%p158) target = $region12
    $region11: #{sgn_forward.34} parent=5 // pred_region
      %s162 = ssub.s32 %s10, 1
      // Predicated region
      $region13: #{sgn_forward.34} parent=11 // pred_check
        %p163 = pneg %p71
      $region14: #{sgn_forward.34} parent=11 // pred_check_branch
        %165 = sbr.rel (%p163) target = $region16
      $region15: #{sgn_forward.34} parent=11 // pred_region
        _
      $region16: #{sgn_forward.34} parent=11 // pred_fallthru
        _
      // Predicated region
      $region17: #{sgn_forward.34} parent=11 // pred_check
        %p166 = pneg %p92
      $region18: #{sgn_forward.34} parent=11 // pred_check_branch
        %168 = sbr.rel (%p166) target = $region20
      $region19: #{sgn_forward.34} parent=11 // pred_region
        _
      $region20: #{sgn_forward.34} parent=11 // pred_fallthru
        _
    $region12: #{sgn_forward.34} parent=5 // pred_fallthru
      _
    %p169 = scmp.lt.s32.totalorder %s10, 2
    // Predicated region
    $region21: #{sgn_forward.34} parent=5 // pred_check
      %p170 = pneg %p169
    $region22: #{sgn_forward.34} parent=5 // pred_check_branch
      %172 = sbr.rel (%p170) target = $region24
    $region23: #{sgn_forward.34} parent=5 // pred_region
      // Predicated region
      $region25: #{sgn_forward.34} parent=23 // pred_check
        %p173 = pneg %p44
      $region26: #{sgn_forward.34} parent=23 // pred_check_branch
        %175 = sbr.rel (%p173) target = $region28
      $region27: #{sgn_forward.34} parent=23 // pred_region
        %s176 = smul.u32 2, %s18
        %p177 = scmp.lt.s32.totalorder %s17, 1
        %s178 = scalar_select %p177, %s17, 1
        %p179 = scmp.lt.s32.totalorder %s176, 1
        %s180 = scalar_select %p179, %s176, 1
        %s181 = smul.addr %s178, 10
        %s182 = sadd.s32 %s180, %s181
        %s183 = smul.addr %s182, 4
        %s184 = scalar_lea.vmem %s0, %s183
        %s185 = smul.u32 2, %s18
      $region28: #{sgn_forward.34} parent=23 // pred_fallthru
        _
      // Predicated region
      $region29: #{sgn_forward.34} parent=23 // pred_check
        %p186 = pneg %p114
      $region30: #{sgn_forward.34} parent=23 // pred_check_branch
        %188 = sbr.rel (%p186) target = $region32
      $region31: #{sgn_forward.34} parent=23 // pred_region
        %s189 = smul.u32 2, %s18
        %p190 = scmp.lt.s32.totalorder %s17, 1
        %s191 = scalar_select %p190, %s17, 1
        %p192 = scmp.lt.s32.totalorder %s189, 1
        %s193 = scalar_select %p192, %s189, 1
        %s194 = smul.addr %s191, 2
        %s195 = sadd.s32 %s193, %s194
        %s196 = smul.addr %s195, 8
        %s197 = scalar_lea.vmem %s3, %s196
        %s198 = smul.u32 2, %s18
      $region32: #{sgn_forward.34} parent=23 // pred_fallthru
        _
    $region24: #{sgn_forward.34} parent=5 // pred_fallthru
      _
    %p199 = scmp.le.s32.totalorder 1, %s10
    %p200 = scmp.lt.s32.totalorder %s10, 3
    %p201 = pnand %p199, %p200
    %p202 = pneg %p201
    // Predicated region
    $region33: #{sgn_forward.34} parent=5 // pred_check
      _
    $region34: #{sgn_forward.34} parent=5 // pred_check_branch
      %204 = sbr.rel (%p201) target = $region36
    $region35: #{sgn_forward.34} parent=5 // pred_region
      %s205 = ssub.s32 %s10, 1
      %s206 = smul.u32 2, %s20
      %p207 = scmp.lt.s32.totalorder %s19, 1
      %s208 = scalar_select %p207, %s19, 1
      %p209 = scmp.lt.s32.totalorder %s206, 1
      %s210 = scalar_select %p209, %s206, 1
      %s211 = smul.addr %s208, 10
      %s212 = sadd.s32 %s210, %s211
      %s213 = smul.addr %s212, 4
      %s214 = scalar_lea.vmem %s0, %s213
      %p215 = pneg %p50
      %p216 = pneg %p47
      %p217 = pneg %p71
      %p218 = pneg %p68
      %p219 = pneg %p92
      %p220 = pneg %p89
      %s221 = smul.u32 2, %s20
      %p222 = scmp.lt.s32.totalorder %s19, 1
      %s223 = scalar_select %p222, %s19, 1
      %p224 = scmp.lt.s32.totalorder %s221, 1
      %s225 = scalar_select %p224, %s221, 1
      %s226 = smul.addr %s223, 2
      %s227 = sadd.s32 %s225, %s226
      %s228 = smul.addr %s227, 8
      %s229 = scalar_lea.vmem %s3, %s228
      %p230 = pneg %p120
      %p231 = pneg %p117
      %p232 = pneg %p148
      %p233 = pneg %p145
      %s234 = smul.u32 2, %s20
      %p235 = scmp.lt.s32.totalorder %s19, 1
      %s236 = scalar_select %p235, %s19, 1
      %p237 = scmp.lt.s32.totalorder %s234, 1
      %s238 = scalar_select %p237, %s234, 1
      %s239 = smul.addr %s236, 2
      %s240 = sadd.s32 %s238, %s239
      %s241 = smul.addr %s240, 8
      %s242 = scalar_lea.vmem %s4, %s241
      %s243 = smul.u32 2, %s20
      %p244 = scmp.lt.s32.totalorder %s19, 1
      %s245 = scalar_select %p244, %s19, 1
      %p246 = scmp.lt.s32.totalorder %s243, 1
      %s247 = scalar_select %p246, %s243, 1
      %s248 = smul.addr %s245, 10
      %s249 = sadd.s32 %s247, %s248
      %s250 = smul.addr %s249, 4
      %s251 = scalar_lea.vmem %s0, %s250
      %s252 = smul.u32 2, %s20
      %s253 = smul.u32 2, %s20
      %p254 = scmp.lt.s32.totalorder %s19, 1
      %s255 = scalar_select %p254, %s19, 1
      %p256 = scmp.lt.s32.totalorder %s253, 1
      %s257 = scalar_select %p256, %s253, 1
      %s258 = smul.addr %s255, 2
      %s259 = sadd.s32 %s257, %s258
      %s260 = smul.addr %s259, 8
      %s261 = scalar_lea.vmem %s3, %s260
      %s262 = smul.u32 2, %s20
      %s263 = smul.u32 2, %s20
      %p264 = scmp.lt.s32.totalorder %s19, 1
      %s265 = scalar_select %p264, %s19, 1
      %p266 = scmp.lt.s32.totalorder %s263, 1
      %s267 = scalar_select %p266, %s263, 1
      %s268 = smul.addr %s265, 2
      %s269 = sadd.s32 %s267, %s268
      %s270 = smul.addr %s269, 8
      %s271 = scalar_lea.vmem %s4, %s270
      %s272 = smul.u32 2, %s20
      %v274 = vld [vmem:[%s1] sm:$0xf]
      %v275 = vld [vmem:[%s251] sm:$0xff]
      %v276 = vld [vmem:[%s251 + $0x8] sm:$0xff]
      %v277 = vld [vmem:[%s251 + $0x10] sm:$0xff]
      %v278 = vld [vmem:[%s251 + $0x18] sm:$0xff]
      %v279 = vld [vmem:[%s251 + $0x20] sm:$0x33]
      %v280 = vld [vmem:[%s2] sm:$0xff]
      %282 = vset.pattern.permute.xlu0 0
      %283 = vperm.xlu0 %282, %v280
      %v284 = vpop.permute.xlu0 %283
      %v291 = vunpack.c.l.b16 %v275
      %v292 = vunpack.c.h.b16 %v275
      %v293 = vunpack.c.l.b16 %v276
      %v294 = vunpack.c.h.b16 %v276
      %v295 = vunpack.c.l.b16 %v277
      %v296 = vunpack.c.h.b16 %v277
      %v297 = vunpack.c.l.b16 %v278
      %v298 = vunpack.c.h.b16 %v278
      %v299 = vunpack.c.l.b16 %v279
      %v300 = vunpack.c.h.b16 %v279
      %v301 = vpack.c.b16 %v293, %v291
      %v302 = vpack.c.b16 %v294, %v292
      %v303 = vpack.c.b16 %v297, %v295
      %v304 = vpack.c.b16 %v298, %v296
      %v305 = vpack.c.b16 %v299, %v299
      %v306 = vpack.c.b16 %v300, %v300
      %vm311 = vcmask 293888
      %v313 = vsel %vm311, %v274, 0
      %vm315 = vcmask 1041408
      %v317 = vsel %vm315, %v305, 0
      %v320 = vsel %vm315, %v306, 0
      %322 = vmatprep.subr.bf16.mxu0 %v302
      %323 = vmatpush1.bf16.msra.mxu0 %v301
      %324 = vmatprep.subr.bf16.mxu0 %v304
      %325 = vmatpush1.bf16.msra.mxu0 %v303
      %326 = vmatprep.subr.bf16.mxu0 %v320
      %327 = vmatpush1.bf16.msra.mxu0 %v317
      %328 = vmatprep.subr.bf16.mxu0 0
      %329 = vmatpush1.bf16.msra.mxu0 0
      %330 = vmatprep.subr.bf16.mxu0 0
      %331 = vmatpush1.bf16.msra.mxu0 0
      %332 = vmatprep.subr.bf16.mxu0 0
      %333 = vmatpush1.bf16.msra.mxu0 0
      %334 = vmatprep.subr.bf16.mxu0 0
      %335 = vmatpush1.bf16.msra.mxu0 0
      %336 = vmatprep.subr.bf16.mxu0 0
      %337 = vmatpush1.bf16.msra.mxu0 0
      %338 = vmatprep.subr.bf16.mxu0 0
      %339 = vmatpush1.bf16.msra.mxu0 0
      %340 = vmatprep.subr.bf16.mxu0 0
      %341 = vmatpush1.bf16.msra.mxu0 0
      %342 = vmatprep.subr.bf16.mxu0 0
      %343 = vmatpush1.bf16.msra.mxu0 0
      %344 = vmatprep.subr.bf16.mxu0 0
      %345 = vmatpush1.bf16.msra.mxu0 0
      %346 = vmatprep.subr.bf16.mxu0 0
      %347 = vmatpush1.bf16.msra.mxu0 0
      %348 = vmatprep.subr.bf16.mxu0 0
      %349 = vmatpush1.bf16.msra.mxu0 0
      %350 = vmatprep.subr.bf16.mxu0 0
      %351 = vmatpush1.bf16.msra.mxu0 0
      %352 = vmatprep.subr.bf16.mxu0 0
      %353 = vmatpush1.bf16.msra.mxu0 0
      %354 = vmatprep.mubr.bf16.mxu0 0
      %355 = vmatmul.mubr.bf16.gmra.mrb[0].mxu0 %v313
      %v356 = vpop.f32.mrb[0].mxu0
      %v357 = vadd.f32 %v284, %v356
      %v358 = vpop.f32.mrb[0].mxu0
      %v359 = vadd.f32 %v284, %v358
      %v360 = vpop.f32.mrb[0].mxu0
      %v361 = vpop.f32.mrb[0].mxu0
      %362 = vdwg.mxu0
      %vm363 = vcmp.ge.f32.partialorder %v357, 0.0
      %vm364 = vcmp.ge.f32.partialorder %v359, 0.0
      %v365 = vmul.f32 %v357, 0.2
      %v366 = vmul.f32 %v359, 0.2
      %v367 = vsel %vm363, %v357, %v365
      %v368 = vsel %vm364, %v359, %v366
      %v369 = vld [vmem:[%s261] sm:$0xff]
      %v370 = vld [vmem:[%s261 + $0x8] sm:$0xff]
      %v371 = vadd.f32 %v367, %v369
      %v372 = vadd.f32 %v368, %v370
      %373 = vst [vmem:[%s271] sm:$0xff] %v371
      %374 = vst [vmem:[%s271 + $0x8] sm:$0xff] %v372
      %s375 = smul.u32 2, %s20
      %p376 = scmp.lt.s32.totalorder %s19, 1
      %s377 = scalar_select %p376, %s19, 1
      %p378 = scmp.lt.s32.totalorder %s375, 1
      %s379 = scalar_select %p378, %s375, 1
      %s380 = smul.addr %s377, 2
      %s381 = sadd.s32 %s379, %s380
      %s382 = smul.addr %s381, 8
      %s383 = scalar_lea.vmem %s4, %s382
      // Predicated region
      $region37: #{sgn_forward.34} parent=35 // pred_check
        %p384 = pneg %p145
      $region38: #{sgn_forward.34} parent=35 // pred_check_branch
        %386 = sbr.rel (%p384) target = $region40
      $region39: #{sgn_forward.34} parent=35 // pred_region
        %s387 = smul.u32 2, %s20
      $region40: #{sgn_forward.34} parent=35 // pred_fallthru
        _
    $region36: #{sgn_forward.34} parent=5 // pred_fallthru
      _
    %p388 = scmp.le.s32.totalorder 2, %s10
    // Predicated region
    $region41: #{sgn_forward.34} parent=5 // pred_check
      %p389 = pneg %p388
    $region42: #{sgn_forward.34} parent=5 // pred_check_branch
      %391 = sbr.rel (%p389) target = $region44
    $region43: #{sgn_forward.34} parent=5 // pred_region
      %s392 = ssub.s32 %s10, 2
      // Predicated region
      $region45: #{sgn_forward.34} parent=43 // pred_check
        %p393 = pneg %p151
      $region46: #{sgn_forward.34} parent=43 // pred_check_branch
        %395 = sbr.rel (%p393) target = $region48
      $region47: #{sgn_forward.34} parent=43 // pred_region
        %s396 = smul.u32 2, %s22
        %p397 = scmp.lt.s32.totalorder %s21, 1
        %s398 = scalar_select %p397, %s21, 1
        %p399 = scmp.lt.s32.totalorder %s396, 1
        %s400 = scalar_select %p399, %s396, 1
        %s401 = smul.addr %s398, 2
        %s402 = sadd.s32 %s400, %s401
        %s403 = smul.addr %s402, 8
        %s404 = scalar_lea.vmem %s4, %s403
      $region48: #{sgn_forward.34} parent=43 // pred_fallthru
        _
    $region44: #{sgn_forward.34} parent=5 // pred_fallthru
      _
  $region6: #{sgn_forward.34} parent=0 // loop_footer
    %s14 = sadd.s32 1, %s10
  $region7: #{sgn_forward.34} parent=0 // loop_footer_branch
    %9 = sbr.rel target = $region3
  $region8: #{sgn_forward.34} parent=0 // loop_exit
    _

// kernel: sgn_forward.35
$region0: #{sgn_forward.35}
  #allocation0 [shape = 'u32[]', space=smem, size = 0x4, offset = 0x4, fixed_abs, tag = 'smem constant byte address 0x4 - core index']
  #allocation1 [shape = 'u32[144,128]{1,0:T(1,128)}', space=vmem, size = 0x12000, scoped, tag = 'internal scratch']
  %s0 = inlined_call_operand.vmem [shape: bf16[2,72,256], index: 0, kind: input, shape index: {}]
  %s1 = inlined_call_operand.vmem [shape: bf16[8,72], index: 1, kind: input, shape index: {}]
  %s2 = inlined_call_operand.vmem [shape: f32[8,1], index: 2, kind: input, shape index: {}]
  %s3 = inlined_call_operand.vmem [shape: f32[2,8,256], index: 3, kind: output, shape index: {}]
  %s4 = sld [smem:[#allocation0]]
  $region45: #{sgn_forward.35} parent=0
    _
  %s6 = ssub.s32 1, %s4
  %s7 = scalar_select 0, %s6, %s4
  loop: start=0, step=1, limit=4
  $region2: #{sgn_forward.35} parent=0 // loop_pre_header
    _
  $region3: #{sgn_forward.35} parent=0 // loop_header
    %s9 = sphi 0, %s13
    %p10 = scmp.ge.s32.totalorder %s9, 4
    %s16 = sphi 0, %s28
    %s17 = sphi 0, %s24
    %s18 = sphi 0, %s16
    %s19 = sphi 0, %s17
    %s20 = sphi 0, %s18
    %s21 = sphi 0, %s19
    %s33 = sphi 0, %s35
    %s36 = sphi 0, %s33
    %s37 = sphi 0, %s36
    %s53 = sphi 0, %s37
    %s57 = sphi 0, %s57
    %s59 = sphi 0, %s57
    %s60 = sphi 0, %s59
    %s74 = sphi 0, %s60
    %s78 = sphi 0, %s78
    %s80 = sphi 0, %s78
    %s81 = sphi 0, %s80
    %s95 = sphi 0, %s81
    %s103 = sphi 0, %s105
    %s106 = sphi 0, %s103
    %s107 = sphi 0, %s106
    %s123 = sphi 0, %s107
  $region4: #{sgn_forward.35} parent=0 // loop_header_branch
    %12 = sbr.rel (%p10) target = $region8
  $region5: #{sgn_forward.35} parent=0 // loop_body
    %s14 = ssub.s32 %s9, 1
    %s15 = ssub.s32 %s9, 2
    %s22 = sadd.s32 1, %s17
    %p23 = scmp.ge.s32.totalorder %s22, 1
    %s24 = scalar_select %p23, 0, %s22
    %s25 = sadd.s32 1, %s16
    %s26 = scalar_select %p23, %s25, %s16
    %p27 = scmp.ge.s32.totalorder %s26, 2
    %s28 = scalar_select %p27, 0, %s26
    %s29 = ssub.s32 %s16, %s28
    %s30 = ssub.s32 %s17, %s24
    %s31 = sor.u32 %s29, %s30
    %p32 = scmp.eq.s32.totalorder %s31, 0
    %s34 = sadd.s32 %s33, 1
    %s35 = scalar_select %p32, %s33, %s34
    %p38 = pneg %p32
    %p39 = scmp.eq.s32.totalorder %s9, 1
    %p40 = por %p38, %p39
    %p41 = scmp.ne.s32.totalorder %s33, %s36
    %p42 = scmp.eq.s32.totalorder %s9, 0
    %p43 = por %p41, %p42
    %p44 = scmp.ne.s32.totalorder %s33, %s36
    %p45 = scmp.eq.s32.totalorder %s14, 1
    %p46 = por %p44, %p45
    %p47 = scmp.ne.s32.totalorder %s36, %s37
    %p48 = scmp.eq.s32.totalorder %s14, 0
    %p49 = por %p47, %p48
    %p50 = scmp.ne.s32.totalorder %s36, %s37
    %p51 = scmp.eq.s32.totalorder %s15, 1
    %p52 = por %p50, %p51
    %p54 = scmp.ne.s32.totalorder %s37, %s53
    %p55 = scmp.eq.s32.totalorder %s15, 0
    %p56 = por %p54, %p55
    %s58 = sadd.s32 %s57, 1
    %p61 = scmp.eq.s32.totalorder %s9, 1
    %p62 = scmp.ne.s32.totalorder %s57, %s59
    %p63 = scmp.eq.s32.totalorder %s9, 0
    %p64 = por %p62, %p63
    %p65 = scmp.ne.s32.totalorder %s57, %s59
    %p66 = scmp.eq.s32.totalorder %s14, 1
    %p67 = por %p65, %p66
    %p68 = scmp.ne.s32.totalorder %s59, %s60
    %p69 = scmp.eq.s32.totalorder %s14, 0
    %p70 = por %p68, %p69
    %p71 = scmp.ne.s32.totalorder %s59, %s60
    %p72 = scmp.eq.s32.totalorder %s15, 1
    %p73 = por %p71, %p72
    %p75 = scmp.ne.s32.totalorder %s60, %s74
    %p76 = scmp.eq.s32.totalorder %s15, 0
    %p77 = por %p75, %p76
    %s79 = sadd.s32 %s78, 1
    %p82 = scmp.eq.s32.totalorder %s9, 1
    %p83 = scmp.ne.s32.totalorder %s78, %s80
    %p84 = scmp.eq.s32.totalorder %s9, 0
    %p85 = por %p83, %p84
    %p86 = scmp.ne.s32.totalorder %s78, %s80
    %p87 = scmp.eq.s32.totalorder %s14, 1
    %p88 = por %p86, %p87
    %p89 = scmp.ne.s32.totalorder %s80, %s81
    %p90 = scmp.eq.s32.totalorder %s14, 0
    %p91 = por %p89, %p90
    %p92 = scmp.ne.s32.totalorder %s80, %s81
    %p93 = scmp.eq.s32.totalorder %s15, 1
    %p94 = por %p92, %p93
    %p96 = scmp.ne.s32.totalorder %s81, %s95
    %p97 = scmp.eq.s32.totalorder %s15, 0
    %p98 = por %p96, %p97
    %s99 = ssub.s32 %s16, %s28
    %s100 = ssub.s32 %s17, %s24
    %s101 = sor.u32 %s99, %s100
    %p102 = scmp.eq.s32.totalorder %s101, 0
    %s104 = sadd.s32 %s103, 1
    %s105 = scalar_select %p102, %s103, %s104
    %p108 = pneg %p102
    %p109 = scmp.eq.s32.totalorder %s9, 1
    %p110 = por %p108, %p109
    %p111 = scmp.ne.s32.totalorder %s103, %s106
    %p112 = scmp.eq.s32.totalorder %s9, 0
    %p113 = por %p111, %p112
    %p114 = scmp.ne.s32.totalorder %s103, %s106
    %p115 = scmp.eq.s32.totalorder %s14, 1
    %p116 = por %p114, %p115
    %p117 = scmp.ne.s32.totalorder %s106, %s107
    %p118 = scmp.eq.s32.totalorder %s14, 0
    %p119 = por %p117, %p118
    %p120 = scmp.ne.s32.totalorder %s106, %s107
    %p121 = scmp.eq.s32.totalorder %s15, 1
    %p122 = por %p120, %p121
    %p124 = scmp.ne.s32.totalorder %s107, %s123
    %p125 = scmp.eq.s32.totalorder %s15, 0
    %p126 = por %p124, %p125
    %p127 = scmp.le.s32.totalorder 1, %s9
    %p128 = scmp.lt.s32.totalorder %s9, 3
    %p129 = pnand %p127, %p128
    %p130 = pneg %p129
    // Predicated region
    $region9: #{sgn_forward.35} parent=5 // pred_check
      _
    $region10: #{sgn_forward.35} parent=5 // pred_check_branch
      %132 = sbr.rel (%p129) target = $region12
    $region11: #{sgn_forward.35} parent=5 // pred_region
      %s133 = ssub.s32 %s9, 1
      // Predicated region
      $region13: #{sgn_forward.35} parent=11 // pred_check
        %p134 = pneg %p70
      $region14: #{sgn_forward.35} parent=11 // pred_check_branch
        %136 = sbr.rel (%p134) target = $region16
      $region15: #{sgn_forward.35} parent=11 // pred_region
        _
      $region16: #{sgn_forward.35} parent=11 // pred_fallthru
        _
      // Predicated region
      $region17: #{sgn_forward.35} parent=11 // pred_check
        %p137 = pneg %p91
      $region18: #{sgn_forward.35} parent=11 // pred_check_branch
        %139 = sbr.rel (%p137) target = $region20
      $region19: #{sgn_forward.35} parent=11 // pred_region
        _
      $region20: #{sgn_forward.35} parent=11 // pred_fallthru
        _
    $region12: #{sgn_forward.35} parent=5 // pred_fallthru
      _
    %p140 = scmp.lt.s32.totalorder %s9, 2
    // Predicated region
    $region21: #{sgn_forward.35} parent=5 // pred_check
      %p141 = pneg %p140
    $region22: #{sgn_forward.35} parent=5 // pred_check_branch
      %143 = sbr.rel (%p141) target = $region24
    $region23: #{sgn_forward.35} parent=5 // pred_region
      // Predicated region
      $region25: #{sgn_forward.35} parent=23 // pred_check
        %p144 = pneg %p43
      $region26: #{sgn_forward.35} parent=23 // pred_check_branch
        %146 = sbr.rel (%p144) target = $region28
      $region27: #{sgn_forward.35} parent=23 // pred_region
        %s147 = smul.u32 2, %s17
        %p148 = scmp.lt.s32.totalorder %s16, 1
        %s149 = scalar_select %p148, %s16, 1
        %p150 = scmp.lt.s32.totalorder %s147, 1
        %s151 = scalar_select %p150, %s147, 1
        %s152 = smul.addr %s149, 18
        %s153 = sadd.s32 %s151, %s152
        %s154 = smul.addr %s153, 4
        %s155 = scalar_lea.vmem %s0, %s154
        %s156 = smul.u32 2, %s17
      $region28: #{sgn_forward.35} parent=23 // pred_fallthru
        _
    $region24: #{sgn_forward.35} parent=5 // pred_fallthru
      _
    %p157 = scmp.le.s32.totalorder 1, %s9
    %p158 = scmp.lt.s32.totalorder %s9, 3
    %p159 = pnand %p157, %p158
    %p160 = pneg %p159
    // Predicated region
    $region29: #{sgn_forward.35} parent=5 // pred_check
      _
    $region30: #{sgn_forward.35} parent=5 // pred_check_branch
      %162 = sbr.rel (%p159) target = $region32
    $region31: #{sgn_forward.35} parent=5 // pred_region
      %s163 = ssub.s32 %s9, 1
      %s164 = smul.u32 2, %s19
      %p165 = scmp.lt.s32.totalorder %s18, 1
      %s166 = scalar_select %p165, %s18, 1
      %p167 = scmp.lt.s32.totalorder %s164, 1
      %s168 = scalar_select %p167, %s164, 1
      %s169 = smul.addr %s166, 18
      %s170 = sadd.s32 %s168, %s169
      %s171 = smul.addr %s170, 4
      %s172 = scalar_lea.vmem %s0, %s171
      %p173 = pneg %p49
      %p174 = pneg %p46
      %p175 = pneg %p70
      %p176 = pneg %p67
      %p177 = pneg %p91
      %p178 = pneg %p88
      %p179 = pneg %p119
      %p180 = pneg %p116
      %s181 = smul.u32 2, %s19
      %p182 = scmp.lt.s32.totalorder %s18, 1
      %s183 = scalar_select %p182, %s18, 1
      %p184 = scmp.lt.s32.totalorder %s181, 1
      %s185 = scalar_select %p184, %s181, 1
      %s186 = smul.addr %s183, 2
      %s187 = sadd.s32 %s185, %s186
      %s188 = smul.addr %s187, 8
      %s189 = scalar_lea.vmem %s3, %s188
      %s190 = smul.u32 2, %s19
      %p191 = scmp.lt.s32.totalorder %s18, 1
      %s192 = scalar_select %p191, %s18, 1
      %p193 = scmp.lt.s32.totalorder %s190, 1
      %s194 = scalar_select %p193, %s190, 1
      %s195 = smul.addr %s192, 18
      %s196 = sadd.s32 %s194, %s195
      %s197 = smul.addr %s196, 4
      %s198 = scalar_lea.vmem %s0, %s197
      %s199 = smul.u32 2, %s19
      %s200 = smul.u32 2, %s19
      %p201 = scmp.lt.s32.totalorder %s18, 1
      %s202 = scalar_select %p201, %s18, 1
      %p203 = scmp.lt.s32.totalorder %s200, 1
      %s204 = scalar_select %p203, %s200, 1
      %s205 = smul.addr %s202, 2
      %s206 = sadd.s32 %s204, %s205
      %s207 = smul.addr %s206, 8
      %s208 = scalar_lea.vmem %s3, %s207
      %s209 = smul.u32 2, %s19
      %v211 = vld [vmem:[%s1] sm:$0xf]
      %v212 = vld [vmem:[%s198] sm:$0xff]
      %v213 = vld [vmem:[%s198 + $0x8] sm:$0xff]
      %v214 = vld [vmem:[%s198 + $0x10] sm:$0xff]
      %v215 = vld [vmem:[%s198 + $0x18] sm:$0xff]
      %v216 = vld [vmem:[%s198 + $0x20] sm:$0xff]
      %v217 = vld [vmem:[%s198 + $0x28] sm:$0xff]
      %v218 = vld [vmem:[%s198 + $0x30] sm:$0xff]
      %v219 = vld [vmem:[%s198 + $0x38] sm:$0xff]
      %v220 = vld [vmem:[%s198 + $0x40] sm:$0xff]
      %v221 = vld [vmem:[%s2] sm:$0xff]
      %223 = vset.pattern.permute.xlu0 0
      %224 = vperm.xlu0 %223, %v221
      %v225 = vpop.permute.xlu0 %224
      %v236 = vunpack.c.l.b16 %v212
      %v237 = vunpack.c.h.b16 %v212
      %v238 = vunpack.c.l.b16 %v213
      %v239 = vunpack.c.h.b16 %v213
      %v240 = vunpack.c.l.b16 %v214
      %v241 = vunpack.c.h.b16 %v214
      %v242 = vunpack.c.l.b16 %v215
      %v243 = vunpack.c.h.b16 %v215
      %v244 = vunpack.c.l.b16 %v216
      %v245 = vunpack.c.h.b16 %v216
      %v246 = vunpack.c.l.b16 %v217
      %v247 = vunpack.c.h.b16 %v217
      %v248 = vunpack.c.l.b16 %v218
      %v249 = vunpack.c.h.b16 %v218
      %v250 = vunpack.c.l.b16 %v219
      %v251 = vunpack.c.h.b16 %v219
      %v252 = vunpack.c.l.b16 %v220
      %v253 = vunpack.c.h.b16 %v220
      %v254 = vpack.c.b16 %v238, %v236
      %v255 = vpack.c.b16 %v239, %v237
      %v256 = vpack.c.b16 %v242, %v240
      %v257 = vpack.c.b16 %v243, %v241
      %v258 = vpack.c.b16 %v246, %v244
      %v259 = vpack.c.b16 %v247, %v245
      %v260 = vpack.c.b16 %v250, %v248
      %v261 = vpack.c.b16 %v251, %v249
      %v262 = vpack.c.b16 %v252, %v252
      %v263 = vpack.c.b16 %v253, %v253
      %vm272 = vcmask 588800
      %v274 = vsel %vm272, %v211, 0
      %vm276 = vcmask 1043456
      %v278 = vsel %vm276, %v262, 0
      %v281 = vsel %vm276, %v263, 0
      %283 = vmatprep.subr.bf16.mxu0 %v255
      %284 = vmatpush1.bf16.msra.mxu0 %v254
      %285 = vmatprep.subr.bf16.mxu0 %v257
      %286 = vmatpush1.bf16.msra.mxu0 %v256
      %287 = vmatprep.subr.bf16.mxu0 %v259
      %288 = vmatpush1.bf16.msra.mxu0 %v258
      %289 = vmatprep.subr.bf16.mxu0 %v261
      %290 = vmatpush1.bf16.msra.mxu0 %v260
      %291 = vmatprep.subr.bf16.mxu0 %v281
      %292 = vmatpush1.bf16.msra.mxu0 %v278
      %293 = vmatprep.subr.bf16.mxu0 0
      %294 = vmatpush1.bf16.msra.mxu0 0
      %295 = vmatprep.subr.bf16.mxu0 0
      %296 = vmatpush1.bf16.msra.mxu0 0
      %297 = vmatprep.subr.bf16.mxu0 0
      %298 = vmatpush1.bf16.msra.mxu0 0
      %299 = vmatprep.subr.bf16.mxu0 0
      %300 = vmatpush1.bf16.msra.mxu0 0
      %301 = vmatprep.subr.bf16.mxu0 0
      %302 = vmatpush1.bf16.msra.mxu0 0
      %303 = vmatprep.subr.bf16.mxu0 0
      %304 = vmatpush1.bf16.msra.mxu0 0
      %305 = vmatprep.subr.bf16.mxu0 0
      %306 = vmatpush1.bf16.msra.mxu0 0
      %307 = vmatprep.subr.bf16.mxu0 0
      %308 = vmatpush1.bf16.msra.mxu0 0
      %309 = vmatprep.subr.bf16.mxu0 0
      %310 = vmatpush1.bf16.msra.mxu0 0
      %311 = vmatprep.subr.bf16.mxu0 0
      %312 = vmatpush1.bf16.msra.mxu0 0
      %313 = vmatprep.subr.bf16.mxu0 0
      %314 = vmatpush1.bf16.msra.mxu0 0
      %315 = vmatprep.mubr.bf16.mxu0 0
      %316 = vmatmul.mubr.bf16.gmra.mrb[0].mxu0 %v274
      %v317 = vpop.f32.mrb[0].mxu0
      %v318 = vadd.f32 %v225, %v317
      %v319 = vpop.f32.mrb[0].mxu0
      %v320 = vadd.f32 %v225, %v319
      %v321 = vpop.f32.mrb[0].mxu0
      %v322 = vpop.f32.mrb[0].mxu0
      %323 = vdwg.mxu0
      %vm324 = vcmp.ge.f32.partialorder %v318, 0.0
      %vm325 = vcmp.ge.f32.partialorder %v320, 0.0
      %v326 = vmul.f32 %v318, 0.2
      %v327 = vmul.f32 %v320, 0.2
      %v328 = vsel %vm324, %v318, %v326
      %v329 = vsel %vm325, %v320, %v327
      %330 = vst [vmem:[%s208] sm:$0xff] %v328
      %331 = vst [vmem:[%s208 + $0x8] sm:$0xff] %v329
      %s332 = smul.u32 2, %s19
      %p333 = scmp.lt.s32.totalorder %s18, 1
      %s334 = scalar_select %p333, %s18, 1
      %p335 = scmp.lt.s32.totalorder %s332, 1
      %s336 = scalar_select %p335, %s332, 1
      %s337 = smul.addr %s334, 2
      %s338 = sadd.s32 %s336, %s337
      %s339 = smul.addr %s338, 8
      %s340 = scalar_lea.vmem %s3, %s339
      // Predicated region
      $region33: #{sgn_forward.35} parent=31 // pred_check
        %p341 = pneg %p116
      $region34: #{sgn_forward.35} parent=31 // pred_check_branch
        %343 = sbr.rel (%p341) target = $region36
      $region35: #{sgn_forward.35} parent=31 // pred_region
        %s344 = smul.u32 2, %s19
      $region36: #{sgn_forward.35} parent=31 // pred_fallthru
        _
    $region32: #{sgn_forward.35} parent=5 // pred_fallthru
      _
    %p345 = scmp.le.s32.totalorder 2, %s9
    // Predicated region
    $region37: #{sgn_forward.35} parent=5 // pred_check
      %p346 = pneg %p345
    $region38: #{sgn_forward.35} parent=5 // pred_check_branch
      %348 = sbr.rel (%p346) target = $region40
    $region39: #{sgn_forward.35} parent=5 // pred_region
      %s349 = ssub.s32 %s9, 2
      // Predicated region
      $region41: #{sgn_forward.35} parent=39 // pred_check
        %p350 = pneg %p122
      $region42: #{sgn_forward.35} parent=39 // pred_check_branch
        %352 = sbr.rel (%p350) target = $region44
      $region43: #{sgn_forward.35} parent=39 // pred_region
        %s353 = smul.u32 2, %s21
        %p354 = scmp.lt.s32.totalorder %s20, 1
        %s355 = scalar_select %p354, %s20, 1
        %p356 = scmp.lt.s32.totalorder %s353, 1
        %s357 = scalar_select %p356, %s353, 1
        %s358 = smul.addr %s355, 2
        %s359 = sadd.s32 %s357, %s358
        %s360 = smul.addr %s359, 8
        %s361 = scalar_lea.vmem %s3, %s360
      $region44: #{sgn_forward.35} parent=39 // pred_fallthru
        _
    $region40: #{sgn_forward.35} parent=5 // pred_fallthru
      _
  $region6: #{sgn_forward.35} parent=0 // loop_footer
    %s13 = sadd.s32 1, %s9
  $region7: #{sgn_forward.35} parent=0 // loop_footer_branch
    %8 = sbr.rel target = $region3
  $region8: #{sgn_forward.35} parent=0 // loop_exit
    _

// kernel: sgn_forward.36
$region0: #{sgn_forward.36}
  #allocation0 [shape = 'u32[]', space=smem, size = 0x4, offset = 0x4, fixed_abs, tag = 'smem constant byte address 0x4 - core index']
  #allocation1 [shape = 'u32[144,128]{1,0:T(1,128)}', space=vmem, size = 0x12000, scoped, tag = 'internal scratch']
  %s0 = inlined_call_operand.vmem [shape: bf16[2,144,256], index: 0, kind: input, shape index: {}]
  %s1 = inlined_call_operand.vmem [shape: bf16[8,144], index: 1, kind: input, shape index: {}]
  %s2 = inlined_call_operand.vmem [shape: f32[8,1], index: 2, kind: input, shape index: {}]
  %s3 = inlined_call_operand.vmem [shape: f32[2,8,256], index: 3, kind: output, shape index: {}]
  %s4 = sld [smem:[#allocation0]]
  $region45: #{sgn_forward.36} parent=0
    _
  %s6 = ssub.s32 1, %s4
  %s7 = scalar_select 0, %s6, %s4
  loop: start=0, step=1, limit=4
  $region2: #{sgn_forward.36} parent=0 // loop_pre_header
    _
  $region3: #{sgn_forward.36} parent=0 // loop_header
    %s9 = sphi 0, %s13
    %p10 = scmp.ge.s32.totalorder %s9, 4
    %s16 = sphi 0, %s28
    %s17 = sphi 0, %s24
    %s18 = sphi 0, %s16
    %s19 = sphi 0, %s17
    %s20 = sphi 0, %s18
    %s21 = sphi 0, %s19
    %s33 = sphi 0, %s35
    %s36 = sphi 0, %s33
    %s37 = sphi 0, %s36
    %s53 = sphi 0, %s37
    %s57 = sphi 0, %s57
    %s59 = sphi 0, %s57
    %s60 = sphi 0, %s59
    %s74 = sphi 0, %s60
    %s78 = sphi 0, %s78
    %s80 = sphi 0, %s78
    %s81 = sphi 0, %s80
    %s95 = sphi 0, %s81
    %s103 = sphi 0, %s105
    %s106 = sphi 0, %s103
    %s107 = sphi 0, %s106
    %s123 = sphi 0, %s107
  $region4: #{sgn_forward.36} parent=0 // loop_header_branch
    %12 = sbr.rel (%p10) target = $region8
  $region5: #{sgn_forward.36} parent=0 // loop_body
    %s14 = ssub.s32 %s9, 1
    %s15 = ssub.s32 %s9, 2
    %s22 = sadd.s32 1, %s17
    %p23 = scmp.ge.s32.totalorder %s22, 1
    %s24 = scalar_select %p23, 0, %s22
    %s25 = sadd.s32 1, %s16
    %s26 = scalar_select %p23, %s25, %s16
    %p27 = scmp.ge.s32.totalorder %s26, 2
    %s28 = scalar_select %p27, 0, %s26
    %s29 = ssub.s32 %s16, %s28
    %s30 = ssub.s32 %s17, %s24
    %s31 = sor.u32 %s29, %s30
    %p32 = scmp.eq.s32.totalorder %s31, 0
    %s34 = sadd.s32 %s33, 1
    %s35 = scalar_select %p32, %s33, %s34
    %p38 = pneg %p32
    %p39 = scmp.eq.s32.totalorder %s9, 1
    %p40 = por %p38, %p39
    %p41 = scmp.ne.s32.totalorder %s33, %s36
    %p42 = scmp.eq.s32.totalorder %s9, 0
    %p43 = por %p41, %p42
    %p44 = scmp.ne.s32.totalorder %s33, %s36
    %p45 = scmp.eq.s32.totalorder %s14, 1
    %p46 = por %p44, %p45
    %p47 = scmp.ne.s32.totalorder %s36, %s37
    %p48 = scmp.eq.s32.totalorder %s14, 0
    %p49 = por %p47, %p48
    %p50 = scmp.ne.s32.totalorder %s36, %s37
    %p51 = scmp.eq.s32.totalorder %s15, 1
    %p52 = por %p50, %p51
    %p54 = scmp.ne.s32.totalorder %s37, %s53
    %p55 = scmp.eq.s32.totalorder %s15, 0
    %p56 = por %p54, %p55
    %s58 = sadd.s32 %s57, 1
    %p61 = scmp.eq.s32.totalorder %s9, 1
    %p62 = scmp.ne.s32.totalorder %s57, %s59
    %p63 = scmp.eq.s32.totalorder %s9, 0
    %p64 = por %p62, %p63
    %p65 = scmp.ne.s32.totalorder %s57, %s59
    %p66 = scmp.eq.s32.totalorder %s14, 1
    %p67 = por %p65, %p66
    %p68 = scmp.ne.s32.totalorder %s59, %s60
    %p69 = scmp.eq.s32.totalorder %s14, 0
    %p70 = por %p68, %p69
    %p71 = scmp.ne.s32.totalorder %s59, %s60
    %p72 = scmp.eq.s32.totalorder %s15, 1
    %p73 = por %p71, %p72
    %p75 = scmp.ne.s32.totalorder %s60, %s74
    %p76 = scmp.eq.s32.totalorder %s15, 0
    %p77 = por %p75, %p76
    %s79 = sadd.s32 %s78, 1
    %p82 = scmp.eq.s32.totalorder %s9, 1
    %p83 = scmp.ne.s32.totalorder %s78, %s80
    %p84 = scmp.eq.s32.totalorder %s9, 0
    %p85 = por %p83, %p84
    %p86 = scmp.ne.s32.totalorder %s78, %s80
    %p87 = scmp.eq.s32.totalorder %s14, 1
    %p88 = por %p86, %p87
    %p89 = scmp.ne.s32.totalorder %s80, %s81
    %p90 = scmp.eq.s32.totalorder %s14, 0
    %p91 = por %p89, %p90
    %p92 = scmp.ne.s32.totalorder %s80, %s81
    %p93 = scmp.eq.s32.totalorder %s15, 1
    %p94 = por %p92, %p93
    %p96 = scmp.ne.s32.totalorder %s81, %s95
    %p97 = scmp.eq.s32.totalorder %s15, 0
    %p98 = por %p96, %p97
    %s99 = ssub.s32 %s16, %s28
    %s100 = ssub.s32 %s17, %s24
    %s101 = sor.u32 %s99, %s100
    %p102 = scmp.eq.s32.totalorder %s101, 0
    %s104 = sadd.s32 %s103, 1
    %s105 = scalar_select %p102, %s103, %s104
    %p108 = pneg %p102
    %p109 = scmp.eq.s32.totalorder %s9, 1
    %p110 = por %p108, %p109
    %p111 = scmp.ne.s32.totalorder %s103, %s106
    %p112 = scmp.eq.s32.totalorder %s9, 0
    %p113 = por %p111, %p112
    %p114 = scmp.ne.s32.totalorder %s103, %s106
    %p115 = scmp.eq.s32.totalorder %s14, 1
    %p116 = por %p114, %p115
    %p117 = scmp.ne.s32.totalorder %s106, %s107
    %p118 = scmp.eq.s32.totalorder %s14, 0
    %p119 = por %p117, %p118
    %p120 = scmp.ne.s32.totalorder %s106, %s107
    %p121 = scmp.eq.s32.totalorder %s15, 1
    %p122 = por %p120, %p121
    %p124 = scmp.ne.s32.totalorder %s107, %s123
    %p125 = scmp.eq.s32.totalorder %s15, 0
    %p126 = por %p124, %p125
    %p127 = scmp.le.s32.totalorder 1, %s9
    %p128 = scmp.lt.s32.totalorder %s9, 3
    %p129 = pnand %p127, %p128
    %p130 = pneg %p129
    // Predicated region
    $region9: #{sgn_forward.36} parent=5 // pred_check
      _
    $region10: #{sgn_forward.36} parent=5 // pred_check_branch
      %132 = sbr.rel (%p129) target = $region12
    $region11: #{sgn_forward.36} parent=5 // pred_region
      %s133 = ssub.s32 %s9, 1
      // Predicated region
      $region13: #{sgn_forward.36} parent=11 // pred_check
        %p134 = pneg %p70
      $region14: #{sgn_forward.36} parent=11 // pred_check_branch
        %136 = sbr.rel (%p134) target = $region16
      $region15: #{sgn_forward.36} parent=11 // pred_region
        _
      $region16: #{sgn_forward.36} parent=11 // pred_fallthru
        _
      // Predicated region
      $region17: #{sgn_forward.36} parent=11 // pred_check
        %p137 = pneg %p91
      $region18: #{sgn_forward.36} parent=11 // pred_check_branch
        %139 = sbr.rel (%p137) target = $region20
      $region19: #{sgn_forward.36} parent=11 // pred_region
        _
      $region20: #{sgn_forward.36} parent=11 // pred_fallthru
        _
    $region12: #{sgn_forward.36} parent=5 // pred_fallthru
      _
    %p140 = scmp.lt.s32.totalorder %s9, 2
    // Predicated region
    $region21: #{sgn_forward.36} parent=5 // pred_check
      %p141 = pneg %p140
    $region22: #{sgn_forward.36} parent=5 // pred_check_branch
      %143 = sbr.rel (%p141) target = $region24
    $region23: #{sgn_forward.36} parent=5 // pred_region
      // Predicated region
      $region25: #{sgn_forward.36} parent=23 // pred_check
        %p144 = pneg %p43
      $region26: #{sgn_forward.36} parent=23 // pred_check_branch
        %146 = sbr.rel (%p144) target = $region28
      $region27: #{sgn_forward.36} parent=23 // pred_region
        %s147 = smul.u32 2, %s17
        %p148 = scmp.lt.s32.totalorder %s16, 1
        %s149 = scalar_select %p148, %s16, 1
        %p150 = scmp.lt.s32.totalorder %s147, 1
        %s151 = scalar_select %p150, %s147, 1
        %s152 = smul.addr %s149, 36
        %s153 = sadd.s32 %s151, %s152
        %s154 = smul.addr %s153, 4
        %s155 = scalar_lea.vmem %s0, %s154
        %s156 = smul.u32 2, %s17
      $region28: #{sgn_forward.36} parent=23 // pred_fallthru
        _
    $region24: #{sgn_forward.36} parent=5 // pred_fallthru
      _
    %p157 = scmp.le.s32.totalorder 1, %s9
    %p158 = scmp.lt.s32.totalorder %s9, 3
    %p159 = pnand %p157, %p158
    %p160 = pneg %p159
    // Predicated region
    $region29: #{sgn_forward.36} parent=5 // pred_check
      _
    $region30: #{sgn_forward.36} parent=5 // pred_check_branch
      %162 = sbr.rel (%p159) target = $region32
    $region31: #{sgn_forward.36} parent=5 // pred_region
      %s163 = ssub.s32 %s9, 1
      %s164 = smul.u32 2, %s19
      %p165 = scmp.lt.s32.totalorder %s18, 1
      %s166 = scalar_select %p165, %s18, 1
      %p167 = scmp.lt.s32.totalorder %s164, 1
      %s168 = scalar_select %p167, %s164, 1
      %s169 = smul.addr %s166, 36
      %s170 = sadd.s32 %s168, %s169
      %s171 = smul.addr %s170, 4
      %s172 = scalar_lea.vmem %s0, %s171
      %p173 = pneg %p49
      %p174 = pneg %p46
      %p175 = pneg %p70
      %p176 = pneg %p67
      %p177 = pneg %p91
      %p178 = pneg %p88
      %p179 = pneg %p119
      %p180 = pneg %p116
      %s181 = smul.u32 2, %s19
      %p182 = scmp.lt.s32.totalorder %s18, 1
      %s183 = scalar_select %p182, %s18, 1
      %p184 = scmp.lt.s32.totalorder %s181, 1
      %s185 = scalar_select %p184, %s181, 1
      %s186 = smul.addr %s183, 2
      %s187 = sadd.s32 %s185, %s186
      %s188 = smul.addr %s187, 8
      %s189 = scalar_lea.vmem %s3, %s188
      %s190 = smul.u32 2, %s19
      %p191 = scmp.lt.s32.totalorder %s18, 1
      %s192 = scalar_select %p191, %s18, 1
      %p193 = scmp.lt.s32.totalorder %s190, 1
      %s194 = scalar_select %p193, %s190, 1
      %s195 = smul.addr %s192, 36
      %s196 = sadd.s32 %s194, %s195
      %s197 = smul.addr %s196, 4
      %s198 = scalar_lea.vmem %s0, %s197
      %s199 = smul.u32 2, %s19
      %s200 = smul.u32 2, %s19
      %p201 = scmp.lt.s32.totalorder %s18, 1
      %s202 = scalar_select %p201, %s18, 1
      %p203 = scmp.lt.s32.totalorder %s200, 1
      %s204 = scalar_select %p203, %s200, 1
      %s205 = smul.addr %s202, 2
      %s206 = sadd.s32 %s204, %s205
      %s207 = smul.addr %s206, 8
      %s208 = scalar_lea.vmem %s3, %s207
      %s209 = smul.u32 2, %s19
      %v211 = vld [vmem:[%s1] sm:$0xff]
      %v212 = vld [vmem:[%s198] sm:$0xff]
      %v213 = vld [vmem:[%s198 + $0x8] sm:$0xff]
      %v214 = vld [vmem:[%s198 + $0x10] sm:$0xff]
      %v215 = vld [vmem:[%s198 + $0x18] sm:$0xff]
      %v216 = vld [vmem:[%s198 + $0x20] sm:$0xff]
      %v217 = vld [vmem:[%s198 + $0x28] sm:$0xff]
      %v218 = vld [vmem:[%s198 + $0x30] sm:$0xff]
      %v219 = vld [vmem:[%s198 + $0x38] sm:$0xff]
      %v220 = vld [vmem:[%s198 + $0x40] sm:$0xff]
      %v221 = vld [vmem:[%s198 + $0x48] sm:$0xff]
      %v222 = vld [vmem:[%s198 + $0x50] sm:$0xff]
      %v223 = vld [vmem:[%s198 + $0x58] sm:$0xff]
      %v224 = vld [vmem:[%s198 + $0x60] sm:$0xff]
      %v225 = vld [vmem:[%s198 + $0x68] sm:$0xff]
      %v226 = vld [vmem:[%s198 + $0x70] sm:$0xff]
      %v227 = vld [vmem:[%s198 + $0x78] sm:$0xff]
      %v228 = vld [vmem:[%s198 + $0x80] sm:$0xff]
      %v229 = vld [vmem:[%s198 + $0x88] sm:$0xff]
      %v230 = vld [vmem:[%s2] sm:$0xff]
      %232 = vset.pattern.permute.xlu0 0
      %233 = vperm.xlu0 %232, %v230
      %v234 = vpop.permute.xlu0 %233
      %v237 = vunpack.c.l.b16 %v211
      %v238 = vunpack.c.h.b16 %v211
      %v239 = vpack.c.b16 %v237, %v237
      %v240 = vpack.c.b16 %v238, %v238
      %v260 = vunpack.c.l.b16 %v212
      %v261 = vunpack.c.h.b16 %v212
      %v262 = vunpack.c.l.b16 %v213
      %v263 = vunpack.c.h.b16 %v213
      %v264 = vunpack.c.l.b16 %v214
      %v265 = vunpack.c.h.b16 %v214
      %v266 = vunpack.c.l.b16 %v215
      %v267 = vunpack.c.h.b16 %v215
      %v268 = vunpack.c.l.b16 %v216
      %v269 = vunpack.c.h.b16 %v216
      %v270 = vunpack.c.l.b16 %v217
      %v271 = vunpack.c.h.b16 %v217
      %v272 = vunpack.c.l.b16 %v218
      %v273 = vunpack.c.h.b16 %v218
      %v274 = vunpack.c.l.b16 %v219
      %v275 = vunpack.c.h.b16 %v219
      %v276 = vunpack.c.l.b16 %v220
      %v277 = vunpack.c.h.b16 %v220
      %v278 = vunpack.c.l.b16 %v221
      %v279 = vunpack.c.h.b16 %v221
      %v280 = vunpack.c.l.b16 %v222
      %v281 = vunpack.c.h.b16 %v222
      %v282 = vunpack.c.l.b16 %v223
      %v283 = vunpack.c.h.b16 %v223
      %v284 = vunpack.c.l.b16 %v224
      %v285 = vunpack.c.h.b16 %v224
      %v286 = vunpack.c.l.b16 %v225
      %v287 = vunpack.c.h.b16 %v225
      %v288 = vunpack.c.l.b16 %v226
      %v289 = vunpack.c.h.b16 %v226
      %v290 = vunpack.c.l.b16 %v227
      %v291 = vunpack.c.h.b16 %v227
      %v292 = vunpack.c.l.b16 %v228
      %v293 = vunpack.c.h.b16 %v228
      %v294 = vunpack.c.l.b16 %v229
      %v295 = vunpack.c.h.b16 %v229
      %v296 = vpack.c.b16 %v262, %v260
      %v297 = vpack.c.b16 %v263, %v261
      %v298 = vpack.c.b16 %v266, %v264
      %v299 = vpack.c.b16 %v267, %v265
      %v300 = vpack.c.b16 %v270, %v268
      %v301 = vpack.c.b16 %v271, %v269
      %v302 = vpack.c.b16 %v274, %v272
      %v303 = vpack.c.b16 %v275, %v273
      %v304 = vpack.c.b16 %v278, %v276
      %v305 = vpack.c.b16 %v279, %v277
      %v306 = vpack.c.b16 %v282, %v280
      %v307 = vpack.c.b16 %v283, %v281
      %v308 = vpack.c.b16 %v286, %v284
      %v309 = vpack.c.b16 %v287, %v285
      %v310 = vpack.c.b16 %v290, %v288
      %v311 = vpack.c.b16 %v291, %v289
      %v312 = vpack.c.b16 %v294, %v292
      %v313 = vpack.c.b16 %v295, %v293
      %vm332 = vcmask 130048
      %v334 = vsel %vm332, %v240, 0
      %336 = vmatprep.subr.bf16.mxu0 %v297
      %337 = vmatpush1.bf16.msra.mxu0 %v296
      %338 = vmatprep.subr.bf16.mxu0 %v299
      %339 = vmatpush1.bf16.msra.mxu0 %v298
      %340 = vmatprep.subr.bf16.mxu0 %v301
      %341 = vmatpush1.bf16.msra.mxu0 %v300
      %342 = vmatprep.subr.bf16.mxu0 %v303
      %343 = vmatpush1.bf16.msra.mxu0 %v302
      %344 = vmatprep.subr.bf16.mxu0 %v305
      %345 = vmatpush1.bf16.msra.mxu0 %v304
      %346 = vmatprep.subr.bf16.mxu0 %v307
      %347 = vmatpush1.bf16.msra.mxu0 %v306
      %348 = vmatprep.subr.bf16.mxu0 %v309
      %349 = vmatpush1.bf16.msra.mxu0 %v308
      %350 = vmatprep.subr.bf16.mxu0 %v311
      %351 = vmatpush1.bf16.msra.mxu0 %v310
      %352 = vmatprep.subr.bf16.mxu0 %v313
      %353 = vmatpush1.bf16.msra.mxu0 %v312
      %354 = vmatprep.subr.bf16.mxu0 0
      %355 = vmatpush1.bf16.msra.mxu0 0
      %356 = vmatprep.subr.bf16.mxu0 0
      %357 = vmatpush1.bf16.msra.mxu0 0
      %358 = vmatprep.subr.bf16.mxu0 0
      %359 = vmatpush1.bf16.msra.mxu0 0
      %360 = vmatprep.subr.bf16.mxu0 0
      %361 = vmatpush1.bf16.msra.mxu0 0
      %362 = vmatprep.subr.bf16.mxu0 0
      %363 = vmatpush1.bf16.msra.mxu0 0
      %364 = vmatprep.subr.bf16.mxu0 0
      %365 = vmatpush1.bf16.msra.mxu0 0
      %366 = vmatprep.subr.bf16.mxu0 0
      %367 = vmatpush1.bf16.msra.mxu0 0
      %368 = vmatprep.mubr.bf16.mxu0 %v334
      %369 = vmatmul.mubr.bf16.gmra.mrb[0].mxu0 %v239
      %v370 = vpop.f32.mrb[0].mxu0
      %v371 = vadd.f32 %v234, %v370
      %v372 = vpop.f32.mrb[0].mxu0
      %v373 = vadd.f32 %v234, %v372
      %v374 = vpop.f32.mrb[0].mxu0
      %v375 = vpop.f32.mrb[0].mxu0
      %376 = vdwg.mxu0
      %vm377 = vcmp.ge.f32.partialorder %v371, 0.0
      %vm378 = vcmp.ge.f32.partialorder %v373, 0.0
      %v379 = vmul.f32 %v371, 0.2
      %v380 = vmul.f32 %v373, 0.2
      %v381 = vsel %vm377, %v371, %v379
      %v382 = vsel %vm378, %v373, %v380
      %383 = vst [vmem:[%s208] sm:$0xff] %v381
      %384 = vst [vmem:[%s208 + $0x8] sm:$0xff] %v382
      %s385 = smul.u32 2, %s19
      %p386 = scmp.lt.s32.totalorder %s18, 1
      %s387 = scalar_select %p386, %s18, 1
      %p388 = scmp.lt.s32.totalorder %s385, 1
      %s389 = scalar_select %p388, %s385, 1
      %s390 = smul.addr %s387, 2
      %s391 = sadd.s32 %s389, %s390
      %s392 = smul.addr %s391, 8
      %s393 = scalar_lea.vmem %s3, %s392
      // Predicated region
      $region33: #{sgn_forward.36} parent=31 // pred_check
        %p394 = pneg %p116
      $region34: #{sgn_forward.36} parent=31 // pred_check_branch
        %396 = sbr.rel (%p394) target = $region36
      $region35: #{sgn_forward.36} parent=31 // pred_region
        %s397 = smul.u32 2, %s19
      $region36: #{sgn_forward.36} parent=31 // pred_fallthru
        _
    $region32: #{sgn_forward.36} parent=5 // pred_fallthru
      _
    %p398 = scmp.le.s32.totalorder 2, %s9
    // Predicated region
    $region37: #{sgn_forward.36} parent=5 // pred_check
      %p399 = pneg %p398
    $region38: #{sgn_forward.36} parent=5 // pred_check_branch
      %401 = sbr.rel (%p399) target = $region40
    $region39: #{sgn_forward.36} parent=5 // pred_region
      %s402 = ssub.s32 %s9, 2
      // Predicated region
      $region41: #{sgn_forward.36} parent=39 // pred_check
        %p403 = pneg %p122
      $region42: #{sgn_forward.36} parent=39 // pred_check_branch
        %405 = sbr.rel (%p403) target = $region44
      $region43: #{sgn_forward.36} parent=39 // pred_region
        %s406 = smul.u32 2, %s21
        %p407 = scmp.lt.s32.totalorder %s20, 1
        %s408 = scalar_select %p407, %s20, 1
        %p409 = scmp.lt.s32.totalorder %s406, 1
        %s410 = scalar_select %p409, %s406, 1
        %s411 = smul.addr %s408, 2
        %s412 = sadd.s32 %s410, %s411
        %s413 = smul.addr %s412, 8
        %s414 = scalar_lea.vmem %s3, %s413
      $region44: #{sgn_forward.36} parent=39 // pred_fallthru
        _
    $region40: #{sgn_forward.36} parent=5 // pred_fallthru
      _
  $region6: #{sgn_forward.36} parent=0 // loop_footer
    %s13 = sadd.s32 1, %s9
  $region7: #{sgn_forward.36} parent=0 // loop_footer_branch
    %8 = sbr.rel target = $region3
  $region8: #{sgn_forward.36} parent=0 // loop_exit
    _

// kernel: sgn_forward.37
$region0: #{sgn_forward.37}
  #allocation0 [shape = 'u32[]', space=smem, size = 0x4, offset = 0x4, fixed_abs, tag = 'smem constant byte address 0x4 - core index']
  #allocation1 [shape = 'u32[144,128]{1,0:T(1,128)}', space=vmem, size = 0x12000, scoped, tag = 'internal scratch']
  %s0 = inlined_call_operand.vmem [shape: bf16[2,216,256], index: 0, kind: input, shape index: {}]
  %s1 = inlined_call_operand.vmem [shape: bf16[8,216], index: 1, kind: input, shape index: {}]
  %s2 = inlined_call_operand.vmem [shape: f32[8,1], index: 2, kind: input, shape index: {}]
  %s3 = inlined_call_operand.vmem [shape: f32[2,8,256], index: 3, kind: output, shape index: {}]
  %s4 = sld [smem:[#allocation0]]
  $region45: #{sgn_forward.37} parent=0
    _
  %s6 = ssub.s32 1, %s4
  %s7 = scalar_select 0, %s6, %s4
  loop: start=0, step=1, limit=4
  $region2: #{sgn_forward.37} parent=0 // loop_pre_header
    _
  $region3: #{sgn_forward.37} parent=0 // loop_header
    %s9 = sphi 0, %s13
    %p10 = scmp.ge.s32.totalorder %s9, 4
    %s16 = sphi 0, %s28
    %s17 = sphi 0, %s24
    %s18 = sphi 0, %s16
    %s19 = sphi 0, %s17
    %s20 = sphi 0, %s18
    %s21 = sphi 0, %s19
    %s33 = sphi 0, %s35
    %s36 = sphi 0, %s33
    %s37 = sphi 0, %s36
    %s53 = sphi 0, %s37
    %s57 = sphi 0, %s57
    %s59 = sphi 0, %s57
    %s60 = sphi 0, %s59
    %s74 = sphi 0, %s60
    %s78 = sphi 0, %s78
    %s80 = sphi 0, %s78
    %s81 = sphi 0, %s80
    %s95 = sphi 0, %s81
    %s103 = sphi 0, %s105
    %s106 = sphi 0, %s103
    %s107 = sphi 0, %s106
    %s123 = sphi 0, %s107
  $region4: #{sgn_forward.37} parent=0 // loop_header_branch
    %12 = sbr.rel (%p10) target = $region8
  $region5: #{sgn_forward.37} parent=0 // loop_body
    %s14 = ssub.s32 %s9, 1
    %s15 = ssub.s32 %s9, 2
    %s22 = sadd.s32 1, %s17
    %p23 = scmp.ge.s32.totalorder %s22, 1
    %s24 = scalar_select %p23, 0, %s22
    %s25 = sadd.s32 1, %s16
    %s26 = scalar_select %p23, %s25, %s16
    %p27 = scmp.ge.s32.totalorder %s26, 2
    %s28 = scalar_select %p27, 0, %s26
    %s29 = ssub.s32 %s16, %s28
    %s30 = ssub.s32 %s17, %s24
    %s31 = sor.u32 %s29, %s30
    %p32 = scmp.eq.s32.totalorder %s31, 0
    %s34 = sadd.s32 %s33, 1
    %s35 = scalar_select %p32, %s33, %s34
    %p38 = pneg %p32
    %p39 = scmp.eq.s32.totalorder %s9, 1
    %p40 = por %p38, %p39
    %p41 = scmp.ne.s32.totalorder %s33, %s36
    %p42 = scmp.eq.s32.totalorder %s9, 0
    %p43 = por %p41, %p42
    %p44 = scmp.ne.s32.totalorder %s33, %s36
    %p45 = scmp.eq.s32.totalorder %s14, 1
    %p46 = por %p44, %p45
    %p47 = scmp.ne.s32.totalorder %s36, %s37
    %p48 = scmp.eq.s32.totalorder %s14, 0
    %p49 = por %p47, %p48
    %p50 = scmp.ne.s32.totalorder %s36, %s37
    %p51 = scmp.eq.s32.totalorder %s15, 1
    %p52 = por %p50, %p51
    %p54 = scmp.ne.s32.totalorder %s37, %s53
    %p55 = scmp.eq.s32.totalorder %s15, 0
    %p56 = por %p54, %p55
    %s58 = sadd.s32 %s57, 1
    %p61 = scmp.eq.s32.totalorder %s9, 1
    %p62 = scmp.ne.s32.totalorder %s57, %s59
    %p63 = scmp.eq.s32.totalorder %s9, 0
    %p64 = por %p62, %p63
    %p65 = scmp.ne.s32.totalorder %s57, %s59
    %p66 = scmp.eq.s32.totalorder %s14, 1
    %p67 = por %p65, %p66
    %p68 = scmp.ne.s32.totalorder %s59, %s60
    %p69 = scmp.eq.s32.totalorder %s14, 0
    %p70 = por %p68, %p69
    %p71 = scmp.ne.s32.totalorder %s59, %s60
    %p72 = scmp.eq.s32.totalorder %s15, 1
    %p73 = por %p71, %p72
    %p75 = scmp.ne.s32.totalorder %s60, %s74
    %p76 = scmp.eq.s32.totalorder %s15, 0
    %p77 = por %p75, %p76
    %s79 = sadd.s32 %s78, 1
    %p82 = scmp.eq.s32.totalorder %s9, 1
    %p83 = scmp.ne.s32.totalorder %s78, %s80
    %p84 = scmp.eq.s32.totalorder %s9, 0
    %p85 = por %p83, %p84
    %p86 = scmp.ne.s32.totalorder %s78, %s80
    %p87 = scmp.eq.s32.totalorder %s14, 1
    %p88 = por %p86, %p87
    %p89 = scmp.ne.s32.totalorder %s80, %s81
    %p90 = scmp.eq.s32.totalorder %s14, 0
    %p91 = por %p89, %p90
    %p92 = scmp.ne.s32.totalorder %s80, %s81
    %p93 = scmp.eq.s32.totalorder %s15, 1
    %p94 = por %p92, %p93
    %p96 = scmp.ne.s32.totalorder %s81, %s95
    %p97 = scmp.eq.s32.totalorder %s15, 0
    %p98 = por %p96, %p97
    %s99 = ssub.s32 %s16, %s28
    %s100 = ssub.s32 %s17, %s24
    %s101 = sor.u32 %s99, %s100
    %p102 = scmp.eq.s32.totalorder %s101, 0
    %s104 = sadd.s32 %s103, 1
    %s105 = scalar_select %p102, %s103, %s104
    %p108 = pneg %p102
    %p109 = scmp.eq.s32.totalorder %s9, 1
    %p110 = por %p108, %p109
    %p111 = scmp.ne.s32.totalorder %s103, %s106
    %p112 = scmp.eq.s32.totalorder %s9, 0
    %p113 = por %p111, %p112
    %p114 = scmp.ne.s32.totalorder %s103, %s106
    %p115 = scmp.eq.s32.totalorder %s14, 1
    %p116 = por %p114, %p115
    %p117 = scmp.ne.s32.totalorder %s106, %s107
    %p118 = scmp.eq.s32.totalorder %s14, 0
    %p119 = por %p117, %p118
    %p120 = scmp.ne.s32.totalorder %s106, %s107
    %p121 = scmp.eq.s32.totalorder %s15, 1
    %p122 = por %p120, %p121
    %p124 = scmp.ne.s32.totalorder %s107, %s123
    %p125 = scmp.eq.s32.totalorder %s15, 0
    %p126 = por %p124, %p125
    %p127 = scmp.le.s32.totalorder 1, %s9
    %p128 = scmp.lt.s32.totalorder %s9, 3
    %p129 = pnand %p127, %p128
    %p130 = pneg %p129
    // Predicated region
    $region9: #{sgn_forward.37} parent=5 // pred_check
      _
    $region10: #{sgn_forward.37} parent=5 // pred_check_branch
      %132 = sbr.rel (%p129) target = $region12
    $region11: #{sgn_forward.37} parent=5 // pred_region
      %s133 = ssub.s32 %s9, 1
      // Predicated region
      $region13: #{sgn_forward.37} parent=11 // pred_check
        %p134 = pneg %p70
      $region14: #{sgn_forward.37} parent=11 // pred_check_branch
        %136 = sbr.rel (%p134) target = $region16
      $region15: #{sgn_forward.37} parent=11 // pred_region
        _
      $region16: #{sgn_forward.37} parent=11 // pred_fallthru
        _
      // Predicated region
      $region17: #{sgn_forward.37} parent=11 // pred_check
        %p137 = pneg %p91
      $region18: #{sgn_forward.37} parent=11 // pred_check_branch
        %139 = sbr.rel (%p137) target = $region20
      $region19: #{sgn_forward.37} parent=11 // pred_region
        _
      $region20: #{sgn_forward.37} parent=11 // pred_fallthru
        _
    $region12: #{sgn_forward.37} parent=5 // pred_fallthru
      _
    %p140 = scmp.lt.s32.totalorder %s9, 2
    // Predicated region
    $region21: #{sgn_forward.37} parent=5 // pred_check
      %p141 = pneg %p140
    $region22: #{sgn_forward.37} parent=5 // pred_check_branch
      %143 = sbr.rel (%p141) target = $region24
    $region23: #{sgn_forward.37} parent=5 // pred_region
      // Predicated region
      $region25: #{sgn_forward.37} parent=23 // pred_check
        %p144 = pneg %p43
      $region26: #{sgn_forward.37} parent=23 // pred_check_branch
        %146 = sbr.rel (%p144) target = $region28
      $region27: #{sgn_forward.37} parent=23 // pred_region
        %s147 = smul.u32 2, %s17
        %p148 = scmp.lt.s32.totalorder %s16, 1
        %s149 = scalar_select %p148, %s16, 1
        %p150 = scmp.lt.s32.totalorder %s147, 1
        %s151 = scalar_select %p150, %s147, 1
        %s152 = smul.addr %s149, 54
        %s153 = sadd.s32 %s151, %s152
        %s154 = smul.addr %s153, 4
        %s155 = scalar_lea.vmem %s0, %s154
        %s156 = smul.u32 2, %s17
      $region28: #{sgn_forward.37} parent=23 // pred_fallthru
        _
    $region24: #{sgn_forward.37} parent=5 // pred_fallthru
      _
    %p157 = scmp.le.s32.totalorder 1, %s9
    %p158 = scmp.lt.s32.totalorder %s9, 3
    %p159 = pnand %p157, %p158
    %p160 = pneg %p159
    // Predicated region
    $region29: #{sgn_forward.37} parent=5 // pred_check
      _
    $region30: #{sgn_forward.37} parent=5 // pred_check_branch
      %162 = sbr.rel (%p159) target = $region32
    $region31: #{sgn_forward.37} parent=5 // pred_region
      %s163 = ssub.s32 %s9, 1
      %s164 = smul.u32 2, %s19
      %p165 = scmp.lt.s32.totalorder %s18, 1
      %s166 = scalar_select %p165, %s18, 1
      %p167 = scmp.lt.s32.totalorder %s164, 1
      %s168 = scalar_select %p167, %s164, 1
      %s169 = smul.addr %s166, 54
      %s170 = sadd.s32 %s168, %s169
      %s171 = smul.addr %s170, 4
      %s172 = scalar_lea.vmem %s0, %s171
      %p173 = pneg %p49
      %p174 = pneg %p46
      %p175 = pneg %p70
      %p176 = pneg %p67
      %p177 = pneg %p91
      %p178 = pneg %p88
      %p179 = pneg %p119
      %p180 = pneg %p116
      %s181 = smul.u32 2, %s19
      %p182 = scmp.lt.s32.totalorder %s18, 1
      %s183 = scalar_select %p182, %s18, 1
      %p184 = scmp.lt.s32.totalorder %s181, 1
      %s185 = scalar_select %p184, %s181, 1
      %s186 = smul.addr %s183, 2
      %s187 = sadd.s32 %s185, %s186
      %s188 = smul.addr %s187, 8
      %s189 = scalar_lea.vmem %s3, %s188
      %s190 = smul.u32 2, %s19
      %p191 = scmp.lt.s32.totalorder %s18, 1
      %s192 = scalar_select %p191, %s18, 1
      %p193 = scmp.lt.s32.totalorder %s190, 1
      %s194 = scalar_select %p193, %s190, 1
      %s195 = smul.addr %s192, 54
      %s196 = sadd.s32 %s194, %s195
      %s197 = smul.addr %s196, 4
      %s198 = scalar_lea.vmem %s0, %s197
      %s199 = smul.u32 2, %s19
      %s200 = smul.u32 2, %s19
      %p201 = scmp.lt.s32.totalorder %s18, 1
      %s202 = scalar_select %p201, %s18, 1
      %p203 = scmp.lt.s32.totalorder %s200, 1
      %s204 = scalar_select %p203, %s200, 1
      %s205 = smul.addr %s202, 2
      %s206 = sadd.s32 %s204, %s205
      %s207 = smul.addr %s206, 8
      %s208 = scalar_lea.vmem %s3, %s207
      %s209 = smul.u32 2, %s19
      %v211 = vld [vmem:[%s1] sm:$0xff]
      %v212 = vld [vmem:[%s198] sm:$0xff]
      %v213 = vld [vmem:[%s198 + $0x8] sm:$0xff]
      %v214 = vld [vmem:[%s198 + $0x10] sm:$0xff]
      %v215 = vld [vmem:[%s198 + $0x18] sm:$0xff]
      %v216 = vld [vmem:[%s198 + $0x20] sm:$0xff]
      %v217 = vld [vmem:[%s198 + $0x28] sm:$0xff]
      %v218 = vld [vmem:[%s198 + $0x30] sm:$0xff]
      %v219 = vld [vmem:[%s198 + $0x38] sm:$0xff]
      %v220 = vld [vmem:[%s198 + $0x40] sm:$0xff]
      %v221 = vld [vmem:[%s198 + $0x48] sm:$0xff]
      %v222 = vld [vmem:[%s198 + $0x50] sm:$0xff]
      %v223 = vld [vmem:[%s198 + $0x58] sm:$0xff]
      %v224 = vld [vmem:[%s198 + $0x60] sm:$0xff]
      %v225 = vld [vmem:[%s198 + $0x68] sm:$0xff]
      %v226 = vld [vmem:[%s198 + $0x70] sm:$0xff]
      %v227 = vld [vmem:[%s198 + $0x78] sm:$0xff]
      %v228 = vld [vmem:[%s198 + $0x80] sm:$0xff]
      %v229 = vld [vmem:[%s198 + $0x88] sm:$0xff]
      %v230 = vld [vmem:[%s198 + $0x90] sm:$0xff]
      %v231 = vld [vmem:[%s198 + $0x98] sm:$0xff]
      %v232 = vld [vmem:[%s198 + $0xa0] sm:$0xff]
      %v233 = vld [vmem:[%s198 + $0xa8] sm:$0xff]
      %v234 = vld [vmem:[%s198 + $0xb0] sm:$0xff]
      %v235 = vld [vmem:[%s198 + $0xb8] sm:$0xff]
      %v236 = vld [vmem:[%s198 + $0xc0] sm:$0xff]
      %v237 = vld [vmem:[%s198 + $0xc8] sm:$0xff]
      %v238 = vld [vmem:[%s198 + $0xd0] sm:$0xff]
      %v239 = vld [vmem:[%s2] sm:$0xff]
      %241 = vset.pattern.permute.xlu0 0
      %242 = vperm.xlu0 %241, %v239
      %v243 = vpop.permute.xlu0 %242
      %v246 = vunpack.c.l.b16 %v211
      %v247 = vunpack.c.h.b16 %v211
      %v248 = vpack.c.b16 %v246, %v246
      %v249 = vpack.c.b16 %v247, %v247
      %v278 = vunpack.c.l.b16 %v212
      %v279 = vunpack.c.h.b16 %v212
      %v280 = vunpack.c.l.b16 %v213
      %v281 = vunpack.c.h.b16 %v213
      %v282 = vunpack.c.l.b16 %v214
      %v283 = vunpack.c.h.b16 %v214
      %v284 = vunpack.c.l.b16 %v215
      %v285 = vunpack.c.h.b16 %v215
      %v286 = vunpack.c.l.b16 %v216
      %v287 = vunpack.c.h.b16 %v216
      %v288 = vunpack.c.l.b16 %v217
      %v289 = vunpack.c.h.b16 %v217
      %v290 = vunpack.c.l.b16 %v218
      %v291 = vunpack.c.h.b16 %v218
      %v292 = vunpack.c.l.b16 %v219
      %v293 = vunpack.c.h.b16 %v219
      %v294 = vunpack.c.l.b16 %v220
      %v295 = vunpack.c.h.b16 %v220
      %v296 = vunpack.c.l.b16 %v221
      %v297 = vunpack.c.h.b16 %v221
      %v298 = vunpack.c.l.b16 %v222
      %v299 = vunpack.c.h.b16 %v222
      %v300 = vunpack.c.l.b16 %v223
      %v301 = vunpack.c.h.b16 %v223
      %v302 = vunpack.c.l.b16 %v224
      %v303 = vunpack.c.h.b16 %v224
      %v304 = vunpack.c.l.b16 %v225
      %v305 = vunpack.c.h.b16 %v225
      %v306 = vunpack.c.l.b16 %v226
      %v307 = vunpack.c.h.b16 %v226
      %v308 = vunpack.c.l.b16 %v227
      %v309 = vunpack.c.h.b16 %v227
      %v310 = vunpack.c.l.b16 %v228
      %v311 = vunpack.c.h.b16 %v228
      %v312 = vunpack.c.l.b16 %v229
      %v313 = vunpack.c.h.b16 %v229
      %v314 = vunpack.c.l.b16 %v230
      %v315 = vunpack.c.h.b16 %v230
      %v316 = vunpack.c.l.b16 %v231
      %v317 = vunpack.c.h.b16 %v231
      %v318 = vunpack.c.l.b16 %v232
      %v319 = vunpack.c.h.b16 %v232
      %v320 = vunpack.c.l.b16 %v233
      %v321 = vunpack.c.h.b16 %v233
      %v322 = vunpack.c.l.b16 %v234
      %v323 = vunpack.c.h.b16 %v234
      %v324 = vunpack.c.l.b16 %v235
      %v325 = vunpack.c.h.b16 %v235
      %v326 = vunpack.c.l.b16 %v236
      %v327 = vunpack.c.h.b16 %v236
      %v328 = vunpack.c.l.b16 %v237
      %v329 = vunpack.c.h.b16 %v237
      %v330 = vunpack.c.l.b16 %v238
      %v331 = vunpack.c.h.b16 %v238
      %v332 = vpack.c.b16 %v280, %v278
      %v333 = vpack.c.b16 %v281, %v279
      %v334 = vpack.c.b16 %v284, %v282
      %v335 = vpack.c.b16 %v285, %v283
      %v336 = vpack.c.b16 %v288, %v286
      %v337 = vpack.c.b16 %v289, %v287
      %v338 = vpack.c.b16 %v292, %v290
      %v339 = vpack.c.b16 %v293, %v291
      %v340 = vpack.c.b16 %v296, %v294
      %v341 = vpack.c.b16 %v297, %v295
      %v342 = vpack.c.b16 %v300, %v298
      %v343 = vpack.c.b16 %v301, %v299
      %v344 = vpack.c.b16 %v304, %v302
      %v345 = vpack.c.b16 %v305, %v303
      %v346 = vpack.c.b16 %v308, %v306
      %v347 = vpack.c.b16 %v309, %v307
      %v348 = vpack.c.b16 %v312, %v310
      %v349 = vpack.c.b16 %v313, %v311
      %v350 = vpack.c.b16 %v316, %v314
      %v351 = vpack.c.b16 %v317, %v315
      %v352 = vpack.c.b16 %v320, %v318
      %v353 = vpack.c.b16 %v321, %v319
      %v354 = vpack.c.b16 %v324, %v322
      %v355 = vpack.c.b16 %v325, %v323
      %v356 = vpack.c.b16 %v328, %v326
      %v357 = vpack.c.b16 %v329, %v327
      %v358 = vpack.c.b16 %v330, %v330
      %v359 = vpack.c.b16 %v331, %v331
      %vm386 = vcmask 719872
      %v388 = vsel %vm386, %v249, 0
      %vm390 = vcmask 1043456
      %v392 = vsel %vm390, %v358, 0
      %v395 = vsel %vm390, %v359, 0
      %397 = vmatprep.subr.bf16.mxu0 %v333
      %398 = vmatpush1.bf16.msra.mxu0 %v332
      %399 = vmatprep.subr.bf16.mxu0 %v335
      %400 = vmatpush1.bf16.msra.mxu0 %v334
      %401 = vmatprep.subr.bf16.mxu0 %v337
      %402 = vmatpush1.bf16.msra.mxu0 %v336
      %403 = vmatprep.subr.bf16.mxu0 %v339
      %404 = vmatpush1.bf16.msra.mxu0 %v338
      %405 = vmatprep.subr.bf16.mxu0 %v341
      %406 = vmatpush1.bf16.msra.mxu0 %v340
      %407 = vmatprep.subr.bf16.mxu0 %v343
      %408 = vmatpush1.bf16.msra.mxu0 %v342
      %409 = vmatprep.subr.bf16.mxu0 %v345
      %410 = vmatpush1.bf16.msra.mxu0 %v344
      %411 = vmatprep.subr.bf16.mxu0 %v347
      %412 = vmatpush1.bf16.msra.mxu0 %v346
      %413 = vmatprep.subr.bf16.mxu0 %v349
      %414 = vmatpush1.bf16.msra.mxu0 %v348
      %415 = vmatprep.subr.bf16.mxu0 %v351
      %416 = vmatpush1.bf16.msra.mxu0 %v350
      %417 = vmatprep.subr.bf16.mxu0 %v353
      %418 = vmatpush1.bf16.msra.mxu0 %v352
      %419 = vmatprep.subr.bf16.mxu0 %v355
      %420 = vmatpush1.bf16.msra.mxu0 %v354
      %421 = vmatprep.subr.bf16.mxu0 %v357
      %422 = vmatpush1.bf16.msra.mxu0 %v356
      %423 = vmatprep.subr.bf16.mxu0 %v395
      %424 = vmatpush1.bf16.msra.mxu0 %v392
      %425 = vmatprep.subr.bf16.mxu0 0
      %426 = vmatpush1.bf16.msra.mxu0 0
      %427 = vmatprep.subr.bf16.mxu0 0
      %428 = vmatpush1.bf16.msra.mxu0 0
      %429 = vmatprep.mubr.bf16.mxu0 %v388
      %430 = vmatmul.mubr.bf16.gmra.mrb[0].mxu0 %v248
      %v431 = vpop.f32.mrb[0].mxu0
      %v432 = vadd.f32 %v243, %v431
      %v433 = vpop.f32.mrb[0].mxu0
      %v434 = vadd.f32 %v243, %v433
      %v435 = vpop.f32.mrb[0].mxu0
      %v436 = vpop.f32.mrb[0].mxu0
      %437 = vdwg.mxu0
      %vm438 = vcmp.ge.f32.partialorder %v432, 0.0
      %vm439 = vcmp.ge.f32.partialorder %v434, 0.0
      %v440 = vmul.f32 %v432, 0.2
      %v441 = vmul.f32 %v434, 0.2
      %v442 = vsel %vm438, %v432, %v440
      %v443 = vsel %vm439, %v434, %v441
      %444 = vst [vmem:[%s208] sm:$0xff] %v442
      %445 = vst [vmem:[%s208 + $0x8] sm:$0xff] %v443
      %s446 = smul.u32 2, %s19
      %p447 = scmp.lt.s32.totalorder %s18, 1
      %s448 = scalar_select %p447, %s18, 1
      %p449 = scmp.lt.s32.totalorder %s446, 1
      %s450 = scalar_select %p449, %s446, 1
      %s451 = smul.addr %s448, 2
      %s452 = sadd.s32 %s450, %s451
      %s453 = smul.addr %s452, 8
      %s454 = scalar_lea.vmem %s3, %s453
      // Predicated region
      $region33: #{sgn_forward.37} parent=31 // pred_check
        %p455 = pneg %p116
      $region34: #{sgn_forward.37} parent=31 // pred_check_branch
        %457 = sbr.rel (%p455) target = $region36
      $region35: #{sgn_forward.37} parent=31 // pred_region
        %s458 = smul.u32 2, %s19
      $region36: #{sgn_forward.37} parent=31 // pred_fallthru
        _
    $region32: #{sgn_forward.37} parent=5 // pred_fallthru
      _
    %p459 = scmp.le.s32.totalorder 2, %s9
    // Predicated region
    $region37: #{sgn_forward.37} parent=5 // pred_check
      %p460 = pneg %p459
    $region38: #{sgn_forward.37} parent=5 // pred_check_branch
      %462 = sbr.rel (%p460) target = $region40
    $region39: #{sgn_forward.37} parent=5 // pred_region
      %s463 = ssub.s32 %s9, 2
      // Predicated region
      $region41: #{sgn_forward.37} parent=39 // pred_check
        %p464 = pneg %p122
      $region42: #{sgn_forward.37} parent=39 // pred_check_branch
        %466 = sbr.rel (%p464) target = $region44
      $region43: #{sgn_forward.37} parent=39 // pred_region
        %s467 = smul.u32 2, %s21
        %p468 = scmp.lt.s32.totalorder %s20, 1
        %s469 = scalar_select %p468, %s20, 1
        %p470 = scmp.lt.s32.totalorder %s467, 1
        %s471 = scalar_select %p470, %s467, 1
        %s472 = smul.addr %s469, 2
        %s473 = sadd.s32 %s471, %s472
        %s474 = smul.addr %s473, 8
        %s475 = scalar_lea.vmem %s3, %s474
      $region44: #{sgn_forward.37} parent=39 // pred_fallthru
        _
    $region40: #{sgn_forward.37} parent=5 // pred_fallthru
      _
  $region6: #{sgn_forward.37} parent=0 // loop_footer
    %s13 = sadd.s32 1, %s9
  $region7: #{sgn_forward.37} parent=0 // loop_footer_branch
    %8 = sbr.rel target = $region3
  $region8: #{sgn_forward.37} parent=0 // loop_exit
    _

// kernel: sgn_forward.38
$region0: #{sgn_forward.38}
  #allocation0 [shape = 'u32[]', space=smem, size = 0x4, offset = 0x4, fixed_abs, tag = 'smem constant byte address 0x4 - core index']
  #allocation1 [shape = 'u32[144,128]{1,0:T(1,128)}', space=vmem, size = 0x12000, scoped, tag = 'internal scratch']
  %s0 = inlined_call_operand.vmem [shape: bf16[2,288,256], index: 0, kind: input, shape index: {}]
  %s1 = inlined_call_operand.vmem [shape: bf16[8,288], index: 1, kind: input, shape index: {}]
  %s2 = inlined_call_operand.vmem [shape: f32[8,1], index: 2, kind: input, shape index: {}]
  %s3 = inlined_call_operand.vmem [shape: f32[2,8,256], index: 3, kind: output, shape index: {}]
  %s4 = sld [smem:[#allocation0]]
  $region45: #{sgn_forward.38} parent=0
    _
  %s6 = ssub.s32 1, %s4
  %s7 = scalar_select 0, %s6, %s4
  loop: start=0, step=1, limit=4
  $region2: #{sgn_forward.38} parent=0 // loop_pre_header
    _
  $region3: #{sgn_forward.38} parent=0 // loop_header
    %s9 = sphi 0, %s13
    %p10 = scmp.ge.s32.totalorder %s9, 4
    %s16 = sphi 0, %s28
    %s17 = sphi 0, %s24
    %s18 = sphi 0, %s16
    %s19 = sphi 0, %s17
    %s20 = sphi 0, %s18
    %s21 = sphi 0, %s19
    %s33 = sphi 0, %s35
    %s36 = sphi 0, %s33
    %s37 = sphi 0, %s36
    %s53 = sphi 0, %s37
    %s57 = sphi 0, %s57
    %s59 = sphi 0, %s57
    %s60 = sphi 0, %s59
    %s74 = sphi 0, %s60
    %s78 = sphi 0, %s78
    %s80 = sphi 0, %s78
    %s81 = sphi 0, %s80
    %s95 = sphi 0, %s81
    %s103 = sphi 0, %s105
    %s106 = sphi 0, %s103
    %s107 = sphi 0, %s106
    %s123 = sphi 0, %s107
  $region4: #{sgn_forward.38} parent=0 // loop_header_branch
    %12 = sbr.rel (%p10) target = $region8
  $region5: #{sgn_forward.38} parent=0 // loop_body
    %s14 = ssub.s32 %s9, 1
    %s15 = ssub.s32 %s9, 2
    %s22 = sadd.s32 1, %s17
    %p23 = scmp.ge.s32.totalorder %s22, 1
    %s24 = scalar_select %p23, 0, %s22
    %s25 = sadd.s32 1, %s16
    %s26 = scalar_select %p23, %s25, %s16
    %p27 = scmp.ge.s32.totalorder %s26, 2
    %s28 = scalar_select %p27, 0, %s26
    %s29 = ssub.s32 %s16, %s28
    %s30 = ssub.s32 %s17, %s24
    %s31 = sor.u32 %s29, %s30
    %p32 = scmp.eq.s32.totalorder %s31, 0
    %s34 = sadd.s32 %s33, 1
    %s35 = scalar_select %p32, %s33, %s34
    %p38 = pneg %p32
    %p39 = scmp.eq.s32.totalorder %s9, 1
    %p40 = por %p38, %p39
    %p41 = scmp.ne.s32.totalorder %s33, %s36
    %p42 = scmp.eq.s32.totalorder %s9, 0
    %p43 = por %p41, %p42
    %p44 = scmp.ne.s32.totalorder %s33, %s36
    %p45 = scmp.eq.s32.totalorder %s14, 1
    %p46 = por %p44, %p45
    %p47 = scmp.ne.s32.totalorder %s36, %s37
    %p48 = scmp.eq.s32.totalorder %s14, 0
    %p49 = por %p47, %p48
    %p50 = scmp.ne.s32.totalorder %s36, %s37
    %p51 = scmp.eq.s32.totalorder %s15, 1
    %p52 = por %p50, %p51
    %p54 = scmp.ne.s32.totalorder %s37, %s53
    %p55 = scmp.eq.s32.totalorder %s15, 0
    %p56 = por %p54, %p55
    %s58 = sadd.s32 %s57, 1
    %p61 = scmp.eq.s32.totalorder %s9, 1
    %p62 = scmp.ne.s32.totalorder %s57, %s59
    %p63 = scmp.eq.s32.totalorder %s9, 0
    %p64 = por %p62, %p63
    %p65 = scmp.ne.s32.totalorder %s57, %s59
    %p66 = scmp.eq.s32.totalorder %s14, 1
    %p67 = por %p65, %p66
    %p68 = scmp.ne.s32.totalorder %s59, %s60
    %p69 = scmp.eq.s32.totalorder %s14, 0
    %p70 = por %p68, %p69
    %p71 = scmp.ne.s32.totalorder %s59, %s60
    %p72 = scmp.eq.s32.totalorder %s15, 1
    %p73 = por %p71, %p72
    %p75 = scmp.ne.s32.totalorder %s60, %s74
    %p76 = scmp.eq.s32.totalorder %s15, 0
    %p77 = por %p75, %p76
    %s79 = sadd.s32 %s78, 1
    %p82 = scmp.eq.s32.totalorder %s9, 1
    %p83 = scmp.ne.s32.totalorder %s78, %s80
    %p84 = scmp.eq.s32.totalorder %s9, 0
    %p85 = por %p83, %p84
    %p86 = scmp.ne.s32.totalorder %s78, %s80
    %p87 = scmp.eq.s32.totalorder %s14, 1
    %p88 = por %p86, %p87
    %p89 = scmp.ne.s32.totalorder %s80, %s81
    %p90 = scmp.eq.s32.totalorder %s14, 0
    %p91 = por %p89, %p90
    %p92 = scmp.ne.s32.totalorder %s80, %s81
    %p93 = scmp.eq.s32.totalorder %s15, 1
    %p94 = por %p92, %p93
    %p96 = scmp.ne.s32.totalorder %s81, %s95
    %p97 = scmp.eq.s32.totalorder %s15, 0
    %p98 = por %p96, %p97
    %s99 = ssub.s32 %s16, %s28
    %s100 = ssub.s32 %s17, %s24
    %s101 = sor.u32 %s99, %s100
    %p102 = scmp.eq.s32.totalorder %s101, 0
    %s104 = sadd.s32 %s103, 1
    %s105 = scalar_select %p102, %s103, %s104
    %p108 = pneg %p102
    %p109 = scmp.eq.s32.totalorder %s9, 1
    %p110 = por %p108, %p109
    %p111 = scmp.ne.s32.totalorder %s103, %s106
    %p112 = scmp.eq.s32.totalorder %s9, 0
    %p113 = por %p111, %p112
    %p114 = scmp.ne.s32.totalorder %s103, %s106
    %p115 = scmp.eq.s32.totalorder %s14, 1
    %p116 = por %p114, %p115
    %p117 = scmp.ne.s32.totalorder %s106, %s107
    %p118 = scmp.eq.s32.totalorder %s14, 0
    %p119 = por %p117, %p118
    %p120 = scmp.ne.s32.totalorder %s106, %s107
    %p121 = scmp.eq.s32.totalorder %s15, 1
    %p122 = por %p120, %p121
    %p124 = scmp.ne.s32.totalorder %s107, %s123
    %p125 = scmp.eq.s32.totalorder %s15, 0
    %p126 = por %p124, %p125
    %p127 = scmp.le.s32.totalorder 1, %s9
    %p128 = scmp.lt.s32.totalorder %s9, 3
    %p129 = pnand %p127, %p128
    %p130 = pneg %p129
    // Predicated region
    $region9: #{sgn_forward.38} parent=5 // pred_check
      _
    $region10: #{sgn_forward.38} parent=5 // pred_check_branch
      %132 = sbr.rel (%p129) target = $region12
    $region11: #{sgn_forward.38} parent=5 // pred_region
      %s133 = ssub.s32 %s9, 1
      // Predicated region
      $region13: #{sgn_forward.38} parent=11 // pred_check
        %p134 = pneg %p70
      $region14: #{sgn_forward.38} parent=11 // pred_check_branch
        %136 = sbr.rel (%p134) target = $region16
      $region15: #{sgn_forward.38} parent=11 // pred_region
        _
      $region16: #{sgn_forward.38} parent=11 // pred_fallthru
        _
      // Predicated region
      $region17: #{sgn_forward.38} parent=11 // pred_check
        %p137 = pneg %p91
      $region18: #{sgn_forward.38} parent=11 // pred_check_branch
        %139 = sbr.rel (%p137) target = $region20
      $region19: #{sgn_forward.38} parent=11 // pred_region
        _
      $region20: #{sgn_forward.38} parent=11 // pred_fallthru
        _
    $region12: #{sgn_forward.38} parent=5 // pred_fallthru
      _
    %p140 = scmp.lt.s32.totalorder %s9, 2
    // Predicated region
    $region21: #{sgn_forward.38} parent=5 // pred_check
      %p141 = pneg %p140
    $region22: #{sgn_forward.38} parent=5 // pred_check_branch
      %143 = sbr.rel (%p141) target = $region24
    $region23: #{sgn_forward.38} parent=5 // pred_region
      // Predicated region
      $region25: #{sgn_forward.38} parent=23 // pred_check
        %p144 = pneg %p43
      $region26: #{sgn_forward.38} parent=23 // pred_check_branch
        %146 = sbr.rel (%p144) target = $region28
      $region27: #{sgn_forward.38} parent=23 // pred_region
        %s147 = smul.u32 2, %s17
        %p148 = scmp.lt.s32.totalorder %s16, 1
        %s149 = scalar_select %p148, %s16, 1
        %p150 = scmp.lt.s32.totalorder %s147, 1
        %s151 = scalar_select %p150, %s147, 1
        %s152 = smul.addr %s149, 72
        %s153 = sadd.s32 %s151, %s152
        %s154 = smul.addr %s153, 4
        %s155 = scalar_lea.vmem %s0, %s154
        %s156 = smul.u32 2, %s17
      $region28: #{sgn_forward.38} parent=23 // pred_fallthru
        _
    $region24: #{sgn_forward.38} parent=5 // pred_fallthru
      _
    %p157 = scmp.le.s32.totalorder 1, %s9
    %p158 = scmp.lt.s32.totalorder %s9, 3
    %p159 = pnand %p157, %p158
    %p160 = pneg %p159
    // Predicated region
    $region29: #{sgn_forward.38} parent=5 // pred_check
      _
    $region30: #{sgn_forward.38} parent=5 // pred_check_branch
      %162 = sbr.rel (%p159) target = $region32
    $region31: #{sgn_forward.38} parent=5 // pred_region
      %s163 = ssub.s32 %s9, 1
      %s164 = smul.u32 2, %s19
      %p165 = scmp.lt.s32.totalorder %s18, 1
      %s166 = scalar_select %p165, %s18, 1
      %p167 = scmp.lt.s32.totalorder %s164, 1
      %s168 = scalar_select %p167, %s164, 1
      %s169 = smul.addr %s166, 72
      %s170 = sadd.s32 %s168, %s169
      %s171 = smul.addr %s170, 4
      %s172 = scalar_lea.vmem %s0, %s171
      %p173 = pneg %p49
      %p174 = pneg %p46
      %p175 = pneg %p70
      %p176 = pneg %p67
      %p177 = pneg %p91
      %p178 = pneg %p88
      %p179 = pneg %p119
      %p180 = pneg %p116
      %s181 = smul.u32 2, %s19
      %p182 = scmp.lt.s32.totalorder %s18, 1
      %s183 = scalar_select %p182, %s18, 1
      %p184 = scmp.lt.s32.totalorder %s181, 1
      %s185 = scalar_select %p184, %s181, 1
      %s186 = smul.addr %s183, 2
      %s187 = sadd.s32 %s185, %s186
      %s188 = smul.addr %s187, 8
      %s189 = scalar_lea.vmem %s3, %s188
      %s190 = smul.u32 2, %s19
      %p191 = scmp.lt.s32.totalorder %s18, 1
      %s192 = scalar_select %p191, %s18, 1
      %p193 = scmp.lt.s32.totalorder %s190, 1
      %s194 = scalar_select %p193, %s190, 1
      %s195 = smul.addr %s192, 72
      %s196 = sadd.s32 %s194, %s195
      %s197 = smul.addr %s196, 4
      %s198 = scalar_lea.vmem %s0, %s197
      %s199 = smul.u32 2, %s19
      %s200 = smul.u32 2, %s19
      %p201 = scmp.lt.s32.totalorder %s18, 1
      %s202 = scalar_select %p201, %s18, 1
      %p203 = scmp.lt.s32.totalorder %s200, 1
      %s204 = scalar_select %p203, %s200, 1
      %s205 = smul.addr %s202, 2
      %s206 = sadd.s32 %s204, %s205
      %s207 = smul.addr %s206, 8
      %s208 = scalar_lea.vmem %s3, %s207
      %s209 = smul.u32 2, %s19
      %v211 = vld [vmem:[%s1] sm:$0xff]
      %v212 = vld [vmem:[%s1 + $0x8] sm:$0xf]
      %v213 = vld [vmem:[%s198] sm:$0xff]
      %v214 = vld [vmem:[%s198 + $0x8] sm:$0xff]
      %v215 = vld [vmem:[%s198 + $0x10] sm:$0xff]
      %v216 = vld [vmem:[%s198 + $0x18] sm:$0xff]
      %v217 = vld [vmem:[%s198 + $0x20] sm:$0xff]
      %v218 = vld [vmem:[%s198 + $0x28] sm:$0xff]
      %v219 = vld [vmem:[%s198 + $0x30] sm:$0xff]
      %v220 = vld [vmem:[%s198 + $0x38] sm:$0xff]
      %v221 = vld [vmem:[%s198 + $0x40] sm:$0xff]
      %v222 = vld [vmem:[%s198 + $0x48] sm:$0xff]
      %v223 = vld [vmem:[%s198 + $0x50] sm:$0xff]
      %v224 = vld [vmem:[%s198 + $0x58] sm:$0xff]
      %v225 = vld [vmem:[%s198 + $0x60] sm:$0xff]
      %v226 = vld [vmem:[%s198 + $0x68] sm:$0xff]
      %v227 = vld [vmem:[%s198 + $0x70] sm:$0xff]
      %v228 = vld [vmem:[%s198 + $0x78] sm:$0xff]
      %v229 = vld [vmem:[%s198 + $0x80] sm:$0xff]
      %v230 = vld [vmem:[%s198 + $0x88] sm:$0xff]
      %v231 = vld [vmem:[%s198 + $0x90] sm:$0xff]
      %v232 = vld [vmem:[%s198 + $0x98] sm:$0xff]
      %v233 = vld [vmem:[%s198 + $0xa0] sm:$0xff]
      %v234 = vld [vmem:[%s198 + $0xa8] sm:$0xff]
      %v235 = vld [vmem:[%s198 + $0xb0] sm:$0xff]
      %v236 = vld [vmem:[%s198 + $0xb8] sm:$0xff]
      %v237 = vld [vmem:[%s198 + $0xc0] sm:$0xff]
      %v238 = vld [vmem:[%s198 + $0xc8] sm:$0xff]
      %v239 = vld [vmem:[%s198 + $0xd0] sm:$0xff]
      %v240 = vld [vmem:[%s198 + $0xd8] sm:$0xff]
      %v241 = vld [vmem:[%s198 + $0xe0] sm:$0xff]
      %v242 = vld [vmem:[%s198 + $0xe8] sm:$0xff]
      %v243 = vld [vmem:[%s198 + $0xf0] sm:$0xff]
      %v244 = vld [vmem:[%s198 + $0xf8] sm:$0xff]
      %v245 = vld [vmem:[%s198 + $0x100] sm:$0xff]
      %v246 = vld [vmem:[%s198 + $0x108] sm:$0xff]
      %v247 = vld [vmem:[%s198 + $0x110] sm:$0xff]
      %v248 = vld [vmem:[%s198 + $0x118] sm:$0xff]
      %v249 = vld [vmem:[%s2] sm:$0xff]
      %251 = vset.pattern.permute.xlu0 0
      %252 = vperm.xlu0 %251, %v249
      %v253 = vpop.permute.xlu0 %252
      %v257 = vunpack.c.l.b16 %v211
      %v258 = vunpack.c.h.b16 %v211
      %v259 = vunpack.c.l.b16 %v212
      %v260 = vpack.c.b16 %v257, %v257
      %v261 = vpack.c.b16 %v258, %v258
      %v262 = vpack.c.b16 %v259, %v259
      %v301 = vunpack.c.l.b16 %v213
      %v302 = vunpack.c.h.b16 %v213
      %v303 = vunpack.c.l.b16 %v214
      %v304 = vunpack.c.h.b16 %v214
      %v305 = vunpack.c.l.b16 %v215
      %v306 = vunpack.c.h.b16 %v215
      %v307 = vunpack.c.l.b16 %v216
      %v308 = vunpack.c.h.b16 %v216
      %v309 = vunpack.c.l.b16 %v217
      %v310 = vunpack.c.h.b16 %v217
      %v311 = vunpack.c.l.b16 %v218
      %v312 = vunpack.c.h.b16 %v218
      %v313 = vunpack.c.l.b16 %v219
      %v314 = vunpack.c.h.b16 %v219
      %v315 = vunpack.c.l.b16 %v220
      %v316 = vunpack.c.h.b16 %v220
      %v317 = vunpack.c.l.b16 %v221
      %v318 = vunpack.c.h.b16 %v221
      %v319 = vunpack.c.l.b16 %v222
      %v320 = vunpack.c.h.b16 %v222
      %v321 = vunpack.c.l.b16 %v223
      %v322 = vunpack.c.h.b16 %v223
      %v323 = vunpack.c.l.b16 %v224
      %v324 = vunpack.c.h.b16 %v224
      %v325 = vunpack.c.l.b16 %v225
      %v326 = vunpack.c.h.b16 %v225
      %v327 = vunpack.c.l.b16 %v226
      %v328 = vunpack.c.h.b16 %v226
      %v329 = vunpack.c.l.b16 %v227
      %v330 = vunpack.c.h.b16 %v227
      %v331 = vunpack.c.l.b16 %v228
      %v332 = vunpack.c.h.b16 %v228
      %v333 = vunpack.c.l.b16 %v229
      %v334 = vunpack.c.h.b16 %v229
      %v335 = vunpack.c.l.b16 %v230
      %v336 = vunpack.c.h.b16 %v230
      %v337 = vunpack.c.l.b16 %v231
      %v338 = vunpack.c.h.b16 %v231
      %v339 = vunpack.c.l.b16 %v232
      %v340 = vunpack.c.h.b16 %v232
      %v341 = vunpack.c.l.b16 %v233
      %v342 = vunpack.c.h.b16 %v233
      %v343 = vunpack.c.l.b16 %v234
      %v344 = vunpack.c.h.b16 %v234
      %v345 = vunpack.c.l.b16 %v235
      %v346 = vunpack.c.h.b16 %v235
      %v347 = vunpack.c.l.b16 %v236
      %v348 = vunpack.c.h.b16 %v236
      %v349 = vunpack.c.l.b16 %v237
      %v350 = vunpack.c.h.b16 %v237
      %v351 = vunpack.c.l.b16 %v238
      %v352 = vunpack.c.h.b16 %v238
      %v353 = vunpack.c.l.b16 %v239
      %v354 = vunpack.c.h.b16 %v239
      %v355 = vunpack.c.l.b16 %v240
      %v356 = vunpack.c.h.b16 %v240
      %v357 = vunpack.c.l.b16 %v241
      %v358 = vunpack.c.h.b16 %v241
      %v359 = vunpack.c.l.b16 %v242
      %v360 = vunpack.c.h.b16 %v242
      %v361 = vunpack.c.l.b16 %v243
      %v362 = vunpack.c.h.b16 %v243
      %v363 = vunpack.c.l.b16 %v244
      %v364 = vunpack.c.h.b16 %v244
      %v365 = vunpack.c.l.b16 %v245
      %v366 = vunpack.c.h.b16 %v245
      %v367 = vunpack.c.l.b16 %v246
      %v368 = vunpack.c.h.b16 %v246
      %v369 = vunpack.c.l.b16 %v247
      %v370 = vunpack.c.h.b16 %v247
      %v371 = vunpack.c.l.b16 %v248
      %v372 = vunpack.c.h.b16 %v248
      %v373 = vpack.c.b16 %v303, %v301
      %v374 = vpack.c.b16 %v304, %v302
      %v375 = vpack.c.b16 %v307, %v305
      %v376 = vpack.c.b16 %v308, %v306
      %v377 = vpack.c.b16 %v311, %v309
      %v378 = vpack.c.b16 %v312, %v310
      %v379 = vpack.c.b16 %v315, %v313
      %v380 = vpack.c.b16 %v316, %v314
      %v381 = vpack.c.b16 %v319, %v317
      %v382 = vpack.c.b16 %v320, %v318
      %v383 = vpack.c.b16 %v323, %v321
      %v384 = vpack.c.b16 %v324, %v322
      %v385 = vpack.c.b16 %v327, %v325
      %v386 = vpack.c.b16 %v328, %v326
      %v387 = vpack.c.b16 %v331, %v329
      %v388 = vpack.c.b16 %v332, %v330
      %v389 = vpack.c.b16 %v335, %v333
      %v390 = vpack.c.b16 %v336, %v334
      %v391 = vpack.c.b16 %v339, %v337
      %v392 = vpack.c.b16 %v340, %v338
      %v393 = vpack.c.b16 %v343, %v341
      %v394 = vpack.c.b16 %v344, %v342
      %v395 = vpack.c.b16 %v347, %v345
      %v396 = vpack.c.b16 %v348, %v346
      %v397 = vpack.c.b16 %v351, %v349
      %v398 = vpack.c.b16 %v352, %v350
      %v399 = vpack.c.b16 %v355, %v353
      %v400 = vpack.c.b16 %v356, %v354
      %v401 = vpack.c.b16 %v359, %v357
      %v402 = vpack.c.b16 %v360, %v358
      %v403 = vpack.c.b16 %v363, %v361
      %v404 = vpack.c.b16 %v364, %v362
      %v405 = vpack.c.b16 %v367, %v365
      %v406 = vpack.c.b16 %v368, %v366
      %v407 = vpack.c.b16 %v371, %v369
      %v408 = vpack.c.b16 %v372, %v370
      %vm445 = vcmask 261120
      %v447 = vsel %vm445, %v262, 0
      %449 = vmatprep.subr.bf16.mxu0 %v374
      %450 = vmatpush1.bf16.msra.mxu0 %v373
      %451 = vmatprep.subr.bf16.mxu0 %v376
      %452 = vmatpush1.bf16.msra.mxu0 %v375
      %453 = vmatprep.subr.bf16.mxu0 %v378
      %454 = vmatpush1.bf16.msra.mxu0 %v377
      %455 = vmatprep.subr.bf16.mxu0 %v380
      %456 = vmatpush1.bf16.msra.mxu0 %v379
      %457 = vmatprep.subr.bf16.mxu0 %v382
      %458 = vmatpush1.bf16.msra.mxu0 %v381
      %459 = vmatprep.subr.bf16.mxu0 %v384
      %460 = vmatpush1.bf16.msra.mxu0 %v383
      %461 = vmatprep.subr.bf16.mxu0 %v386
      %462 = vmatpush1.bf16.msra.mxu0 %v385
      %463 = vmatprep.subr.bf16.mxu0 %v388
      %464 = vmatpush1.bf16.msra.mxu0 %v387
      %465 = vmatprep.subr.bf16.mxu0 %v390
      %466 = vmatpush1.bf16.msra.mxu0 %v389
      %467 = vmatprep.subr.bf16.mxu0 %v392
      %468 = vmatpush1.bf16.msra.mxu0 %v391
      %469 = vmatprep.subr.bf16.mxu0 %v394
      %470 = vmatpush1.bf16.msra.mxu0 %v393
      %471 = vmatprep.subr.bf16.mxu0 %v396
      %472 = vmatpush1.bf16.msra.mxu0 %v395
      %473 = vmatprep.subr.bf16.mxu0 %v398
      %474 = vmatpush1.bf16.msra.mxu0 %v397
      %475 = vmatprep.subr.bf16.mxu0 %v400
      %476 = vmatpush1.bf16.msra.mxu0 %v399
      %477 = vmatprep.subr.bf16.mxu0 %v402
      %478 = vmatpush1.bf16.msra.mxu0 %v401
      %479 = vmatprep.subr.bf16.mxu0 %v404
      %480 = vmatpush1.bf16.msra.mxu0 %v403
      %481 = vmatprep.mubr.bf16.mxu0 %v261
      %482 = vmatmul.mubr.bf16.gmra.mrb[0].mxu0 %v260
      %v483 = vpop.f32.mrb[0].mxu0
      %v484 = vadd.f32 %v253, %v483
      %v485 = vpop.f32.mrb[0].mxu0
      %v486 = vadd.f32 %v253, %v485
      %v487 = vpop.f32.mrb[0].mxu0
      %v488 = vpop.f32.mrb[0].mxu0
      %489 = vdwg.mxu0
      %490 = vmatprep.subr.bf16.mxu0 %v406
      %491 = vmatpush1.bf16.msra.mxu0 %v405
      %492 = vmatprep.subr.bf16.mxu0 %v408
      %493 = vmatpush1.bf16.msra.mxu0 %v407
      %494 = vmatprep.subr.bf16.mxu0 0
      %495 = vmatpush1.bf16.msra.mxu0 0
      %496 = vmatprep.subr.bf16.mxu0 0
      %497 = vmatpush1.bf16.msra.mxu0 0
      %498 = vmatprep.subr.bf16.mxu0 0
      %499 = vmatpush1.bf16.msra.mxu0 0
      %500 = vmatprep.subr.bf16.mxu0 0
      %501 = vmatpush1.bf16.msra.mxu0 0
      %502 = vmatprep.subr.bf16.mxu0 0
      %503 = vmatpush1.bf16.msra.mxu0 0
      %504 = vmatprep.subr.bf16.mxu0 0
      %505 = vmatpush1.bf16.msra.mxu0 0
      %506 = vmatprep.subr.bf16.mxu0 0
      %507 = vmatpush1.bf16.msra.mxu0 0
      %508 = vmatprep.subr.bf16.mxu0 0
      %509 = vmatpush1.bf16.msra.mxu0 0
      %510 = vmatprep.subr.bf16.mxu0 0
      %511 = vmatpush1.bf16.msra.mxu0 0
      %512 = vmatprep.subr.bf16.mxu0 0
      %513 = vmatpush1.bf16.msra.mxu0 0
      %514 = vmatprep.subr.bf16.mxu0 0
      %515 = vmatpush1.bf16.msra.mxu0 0
      %516 = vmatprep.subr.bf16.mxu0 0
      %517 = vmatpush1.bf16.msra.mxu0 0
      %518 = vmatprep.subr.bf16.mxu0 0
      %519 = vmatpush1.bf16.msra.mxu0 0
      %520 = vmatprep.subr.bf16.mxu0 0
      %521 = vmatpush1.bf16.msra.mxu0 0
      %522 = vmatprep.mubr.bf16.mxu0 0
      %523 = vmatmul.mubr.bf16.gmra.mrb[0].mxu0 %v447
      %v524 = vpop.f32.mrb[0].mxu0
      %v525 = vadd.f32 %v484, %v524
      %v526 = vpop.f32.mrb[0].mxu0
      %v527 = vadd.f32 %v486, %v526
      %v528 = vpop.f32.mrb[0].mxu0
      %v529 = vpop.f32.mrb[0].mxu0
      %530 = vdwg.mxu0
      %vm531 = vcmp.ge.f32.partialorder %v525, 0.0
      %vm532 = vcmp.ge.f32.partialorder %v527, 0.0
      %v533 = vmul.f32 %v525, 0.2
      %v534 = vmul.f32 %v527, 0.2
      %v535 = vsel %vm531, %v525, %v533
      %v536 = vsel %vm532, %v527, %v534
      %537 = vst [vmem:[%s208] sm:$0xff] %v535
      %538 = vst [vmem:[%s208 + $0x8] sm:$0xff] %v536
      %s539 = smul.u32 2, %s19
      %p540 = scmp.lt.s32.totalorder %s18, 1
      %s541 = scalar_select %p540, %s18, 1
      %p542 = scmp.lt.s32.totalorder %s539, 1
      %s543 = scalar_select %p542, %s539, 1
      %s544 = smul.addr %s541, 2
      %s545 = sadd.s32 %s543, %s544
      %s546 = smul.addr %s545, 8
      %s547 = scalar_lea.vmem %s3, %s546
      // Predicated region
      $region33: #{sgn_forward.38} parent=31 // pred_check
        %p548 = pneg %p116
      $region34: #{sgn_forward.38} parent=31 // pred_check_branch
        %550 = sbr.rel (%p548) target = $region36
      $region35: #{sgn_forward.38} parent=31 // pred_region
        %s551 = smul.u32 2, %s19
      $region36: #{sgn_forward.38} parent=31 // pred_fallthru
        _
    $region32: #{sgn_forward.38} parent=5 // pred_fallthru
      _
    %p552 = scmp.le.s32.totalorder 2, %s9
    // Predicated region
    $region37: #{sgn_forward.38} parent=5 // pred_check
      %p553 = pneg %p552
    $region38: #{sgn_forward.38} parent=5 // pred_check_branch
      %555 = sbr.rel (%p553) target = $region40
    $region39: #{sgn_forward.38} parent=5 // pred_region
      %s556 = ssub.s32 %s9, 2
      // Predicated region
      $region41: #{sgn_forward.38} parent=39 // pred_check
        %p557 = pneg %p122
      $region42: #{sgn_forward.38} parent=39 // pred_check_branch
        %559 = sbr.rel (%p557) target = $region44
      $region43: #{sgn_forward.38} parent=39 // pred_region
        %s560 = smul.u32 2, %s21
        %p561 = scmp.lt.s32.totalorder %s20, 1
        %s562 = scalar_select %p561, %s20, 1
        %p563 = scmp.lt.s32.totalorder %s560, 1
        %s564 = scalar_select %p563, %s560, 1
        %s565 = smul.addr %s562, 2
        %s566 = sadd.s32 %s564, %s565
        %s567 = smul.addr %s566, 8
        %s568 = scalar_lea.vmem %s3, %s567
      $region44: #{sgn_forward.38} parent=39 // pred_fallthru
        _
    $region40: #{sgn_forward.38} parent=5 // pred_fallthru
      _
  $region6: #{sgn_forward.38} parent=0 // loop_footer
    %s13 = sadd.s32 1, %s9
  $region7: #{sgn_forward.38} parent=0 // loop_footer_branch
    %8 = sbr.rel target = $region3
  $region8: #{sgn_forward.38} parent=0 // loop_exit
    _

// kernel: sgn_forward.39
$region0: #{sgn_forward.39}
  #allocation0 [shape = 'u32[]', space=smem, size = 0x4, offset = 0x4, fixed_abs, tag = 'smem constant byte address 0x4 - core index']
  #allocation1 [shape = 'u32[144,128]{1,0:T(1,128)}', space=vmem, size = 0x12000, scoped, tag = 'internal scratch']
  %s0 = inlined_call_operand.vmem [shape: bf16[2,360,256], index: 0, kind: input, shape index: {}]
  %s1 = inlined_call_operand.vmem [shape: bf16[8,360], index: 1, kind: input, shape index: {}]
  %s2 = inlined_call_operand.vmem [shape: f32[8,1], index: 2, kind: input, shape index: {}]
  %s3 = inlined_call_operand.vmem [shape: f32[2,8,256], index: 3, kind: input, shape index: {}]
  %s4 = inlined_call_operand.vmem [shape: f32[2,8,256], index: 4, kind: output, shape index: {}]
  %s5 = sld [smem:[#allocation0]]
  $region49: #{sgn_forward.39} parent=0
    _
  %s7 = ssub.s32 1, %s5
  %s8 = scalar_select 0, %s7, %s5
  loop: start=0, step=1, limit=4
  $region2: #{sgn_forward.39} parent=0 // loop_pre_header
    _
  $region3: #{sgn_forward.39} parent=0 // loop_header
    %s10 = sphi 0, %s14
    %p11 = scmp.ge.s32.totalorder %s10, 4
    %s17 = sphi 0, %s29
    %s18 = sphi 0, %s25
    %s19 = sphi 0, %s17
    %s20 = sphi 0, %s18
    %s21 = sphi 0, %s19
    %s22 = sphi 0, %s20
    %s34 = sphi 0, %s36
    %s37 = sphi 0, %s34
    %s38 = sphi 0, %s37
    %s54 = sphi 0, %s38
    %s58 = sphi 0, %s58
    %s60 = sphi 0, %s58
    %s61 = sphi 0, %s60
    %s75 = sphi 0, %s61
    %s79 = sphi 0, %s79
    %s81 = sphi 0, %s79
    %s82 = sphi 0, %s81
    %s96 = sphi 0, %s82
    %s104 = sphi 0, %s106
    %s107 = sphi 0, %s104
    %s108 = sphi 0, %s107
    %s124 = sphi 0, %s108
    %s132 = sphi 0, %s134
    %s135 = sphi 0, %s132
    %s136 = sphi 0, %s135
    %s152 = sphi 0, %s136
  $region4: #{sgn_forward.39} parent=0 // loop_header_branch
    %13 = sbr.rel (%p11) target = $region8
  $region5: #{sgn_forward.39} parent=0 // loop_body
    %s15 = ssub.s32 %s10, 1
    %s16 = ssub.s32 %s10, 2
    %s23 = sadd.s32 1, %s18
    %p24 = scmp.ge.s32.totalorder %s23, 1
    %s25 = scalar_select %p24, 0, %s23
    %s26 = sadd.s32 1, %s17
    %s27 = scalar_select %p24, %s26, %s17
    %p28 = scmp.ge.s32.totalorder %s27, 2
    %s29 = scalar_select %p28, 0, %s27
    %s30 = ssub.s32 %s17, %s29
    %s31 = ssub.s32 %s18, %s25
    %s32 = sor.u32 %s30, %s31
    %p33 = scmp.eq.s32.totalorder %s32, 0
    %s35 = sadd.s32 %s34, 1
    %s36 = scalar_select %p33, %s34, %s35
    %p39 = pneg %p33
    %p40 = scmp.eq.s32.totalorder %s10, 1
    %p41 = por %p39, %p40
    %p42 = scmp.ne.s32.totalorder %s34, %s37
    %p43 = scmp.eq.s32.totalorder %s10, 0
    %p44 = por %p42, %p43
    %p45 = scmp.ne.s32.totalorder %s34, %s37
    %p46 = scmp.eq.s32.totalorder %s15, 1
    %p47 = por %p45, %p46
    %p48 = scmp.ne.s32.totalorder %s37, %s38
    %p49 = scmp.eq.s32.totalorder %s15, 0
    %p50 = por %p48, %p49
    %p51 = scmp.ne.s32.totalorder %s37, %s38
    %p52 = scmp.eq.s32.totalorder %s16, 1
    %p53 = por %p51, %p52
    %p55 = scmp.ne.s32.totalorder %s38, %s54
    %p56 = scmp.eq.s32.totalorder %s16, 0
    %p57 = por %p55, %p56
    %s59 = sadd.s32 %s58, 1
    %p62 = scmp.eq.s32.totalorder %s10, 1
    %p63 = scmp.ne.s32.totalorder %s58, %s60
    %p64 = scmp.eq.s32.totalorder %s10, 0
    %p65 = por %p63, %p64
    %p66 = scmp.ne.s32.totalorder %s58, %s60
    %p67 = scmp.eq.s32.totalorder %s15, 1
    %p68 = por %p66, %p67
    %p69 = scmp.ne.s32.totalorder %s60, %s61
    %p70 = scmp.eq.s32.totalorder %s15, 0
    %p71 = por %p69, %p70
    %p72 = scmp.ne.s32.totalorder %s60, %s61
    %p73 = scmp.eq.s32.totalorder %s16, 1
    %p74 = por %p72, %p73
    %p76 = scmp.ne.s32.totalorder %s61, %s75
    %p77 = scmp.eq.s32.totalorder %s16, 0
    %p78 = por %p76, %p77
    %s80 = sadd.s32 %s79, 1
    %p83 = scmp.eq.s32.totalorder %s10, 1
    %p84 = scmp.ne.s32.totalorder %s79, %s81
    %p85 = scmp.eq.s32.totalorder %s10, 0
    %p86 = por %p84, %p85
    %p87 = scmp.ne.s32.totalorder %s79, %s81
    %p88 = scmp.eq.s32.totalorder %s15, 1
    %p89 = por %p87, %p88
    %p90 = scmp.ne.s32.totalorder %s81, %s82
    %p91 = scmp.eq.s32.totalorder %s15, 0
    %p92 = por %p90, %p91
    %p93 = scmp.ne.s32.totalorder %s81, %s82
    %p94 = scmp.eq.s32.totalorder %s16, 1
    %p95 = por %p93, %p94
    %p97 = scmp.ne.s32.totalorder %s82, %s96
    %p98 = scmp.eq.s32.totalorder %s16, 0
    %p99 = por %p97, %p98
    %s100 = ssub.s32 %s17, %s29
    %s101 = ssub.s32 %s18, %s25
    %s102 = sor.u32 %s100, %s101
    %p103 = scmp.eq.s32.totalorder %s102, 0
    %s105 = sadd.s32 %s104, 1
    %s106 = scalar_select %p103, %s104, %s105
    %p109 = pneg %p103
    %p110 = scmp.eq.s32.totalorder %s10, 1
    %p111 = por %p109, %p110
    %p112 = scmp.ne.s32.totalorder %s104, %s107
    %p113 = scmp.eq.s32.totalorder %s10, 0
    %p114 = por %p112, %p113
    %p115 = scmp.ne.s32.totalorder %s104, %s107
    %p116 = scmp.eq.s32.totalorder %s15, 1
    %p117 = por %p115, %p116
    %p118 = scmp.ne.s32.totalorder %s107, %s108
    %p119 = scmp.eq.s32.totalorder %s15, 0
    %p120 = por %p118, %p119
    %p121 = scmp.ne.s32.totalorder %s107, %s108
    %p122 = scmp.eq.s32.totalorder %s16, 1
    %p123 = por %p121, %p122
    %p125 = scmp.ne.s32.totalorder %s108, %s124
    %p126 = scmp.eq.s32.totalorder %s16, 0
    %p127 = por %p125, %p126
    %s128 = ssub.s32 %s17, %s29
    %s129 = ssub.s32 %s18, %s25
    %s130 = sor.u32 %s128, %s129
    %p131 = scmp.eq.s32.totalorder %s130, 0
    %s133 = sadd.s32 %s132, 1
    %s134 = scalar_select %p131, %s132, %s133
    %p137 = pneg %p131
    %p138 = scmp.eq.s32.totalorder %s10, 1
    %p139 = por %p137, %p138
    %p140 = scmp.ne.s32.totalorder %s132, %s135
    %p141 = scmp.eq.s32.totalorder %s10, 0
    %p142 = por %p140, %p141
    %p143 = scmp.ne.s32.totalorder %s132, %s135
    %p144 = scmp.eq.s32.totalorder %s15, 1
    %p145 = por %p143, %p144
    %p146 = scmp.ne.s32.totalorder %s135, %s136
    %p147 = scmp.eq.s32.totalorder %s15, 0
    %p148 = por %p146, %p147
    %p149 = scmp.ne.s32.totalorder %s135, %s136
    %p150 = scmp.eq.s32.totalorder %s16, 1
    %p151 = por %p149, %p150
    %p153 = scmp.ne.s32.totalorder %s136, %s152
    %p154 = scmp.eq.s32.totalorder %s16, 0
    %p155 = por %p153, %p154
    %p156 = scmp.le.s32.totalorder 1, %s10
    %p157 = scmp.lt.s32.totalorder %s10, 3
    %p158 = pnand %p156, %p157
    %p159 = pneg %p158
    // Predicated region
    $region9: #{sgn_forward.39} parent=5 // pred_check
      _
    $region10: #{sgn_forward.39} parent=5 // pred_check_branch
      %161 = sbr.rel (%p158) target = $region12
    $region11: #{sgn_forward.39} parent=5 // pred_region
      %s162 = ssub.s32 %s10, 1
      // Predicated region
      $region13: #{sgn_forward.39} parent=11 // pred_check
        %p163 = pneg %p71
      $region14: #{sgn_forward.39} parent=11 // pred_check_branch
        %165 = sbr.rel (%p163) target = $region16
      $region15: #{sgn_forward.39} parent=11 // pred_region
        _
      $region16: #{sgn_forward.39} parent=11 // pred_fallthru
        _
      // Predicated region
      $region17: #{sgn_forward.39} parent=11 // pred_check
        %p166 = pneg %p92
      $region18: #{sgn_forward.39} parent=11 // pred_check_branch
        %168 = sbr.rel (%p166) target = $region20
      $region19: #{sgn_forward.39} parent=11 // pred_region
        _
      $region20: #{sgn_forward.39} parent=11 // pred_fallthru
        _
    $region12: #{sgn_forward.39} parent=5 // pred_fallthru
      _
    %p169 = scmp.lt.s32.totalorder %s10, 2
    // Predicated region
    $region21: #{sgn_forward.39} parent=5 // pred_check
      %p170 = pneg %p169
    $region22: #{sgn_forward.39} parent=5 // pred_check_branch
      %172 = sbr.rel (%p170) target = $region24
    $region23: #{sgn_forward.39} parent=5 // pred_region
      // Predicated region
      $region25: #{sgn_forward.39} parent=23 // pred_check
        %p173 = pneg %p44
      $region26: #{sgn_forward.39} parent=23 // pred_check_branch
        %175 = sbr.rel (%p173) target = $region28
      $region27: #{sgn_forward.39} parent=23 // pred_region
        %s176 = smul.u32 2, %s18
        %p177 = scmp.lt.s32.totalorder %s17, 1
        %s178 = scalar_select %p177, %s17, 1
        %p179 = scmp.lt.s32.totalorder %s176, 1
        %s180 = scalar_select %p179, %s176, 1
        %s181 = smul.addr %s178, 90
        %s182 = sadd.s32 %s180, %s181
        %s183 = smul.addr %s182, 4
        %s184 = scalar_lea.vmem %s0, %s183
        %s185 = smul.u32 2, %s18
      $region28: #{sgn_forward.39} parent=23 // pred_fallthru
        _
      // Predicated region
      $region29: #{sgn_forward.39} parent=23 // pred_check
        %p186 = pneg %p114
      $region30: #{sgn_forward.39} parent=23 // pred_check_branch
        %188 = sbr.rel (%p186) target = $region32
      $region31: #{sgn_forward.39} parent=23 // pred_region
        %s189 = smul.u32 2, %s18
        %p190 = scmp.lt.s32.totalorder %s17, 1
        %s191 = scalar_select %p190, %s17, 1
        %p192 = scmp.lt.s32.totalorder %s189, 1
        %s193 = scalar_select %p192, %s189, 1
        %s194 = smul.addr %s191, 2
        %s195 = sadd.s32 %s193, %s194
        %s196 = smul.addr %s195, 8
        %s197 = scalar_lea.vmem %s3, %s196
        %s198 = smul.u32 2, %s18
      $region32: #{sgn_forward.39} parent=23 // pred_fallthru
        _
    $region24: #{sgn_forward.39} parent=5 // pred_fallthru
      _
    %p199 = scmp.le.s32.totalorder 1, %s10
    %p200 = scmp.lt.s32.totalorder %s10, 3
    %p201 = pnand %p199, %p200
    %p202 = pneg %p201
    // Predicated region
    $region33: #{sgn_forward.39} parent=5 // pred_check
      _
    $region34: #{sgn_forward.39} parent=5 // pred_check_branch
      %204 = sbr.rel (%p201) target = $region36
    $region35: #{sgn_forward.39} parent=5 // pred_region
      %s205 = ssub.s32 %s10, 1
      %s206 = smul.u32 2, %s20
      %p207 = scmp.lt.s32.totalorder %s19, 1
      %s208 = scalar_select %p207, %s19, 1
      %p209 = scmp.lt.s32.totalorder %s206, 1
      %s210 = scalar_select %p209, %s206, 1
      %s211 = smul.addr %s208, 90
      %s212 = sadd.s32 %s210, %s211
      %s213 = smul.addr %s212, 4
      %s214 = scalar_lea.vmem %s0, %s213
      %p215 = pneg %p50
      %p216 = pneg %p47
      %p217 = pneg %p71
      %p218 = pneg %p68
      %p219 = pneg %p92
      %p220 = pneg %p89
      %s221 = smul.u32 2, %s20
      %p222 = scmp.lt.s32.totalorder %s19, 1
      %s223 = scalar_select %p222, %s19, 1
      %p224 = scmp.lt.s32.totalorder %s221, 1
      %s225 = scalar_select %p224, %s221, 1
      %s226 = smul.addr %s223, 2
      %s227 = sadd.s32 %s225, %s226
      %s228 = smul.addr %s227, 8
      %s229 = scalar_lea.vmem %s3, %s228
      %p230 = pneg %p120
      %p231 = pneg %p117
      %p232 = pneg %p148
      %p233 = pneg %p145
      %s234 = smul.u32 2, %s20
      %p235 = scmp.lt.s32.totalorder %s19, 1
      %s236 = scalar_select %p235, %s19, 1
      %p237 = scmp.lt.s32.totalorder %s234, 1
      %s238 = scalar_select %p237, %s234, 1
      %s239 = smul.addr %s236, 2
      %s240 = sadd.s32 %s238, %s239
      %s241 = smul.addr %s240, 8
      %s242 = scalar_lea.vmem %s4, %s241
      %s243 = smul.u32 2, %s20
      %p244 = scmp.lt.s32.totalorder %s19, 1
      %s245 = scalar_select %p244, %s19, 1
      %p246 = scmp.lt.s32.totalorder %s243, 1
      %s247 = scalar_select %p246, %s243, 1
      %s248 = smul.addr %s245, 90
      %s249 = sadd.s32 %s247, %s248
      %s250 = smul.addr %s249, 4
      %s251 = scalar_lea.vmem %s0, %s250
      %s252 = smul.u32 2, %s20
      %s253 = smul.u32 2, %s20
      %p254 = scmp.lt.s32.totalorder %s19, 1
      %s255 = scalar_select %p254, %s19, 1
      %p256 = scmp.lt.s32.totalorder %s253, 1
      %s257 = scalar_select %p256, %s253, 1
      %s258 = smul.addr %s255, 2
      %s259 = sadd.s32 %s257, %s258
      %s260 = smul.addr %s259, 8
      %s261 = scalar_lea.vmem %s3, %s260
      %s262 = smul.u32 2, %s20
      %s263 = smul.u32 2, %s20
      %p264 = scmp.lt.s32.totalorder %s19, 1
      %s265 = scalar_select %p264, %s19, 1
      %p266 = scmp.lt.s32.totalorder %s263, 1
      %s267 = scalar_select %p266, %s263, 1
      %s268 = smul.addr %s265, 2
      %s269 = sadd.s32 %s267, %s268
      %s270 = smul.addr %s269, 8
      %s271 = scalar_lea.vmem %s4, %s270
      %s272 = smul.u32 2, %s20
      %v274 = vld [vmem:[%s1] sm:$0xff]
      %v275 = vld [vmem:[%s1 + $0x8] sm:$0xf]
      %v276 = vld [vmem:[%s251] sm:$0xff]
      %v277 = vld [vmem:[%s251 + $0x8] sm:$0xff]
      %v278 = vld [vmem:[%s251 + $0x10] sm:$0xff]
      %v279 = vld [vmem:[%s251 + $0x18] sm:$0xff]
      %v280 = vld [vmem:[%s251 + $0x20] sm:$0xff]
      %v281 = vld [vmem:[%s251 + $0x28] sm:$0xff]
      %v282 = vld [vmem:[%s251 + $0x30] sm:$0xff]
      %v283 = vld [vmem:[%s251 + $0x38] sm:$0xff]
      %v284 = vld [vmem:[%s251 + $0x40] sm:$0xff]
      %v285 = vld [vmem:[%s251 + $0x48] sm:$0xff]
      %v286 = vld [vmem:[%s251 + $0x50] sm:$0xff]
      %v287 = vld [vmem:[%s251 + $0x58] sm:$0xff]
      %v288 = vld [vmem:[%s251 + $0x60] sm:$0xff]
      %v289 = vld [vmem:[%s251 + $0x68] sm:$0xff]
      %v290 = vld [vmem:[%s251 + $0x70] sm:$0xff]
      %v291 = vld [vmem:[%s251 + $0x78] sm:$0xff]
      %v292 = vld [vmem:[%s251 + $0x80] sm:$0xff]
      %v293 = vld [vmem:[%s251 + $0x88] sm:$0xff]
      %v294 = vld [vmem:[%s251 + $0x90] sm:$0xff]
      %v295 = vld [vmem:[%s251 + $0x98] sm:$0xff]
      %v296 = vld [vmem:[%s251 + $0xa0] sm:$0xff]
      %v297 = vld [vmem:[%s251 + $0xa8] sm:$0xff]
      %v298 = vld [vmem:[%s251 + $0xb0] sm:$0xff]
      %v299 = vld [vmem:[%s251 + $0xb8] sm:$0xff]
      %v300 = vld [vmem:[%s251 + $0xc0] sm:$0xff]
      %v301 = vld [vmem:[%s251 + $0xc8] sm:$0xff]
      %v302 = vld [vmem:[%s251 + $0xd0] sm:$0xff]
      %v303 = vld [vmem:[%s251 + $0xd8] sm:$0xff]
      %v304 = vld [vmem:[%s251 + $0xe0] sm:$0xff]
      %v305 = vld [vmem:[%s251 + $0xe8] sm:$0xff]
      %v306 = vld [vmem:[%s251 + $0xf0] sm:$0xff]
      %v307 = vld [vmem:[%s251 + $0xf8] sm:$0xff]
      %v308 = vld [vmem:[%s251 + $0x100] sm:$0xff]
      %v309 = vld [vmem:[%s251 + $0x108] sm:$0xff]
      %v310 = vld [vmem:[%s251 + $0x110] sm:$0xff]
      %v311 = vld [vmem:[%s251 + $0x118] sm:$0xff]
      %v312 = vld [vmem:[%s251 + $0x120] sm:$0xff]
      %v313 = vld [vmem:[%s251 + $0x128] sm:$0xff]
      %v314 = vld [vmem:[%s251 + $0x130] sm:$0xff]
      %v315 = vld [vmem:[%s251 + $0x138] sm:$0xff]
      %v316 = vld [vmem:[%s251 + $0x140] sm:$0xff]
      %v317 = vld [vmem:[%s251 + $0x148] sm:$0xff]
      %v318 = vld [vmem:[%s251 + $0x150] sm:$0xff]
      %v319 = vld [vmem:[%s251 + $0x158] sm:$0xff]
      %v320 = vld [vmem:[%s251 + $0x160] sm:$0xff]
      %v321 = vld [vmem:[%s2] sm:$0xff]
      %323 = vset.pattern.permute.xlu0 0
      %324 = vperm.xlu0 %323, %v321
      %v325 = vpop.permute.xlu0 %324
      %v329 = vunpack.c.l.b16 %v274
      %v330 = vunpack.c.h.b16 %v274
      %v331 = vunpack.c.l.b16 %v275
      %v332 = vpack.c.b16 %v329, %v329
      %v333 = vpack.c.b16 %v330, %v330
      %v334 = vpack.c.b16 %v331, %v331
      %v382 = vunpack.c.l.b16 %v276
      %v383 = vunpack.c.h.b16 %v276
      %v384 = vunpack.c.l.b16 %v277
      %v385 = vunpack.c.h.b16 %v277
      %v386 = vunpack.c.l.b16 %v278
      %v387 = vunpack.c.h.b16 %v278
      %v388 = vunpack.c.l.b16 %v279
      %v389 = vunpack.c.h.b16 %v279
      %v390 = vunpack.c.l.b16 %v280
      %v391 = vunpack.c.h.b16 %v280
      %v392 = vunpack.c.l.b16 %v281
      %v393 = vunpack.c.h.b16 %v281
      %v394 = vunpack.c.l.b16 %v282
      %v395 = vunpack.c.h.b16 %v282
      %v396 = vunpack.c.l.b16 %v283
      %v397 = vunpack.c.h.b16 %v283
      %v398 = vunpack.c.l.b16 %v284
      %v399 = vunpack.c.h.b16 %v284
      %v400 = vunpack.c.l.b16 %v285
      %v401 = vunpack.c.h.b16 %v285
      %v402 = vunpack.c.l.b16 %v286
      %v403 = vunpack.c.h.b16 %v286
      %v404 = vunpack.c.l.b16 %v287
      %v405 = vunpack.c.h.b16 %v287
      %v406 = vunpack.c.l.b16 %v288
      %v407 = vunpack.c.h.b16 %v288
      %v408 = vunpack.c.l.b16 %v289
      %v409 = vunpack.c.h.b16 %v289
      %v410 = vunpack.c.l.b16 %v290
      %v411 = vunpack.c.h.b16 %v290
      %v412 = vunpack.c.l.b16 %v291
      %v413 = vunpack.c.h.b16 %v291
      %v414 = vunpack.c.l.b16 %v292
      %v415 = vunpack.c.h.b16 %v292
      %v416 = vunpack.c.l.b16 %v293
      %v417 = vunpack.c.h.b16 %v293
      %v418 = vunpack.c.l.b16 %v294
      %v419 = vunpack.c.h.b16 %v294
      %v420 = vunpack.c.l.b16 %v295
      %v421 = vunpack.c.h.b16 %v295
      %v422 = vunpack.c.l.b16 %v296
      %v423 = vunpack.c.h.b16 %v296
      %v424 = vunpack.c.l.b16 %v297
      %v425 = vunpack.c.h.b16 %v297
      %v426 = vunpack.c.l.b16 %v298
      %v427 = vunpack.c.h.b16 %v298
      %v428 = vunpack.c.l.b16 %v299
      %v429 = vunpack.c.h.b16 %v299
      %v430 = vunpack.c.l.b16 %v300
      %v431 = vunpack.c.h.b16 %v300
      %v432 = vunpack.c.l.b16 %v301
      %v433 = vunpack.c.h.b16 %v301
      %v434 = vunpack.c.l.b16 %v302
      %v435 = vunpack.c.h.b16 %v302
      %v436 = vunpack.c.l.b16 %v303
      %v437 = vunpack.c.h.b16 %v303
      %v438 = vunpack.c.l.b16 %v304
      %v439 = vunpack.c.h.b16 %v304
      %v440 = vunpack.c.l.b16 %v305
      %v441 = vunpack.c.h.b16 %v305
      %v442 = vunpack.c.l.b16 %v306
      %v443 = vunpack.c.h.b16 %v306
      %v444 = vunpack.c.l.b16 %v307
      %v445 = vunpack.c.h.b16 %v307
      %v446 = vunpack.c.l.b16 %v308
      %v447 = vunpack.c.h.b16 %v308
      %v448 = vunpack.c.l.b16 %v309
      %v449 = vunpack.c.h.b16 %v309
      %v450 = vunpack.c.l.b16 %v310
      %v451 = vunpack.c.h.b16 %v310
      %v452 = vunpack.c.l.b16 %v311
      %v453 = vunpack.c.h.b16 %v311
      %v454 = vunpack.c.l.b16 %v312
      %v455 = vunpack.c.h.b16 %v312
      %v456 = vunpack.c.l.b16 %v313
      %v457 = vunpack.c.h.b16 %v313
      %v458 = vunpack.c.l.b16 %v314
      %v459 = vunpack.c.h.b16 %v314
      %v460 = vunpack.c.l.b16 %v315
      %v461 = vunpack.c.h.b16 %v315
      %v462 = vunpack.c.l.b16 %v316
      %v463 = vunpack.c.h.b16 %v316
      %v464 = vunpack.c.l.b16 %v317
      %v465 = vunpack.c.h.b16 %v317
      %v466 = vunpack.c.l.b16 %v318
      %v467 = vunpack.c.h.b16 %v318
      %v468 = vunpack.c.l.b16 %v319
      %v469 = vunpack.c.h.b16 %v319
      %v470 = vunpack.c.l.b16 %v320
      %v471 = vunpack.c.h.b16 %v320
      %v472 = vpack.c.b16 %v384, %v382
      %v473 = vpack.c.b16 %v385, %v383
      %v474 = vpack.c.b16 %v388, %v386
      %v475 = vpack.c.b16 %v389, %v387
      %v476 = vpack.c.b16 %v392, %v390
      %v477 = vpack.c.b16 %v393, %v391
      %v478 = vpack.c.b16 %v396, %v394
      %v479 = vpack.c.b16 %v397, %v395
      %v480 = vpack.c.b16 %v400, %v398
      %v481 = vpack.c.b16 %v401, %v399
      %v482 = vpack.c.b16 %v404, %v402
      %v483 = vpack.c.b16 %v405, %v403
      %v484 = vpack.c.b16 %v408, %v406
      %v485 = vpack.c.b16 %v409, %v407
      %v486 = vpack.c.b16 %v412, %v410
      %v487 = vpack.c.b16 %v413, %v411
      %v488 = vpack.c.b16 %v416, %v414
      %v489 = vpack.c.b16 %v417, %v415
      %v490 = vpack.c.b16 %v420, %v418
      %v491 = vpack.c.b16 %v421, %v419
      %v492 = vpack.c.b16 %v424, %v422
      %v493 = vpack.c.b16 %v425, %v423
      %v494 = vpack.c.b16 %v428, %v426
      %v495 = vpack.c.b16 %v429, %v427
      %v496 = vpack.c.b16 %v432, %v430
      %v497 = vpack.c.b16 %v433, %v431
      %v498 = vpack.c.b16 %v436, %v434
      %v499 = vpack.c.b16 %v437, %v435
      %v500 = vpack.c.b16 %v440, %v438
      %v501 = vpack.c.b16 %v441, %v439
      %v502 = vpack.c.b16 %v444, %v442
      %v503 = vpack.c.b16 %v445, %v443
      %v504 = vpack.c.b16 %v448, %v446
      %v505 = vpack.c.b16 %v449, %v447
      %v506 = vpack.c.b16 %v452, %v450
      %v507 = vpack.c.b16 %v453, %v451
      %v508 = vpack.c.b16 %v456, %v454
      %v509 = vpack.c.b16 %v457, %v455
      %v510 = vpack.c.b16 %v460, %v458
      %v511 = vpack.c.b16 %v461, %v459
      %v512 = vpack.c.b16 %v464, %v462
      %v513 = vpack.c.b16 %v465, %v463
      %v514 = vpack.c.b16 %v468, %v466
      %v515 = vpack.c.b16 %v469, %v467
      %v516 = vpack.c.b16 %v470, %v470
      %v517 = vpack.c.b16 %v471, %v471
      %vm562 = vcmask 850944
      %v564 = vsel %vm562, %v334, 0
      %vm566 = vcmask 1043456
      %v568 = vsel %vm566, %v516, 0
      %v571 = vsel %vm566, %v517, 0
      %573 = vmatprep.subr.bf16.mxu0 %v473
      %574 = vmatpush1.bf16.msra.mxu0 %v472
      %575 = vmatprep.subr.bf16.mxu0 %v475
      %576 = vmatpush1.bf16.msra.mxu0 %v474
      %577 = vmatprep.subr.bf16.mxu0 %v477
      %578 = vmatpush1.bf16.msra.mxu0 %v476
      %579 = vmatprep.subr.bf16.mxu0 %v479
      %580 = vmatpush1.bf16.msra.mxu0 %v478
      %581 = vmatprep.subr.bf16.mxu0 %v481
      %582 = vmatpush1.bf16.msra.mxu0 %v480
      %583 = vmatprep.subr.bf16.mxu0 %v483
      %584 = vmatpush1.bf16.msra.mxu0 %v482
      %585 = vmatprep.subr.bf16.mxu0 %v485
      %586 = vmatpush1.bf16.msra.mxu0 %v484
      %587 = vmatprep.subr.bf16.mxu0 %v487
      %588 = vmatpush1.bf16.msra.mxu0 %v486
      %589 = vmatprep.subr.bf16.mxu0 %v489
      %590 = vmatpush1.bf16.msra.mxu0 %v488
      %591 = vmatprep.subr.bf16.mxu0 %v491
      %592 = vmatpush1.bf16.msra.mxu0 %v490
      %593 = vmatprep.subr.bf16.mxu0 %v493
      %594 = vmatpush1.bf16.msra.mxu0 %v492
      %595 = vmatprep.subr.bf16.mxu0 %v495
      %596 = vmatpush1.bf16.msra.mxu0 %v494
      %597 = vmatprep.subr.bf16.mxu0 %v497
      %598 = vmatpush1.bf16.msra.mxu0 %v496
      %599 = vmatprep.subr.bf16.mxu0 %v499
      %600 = vmatpush1.bf16.msra.mxu0 %v498
      %601 = vmatprep.subr.bf16.mxu0 %v501
      %602 = vmatpush1.bf16.msra.mxu0 %v500
      %603 = vmatprep.subr.bf16.mxu0 %v503
      %604 = vmatpush1.bf16.msra.mxu0 %v502
      %605 = vmatprep.mubr.bf16.mxu0 %v333
      %606 = vmatmul.mubr.bf16.gmra.mrb[0].mxu0 %v332
      %v607 = vpop.f32.mrb[0].mxu0
      %v608 = vadd.f32 %v325, %v607
      %v609 = vpop.f32.mrb[0].mxu0
      %v610 = vadd.f32 %v325, %v609
      %v611 = vpop.f32.mrb[0].mxu0
      %v612 = vpop.f32.mrb[0].mxu0
      %613 = vdwg.mxu0
      %614 = vmatprep.subr.bf16.mxu0 %v505
      %615 = vmatpush1.bf16.msra.mxu0 %v504
      %616 = vmatprep.subr.bf16.mxu0 %v507
      %617 = vmatpush1.bf16.msra.mxu0 %v506
      %618 = vmatprep.subr.bf16.mxu0 %v509
      %619 = vmatpush1.bf16.msra.mxu0 %v508
      %620 = vmatprep.subr.bf16.mxu0 %v511
      %621 = vmatpush1.bf16.msra.mxu0 %v510
      %622 = vmatprep.subr.bf16.mxu0 %v513
      %623 = vmatpush1.bf16.msra.mxu0 %v512
      %624 = vmatprep.subr.bf16.mxu0 %v515
      %625 = vmatpush1.bf16.msra.mxu0 %v514
      %626 = vmatprep.subr.bf16.mxu0 %v571
      %627 = vmatpush1.bf16.msra.mxu0 %v568
      %628 = vmatprep.subr.bf16.mxu0 0
      %629 = vmatpush1.bf16.msra.mxu0 0
      %630 = vmatprep.subr.bf16.mxu0 0
      %631 = vmatpush1.bf16.msra.mxu0 0
      %632 = vmatprep.subr.bf16.mxu0 0
      %633 = vmatpush1.bf16.msra.mxu0 0
      %634 = vmatprep.subr.bf16.mxu0 0
      %635 = vmatpush1.bf16.msra.mxu0 0
      %636 = vmatprep.subr.bf16.mxu0 0
      %637 = vmatpush1.bf16.msra.mxu0 0
      %638 = vmatprep.subr.bf16.mxu0 0
      %639 = vmatpush1.bf16.msra.mxu0 0
      %640 = vmatprep.subr.bf16.mxu0 0
      %641 = vmatpush1.bf16.msra.mxu0 0
      %642 = vmatprep.subr.bf16.mxu0 0
      %643 = vmatpush1.bf16.msra.mxu0 0
      %644 = vmatprep.subr.bf16.mxu0 0
      %645 = vmatpush1.bf16.msra.mxu0 0
      %646 = vmatprep.mubr.bf16.mxu0 0
      %647 = vmatmul.mubr.bf16.gmra.mrb[0].mxu0 %v564
      %v648 = vpop.f32.mrb[0].mxu0
      %v649 = vadd.f32 %v608, %v648
      %v650 = vpop.f32.mrb[0].mxu0
      %v651 = vadd.f32 %v610, %v650
      %v652 = vpop.f32.mrb[0].mxu0
      %v653 = vpop.f32.mrb[0].mxu0
      %654 = vdwg.mxu0
      %v655 = vmul.f32 %v649, 0.2
      %v656 = vmul.f32 %v651, 0.2
      %v657 = vld [vmem:[%s261] sm:$0xff]
      %v658 = vld [vmem:[%s261 + $0x8] sm:$0xff]
      %v659 = vadd.f32 %v655, %v657
      %v660 = vadd.f32 %v656, %v658
      %661 = vst [vmem:[%s271] sm:$0xff] %v659
      %662 = vst [vmem:[%s271 + $0x8] sm:$0xff] %v660
      %s663 = smul.u32 2, %s20
      %p664 = scmp.lt.s32.totalorder %s19, 1
      %s665 = scalar_select %p664, %s19, 1
      %p666 = scmp.lt.s32.totalorder %s663, 1
      %s667 = scalar_select %p666, %s663, 1
      %s668 = smul.addr %s665, 2
      %s669 = sadd.s32 %s667, %s668
      %s670 = smul.addr %s669, 8
      %s671 = scalar_lea.vmem %s4, %s670
      // Predicated region
      $region37: #{sgn_forward.39} parent=35 // pred_check
        %p672 = pneg %p145
      $region38: #{sgn_forward.39} parent=35 // pred_check_branch
        %674 = sbr.rel (%p672) target = $region40
      $region39: #{sgn_forward.39} parent=35 // pred_region
        %s675 = smul.u32 2, %s20
      $region40: #{sgn_forward.39} parent=35 // pred_fallthru
        _
    $region36: #{sgn_forward.39} parent=5 // pred_fallthru
      _
    %p676 = scmp.le.s32.totalorder 2, %s10
    // Predicated region
    $region41: #{sgn_forward.39} parent=5 // pred_check
      %p677 = pneg %p676
    $region42: #{sgn_forward.39} parent=5 // pred_check_branch
      %679 = sbr.rel (%p677) target = $region44
    $region43: #{sgn_forward.39} parent=5 // pred_region
      %s680 = ssub.s32 %s10, 2
      // Predicated region
      $region45: #{sgn_forward.39} parent=43 // pred_check
        %p681 = pneg %p151
      $region46: #{sgn_forward.39} parent=43 // pred_check_branch
        %683 = sbr.rel (%p681) target = $region48
      $region47: #{sgn_forward.39} parent=43 // pred_region
        %s684 = smul.u32 2, %s22
        %p685 = scmp.lt.s32.totalorder %s21, 1
        %s686 = scalar_select %p685, %s21, 1
        %p687 = scmp.lt.s32.totalorder %s684, 1
        %s688 = scalar_select %p687, %s684, 1
        %s689 = smul.addr %s686, 2
        %s690 = sadd.s32 %s688, %s689
        %s691 = smul.addr %s690, 8
        %s692 = scalar_lea.vmem %s4, %s691
      $region48: #{sgn_forward.39} parent=43 // pred_fallthru
        _
    $region44: #{sgn_forward.39} parent=5 // pred_fallthru
      _
  $region6: #{sgn_forward.39} parent=0 // loop_footer
    %s14 = sadd.s32 1, %s10
  $region7: #{sgn_forward.39} parent=0 // loop_footer_branch
    %9 = sbr.rel target = $region3
  $region8: #{sgn_forward.39} parent=0 // loop_exit
    _

// kernel: sgn_forward.33
$region0: #{sgn_forward.33}
  #allocation0 [shape = 'u32[]', space=smem, size = 0x4, offset = 0x4, fixed_abs, tag = 'smem constant byte address 0x4 - core index']
  #allocation1 [shape = 'u32[144,128]{1,0:T(1,128)}', space=vmem, size = 0x12000, scoped, tag = 'internal scratch']
  %s0 = inlined_call_operand.vmem [shape: bf16[2,72,256], index: 0, kind: input, shape index: {}]
  %s1 = inlined_call_operand.vmem [shape: bf16[8,72], index: 1, kind: input, shape index: {}]
  %s2 = inlined_call_operand.vmem [shape: f32[8,1], index: 2, kind: input, shape index: {}]
  %s3 = inlined_call_operand.vmem [shape: f32[2,8,256], index: 3, kind: input, shape index: {}]
  %s4 = inlined_call_operand.vmem [shape: f32[2,8,256], index: 4, kind: output, shape index: {}]
  %s5 = sld [smem:[#allocation0]]
  $region49: #{sgn_forward.33} parent=0
    _
  %s7 = ssub.s32 1, %s5
  %s8 = scalar_select 0, %s7, %s5
  loop: start=0, step=1, limit=4
  $region2: #{sgn_forward.33} parent=0 // loop_pre_header
    _
  $region3: #{sgn_forward.33} parent=0 // loop_header
    %s10 = sphi 0, %s14
    %p11 = scmp.ge.s32.totalorder %s10, 4
    %s17 = sphi 0, %s29
    %s18 = sphi 0, %s25
    %s19 = sphi 0, %s17
    %s20 = sphi 0, %s18
    %s21 = sphi 0, %s19
    %s22 = sphi 0, %s20
    %s34 = sphi 0, %s36
    %s37 = sphi 0, %s34
    %s38 = sphi 0, %s37
    %s54 = sphi 0, %s38
    %s58 = sphi 0, %s58
    %s60 = sphi 0, %s58
    %s61 = sphi 0, %s60
    %s75 = sphi 0, %s61
    %s79 = sphi 0, %s79
    %s81 = sphi 0, %s79
    %s82 = sphi 0, %s81
    %s96 = sphi 0, %s82
    %s104 = sphi 0, %s106
    %s107 = sphi 0, %s104
    %s108 = sphi 0, %s107
    %s124 = sphi 0, %s108
    %s132 = sphi 0, %s134
    %s135 = sphi 0, %s132
    %s136 = sphi 0, %s135
    %s152 = sphi 0, %s136
  $region4: #{sgn_forward.33} parent=0 // loop_header_branch
    %13 = sbr.rel (%p11) target = $region8
  $region5: #{sgn_forward.33} parent=0 // loop_body
    %s15 = ssub.s32 %s10, 1
    %s16 = ssub.s32 %s10, 2
    %s23 = sadd.s32 1, %s18
    %p24 = scmp.ge.s32.totalorder %s23, 1
    %s25 = scalar_select %p24, 0, %s23
    %s26 = sadd.s32 1, %s17
    %s27 = scalar_select %p24, %s26, %s17
    %p28 = scmp.ge.s32.totalorder %s27, 2
    %s29 = scalar_select %p28, 0, %s27
    %s30 = ssub.s32 %s17, %s29
    %s31 = ssub.s32 %s18, %s25
    %s32 = sor.u32 %s30, %s31
    %p33 = scmp.eq.s32.totalorder %s32, 0
    %s35 = sadd.s32 %s34, 1
    %s36 = scalar_select %p33, %s34, %s35
    %p39 = pneg %p33
    %p40 = scmp.eq.s32.totalorder %s10, 1
    %p41 = por %p39, %p40
    %p42 = scmp.ne.s32.totalorder %s34, %s37
    %p43 = scmp.eq.s32.totalorder %s10, 0
    %p44 = por %p42, %p43
    %p45 = scmp.ne.s32.totalorder %s34, %s37
    %p46 = scmp.eq.s32.totalorder %s15, 1
    %p47 = por %p45, %p46
    %p48 = scmp.ne.s32.totalorder %s37, %s38
    %p49 = scmp.eq.s32.totalorder %s15, 0
    %p50 = por %p48, %p49
    %p51 = scmp.ne.s32.totalorder %s37, %s38
    %p52 = scmp.eq.s32.totalorder %s16, 1
    %p53 = por %p51, %p52
    %p55 = scmp.ne.s32.totalorder %s38, %s54
    %p56 = scmp.eq.s32.totalorder %s16, 0
    %p57 = por %p55, %p56
    %s59 = sadd.s32 %s58, 1
    %p62 = scmp.eq.s32.totalorder %s10, 1
    %p63 = scmp.ne.s32.totalorder %s58, %s60
    %p64 = scmp.eq.s32.totalorder %s10, 0
    %p65 = por %p63, %p64
    %p66 = scmp.ne.s32.totalorder %s58, %s60
    %p67 = scmp.eq.s32.totalorder %s15, 1
    %p68 = por %p66, %p67
    %p69 = scmp.ne.s32.totalorder %s60, %s61
    %p70 = scmp.eq.s32.totalorder %s15, 0
    %p71 = por %p69, %p70
    %p72 = scmp.ne.s32.totalorder %s60, %s61
    %p73 = scmp.eq.s32.totalorder %s16, 1
    %p74 = por %p72, %p73
    %p76 = scmp.ne.s32.totalorder %s61, %s75
    %p77 = scmp.eq.s32.totalorder %s16, 0
    %p78 = por %p76, %p77
    %s80 = sadd.s32 %s79, 1
    %p83 = scmp.eq.s32.totalorder %s10, 1
    %p84 = scmp.ne.s32.totalorder %s79, %s81
    %p85 = scmp.eq.s32.totalorder %s10, 0
    %p86 = por %p84, %p85
    %p87 = scmp.ne.s32.totalorder %s79, %s81
    %p88 = scmp.eq.s32.totalorder %s15, 1
    %p89 = por %p87, %p88
    %p90 = scmp.ne.s32.totalorder %s81, %s82
    %p91 = scmp.eq.s32.totalorder %s15, 0
    %p92 = por %p90, %p91
    %p93 = scmp.ne.s32.totalorder %s81, %s82
    %p94 = scmp.eq.s32.totalorder %s16, 1
    %p95 = por %p93, %p94
    %p97 = scmp.ne.s32.totalorder %s82, %s96
    %p98 = scmp.eq.s32.totalorder %s16, 0
    %p99 = por %p97, %p98
    %s100 = ssub.s32 %s17, %s29
    %s101 = ssub.s32 %s18, %s25
    %s102 = sor.u32 %s100, %s101
    %p103 = scmp.eq.s32.totalorder %s102, 0
    %s105 = sadd.s32 %s104, 1
    %s106 = scalar_select %p103, %s104, %s105
    %p109 = pneg %p103
    %p110 = scmp.eq.s32.totalorder %s10, 1
    %p111 = por %p109, %p110
    %p112 = scmp.ne.s32.totalorder %s104, %s107
    %p113 = scmp.eq.s32.totalorder %s10, 0
    %p114 = por %p112, %p113
    %p115 = scmp.ne.s32.totalorder %s104, %s107
    %p116 = scmp.eq.s32.totalorder %s15, 1
    %p117 = por %p115, %p116
    %p118 = scmp.ne.s32.totalorder %s107, %s108
    %p119 = scmp.eq.s32.totalorder %s15, 0
    %p120 = por %p118, %p119
    %p121 = scmp.ne.s32.totalorder %s107, %s108
    %p122 = scmp.eq.s32.totalorder %s16, 1
    %p123 = por %p121, %p122
    %p125 = scmp.ne.s32.totalorder %s108, %s124
    %p126 = scmp.eq.s32.totalorder %s16, 0
    %p127 = por %p125, %p126
    %s128 = ssub.s32 %s17, %s29
    %s129 = ssub.s32 %s18, %s25
    %s130 = sor.u32 %s128, %s129
    %p131 = scmp.eq.s32.totalorder %s130, 0
    %s133 = sadd.s32 %s132, 1
    %s134 = scalar_select %p131, %s132, %s133
    %p137 = pneg %p131
    %p138 = scmp.eq.s32.totalorder %s10, 1
    %p139 = por %p137, %p138
    %p140 = scmp.ne.s32.totalorder %s132, %s135
    %p141 = scmp.eq.s32.totalorder %s10, 0
    %p142 = por %p140, %p141
    %p143 = scmp.ne.s32.totalorder %s132, %s135
    %p144 = scmp.eq.s32.totalorder %s15, 1
    %p145 = por %p143, %p144
    %p146 = scmp.ne.s32.totalorder %s135, %s136
    %p147 = scmp.eq.s32.totalorder %s15, 0
    %p148 = por %p146, %p147
    %p149 = scmp.ne.s32.totalorder %s135, %s136
    %p150 = scmp.eq.s32.totalorder %s16, 1
    %p151 = por %p149, %p150
    %p153 = scmp.ne.s32.totalorder %s136, %s152
    %p154 = scmp.eq.s32.totalorder %s16, 0
    %p155 = por %p153, %p154
    %p156 = scmp.le.s32.totalorder 1, %s10
    %p157 = scmp.lt.s32.totalorder %s10, 3
    %p158 = pnand %p156, %p157
    %p159 = pneg %p158
    // Predicated region
    $region9: #{sgn_forward.33} parent=5 // pred_check
      _
    $region10: #{sgn_forward.33} parent=5 // pred_check_branch
      %161 = sbr.rel (%p158) target = $region12
    $region11: #{sgn_forward.33} parent=5 // pred_region
      %s162 = ssub.s32 %s10, 1
      // Predicated region
      $region13: #{sgn_forward.33} parent=11 // pred_check
        %p163 = pneg %p71
      $region14: #{sgn_forward.33} parent=11 // pred_check_branch
        %165 = sbr.rel (%p163) target = $region16
      $region15: #{sgn_forward.33} parent=11 // pred_region
        _
      $region16: #{sgn_forward.33} parent=11 // pred_fallthru
        _
      // Predicated region
      $region17: #{sgn_forward.33} parent=11 // pred_check
        %p166 = pneg %p92
      $region18: #{sgn_forward.33} parent=11 // pred_check_branch
        %168 = sbr.rel (%p166) target = $region20
      $region19: #{sgn_forward.33} parent=11 // pred_region
        _
      $region20: #{sgn_forward.33} parent=11 // pred_fallthru
        _
    $region12: #{sgn_forward.33} parent=5 // pred_fallthru
      _
    %p169 = scmp.lt.s32.totalorder %s10, 2
    // Predicated region
    $region21: #{sgn_forward.33} parent=5 // pred_check
      %p170 = pneg %p169
    $region22: #{sgn_forward.33} parent=5 // pred_check_branch
      %172 = sbr.rel (%p170) target = $region24
    $region23: #{sgn_forward.33} parent=5 // pred_region
      // Predicated region
      $region25: #{sgn_forward.33} parent=23 // pred_check
        %p173 = pneg %p44
      $region26: #{sgn_forward.33} parent=23 // pred_check_branch
        %175 = sbr.rel (%p173) target = $region28
      $region27: #{sgn_forward.33} parent=23 // pred_region
        %s176 = smul.u32 2, %s18
        %p177 = scmp.lt.s32.totalorder %s17, 1
        %s178 = scalar_select %p177, %s17, 1
        %p179 = scmp.lt.s32.totalorder %s176, 1
        %s180 = scalar_select %p179, %s176, 1
        %s181 = smul.addr %s178, 18
        %s182 = sadd.s32 %s180, %s181
        %s183 = smul.addr %s182, 4
        %s184 = scalar_lea.vmem %s0, %s183
        %s185 = smul.u32 2, %s18
      $region28: #{sgn_forward.33} parent=23 // pred_fallthru
        _
      // Predicated region
      $region29: #{sgn_forward.33} parent=23 // pred_check
        %p186 = pneg %p114
      $region30: #{sgn_forward.33} parent=23 // pred_check_branch
        %188 = sbr.rel (%p186) target = $region32
      $region31: #{sgn_forward.33} parent=23 // pred_region
        %s189 = smul.u32 2, %s18
        %p190 = scmp.lt.s32.totalorder %s17, 1
        %s191 = scalar_select %p190, %s17, 1
        %p192 = scmp.lt.s32.totalorder %s189, 1
        %s193 = scalar_select %p192, %s189, 1
        %s194 = smul.addr %s191, 2
        %s195 = sadd.s32 %s193, %s194
        %s196 = smul.addr %s195, 8
        %s197 = scalar_lea.vmem %s3, %s196
        %s198 = smul.u32 2, %s18
      $region32: #{sgn_forward.33} parent=23 // pred_fallthru
        _
    $region24: #{sgn_forward.33} parent=5 // pred_fallthru
      _
    %p199 = scmp.le.s32.totalorder 1, %s10
    %p200 = scmp.lt.s32.totalorder %s10, 3
    %p201 = pnand %p199, %p200
    %p202 = pneg %p201
    // Predicated region
    $region33: #{sgn_forward.33} parent=5 // pred_check
      _
    $region34: #{sgn_forward.33} parent=5 // pred_check_branch
      %204 = sbr.rel (%p201) target = $region36
    $region35: #{sgn_forward.33} parent=5 // pred_region
      %s205 = ssub.s32 %s10, 1
      %s206 = smul.u32 2, %s20
      %p207 = scmp.lt.s32.totalorder %s19, 1
      %s208 = scalar_select %p207, %s19, 1
      %p209 = scmp.lt.s32.totalorder %s206, 1
      %s210 = scalar_select %p209, %s206, 1
      %s211 = smul.addr %s208, 18
      %s212 = sadd.s32 %s210, %s211
      %s213 = smul.addr %s212, 4
      %s214 = scalar_lea.vmem %s0, %s213
      %p215 = pneg %p50
      %p216 = pneg %p47
      %p217 = pneg %p71
      %p218 = pneg %p68
      %p219 = pneg %p92
      %p220 = pneg %p89
      %s221 = smul.u32 2, %s20
      %p222 = scmp.lt.s32.totalorder %s19, 1
      %s223 = scalar_select %p222, %s19, 1
      %p224 = scmp.lt.s32.totalorder %s221, 1
      %s225 = scalar_select %p224, %s221, 1
      %s226 = smul.addr %s223, 2
      %s227 = sadd.s32 %s225, %s226
      %s228 = smul.addr %s227, 8
      %s229 = scalar_lea.vmem %s3, %s228
      %p230 = pneg %p120
      %p231 = pneg %p117
      %p232 = pneg %p148
      %p233 = pneg %p145
      %s234 = smul.u32 2, %s20
      %p235 = scmp.lt.s32.totalorder %s19, 1
      %s236 = scalar_select %p235, %s19, 1
      %p237 = scmp.lt.s32.totalorder %s234, 1
      %s238 = scalar_select %p237, %s234, 1
      %s239 = smul.addr %s236, 2
      %s240 = sadd.s32 %s238, %s239
      %s241 = smul.addr %s240, 8
      %s242 = scalar_lea.vmem %s4, %s241
      %s243 = smul.u32 2, %s20
      %p244 = scmp.lt.s32.totalorder %s19, 1
      %s245 = scalar_select %p244, %s19, 1
      %p246 = scmp.lt.s32.totalorder %s243, 1
      %s247 = scalar_select %p246, %s243, 1
      %s248 = smul.addr %s245, 18
      %s249 = sadd.s32 %s247, %s248
      %s250 = smul.addr %s249, 4
      %s251 = scalar_lea.vmem %s0, %s250
      %s252 = smul.u32 2, %s20
      %s253 = smul.u32 2, %s20
      %p254 = scmp.lt.s32.totalorder %s19, 1
      %s255 = scalar_select %p254, %s19, 1
      %p256 = scmp.lt.s32.totalorder %s253, 1
      %s257 = scalar_select %p256, %s253, 1
      %s258 = smul.addr %s255, 2
      %s259 = sadd.s32 %s257, %s258
      %s260 = smul.addr %s259, 8
      %s261 = scalar_lea.vmem %s3, %s260
      %s262 = smul.u32 2, %s20
      %s263 = smul.u32 2, %s20
      %p264 = scmp.lt.s32.totalorder %s19, 1
      %s265 = scalar_select %p264, %s19, 1
      %p266 = scmp.lt.s32.totalorder %s263, 1
      %s267 = scalar_select %p266, %s263, 1
      %s268 = smul.addr %s265, 2
      %s269 = sadd.s32 %s267, %s268
      %s270 = smul.addr %s269, 8
      %s271 = scalar_lea.vmem %s4, %s270
      %s272 = smul.u32 2, %s20
      %v274 = vld [vmem:[%s1] sm:$0xf]
      %v275 = vld [vmem:[%s251] sm:$0xff]
      %v276 = vld [vmem:[%s251 + $0x8] sm:$0xff]
      %v277 = vld [vmem:[%s251 + $0x10] sm:$0xff]
      %v278 = vld [vmem:[%s251 + $0x18] sm:$0xff]
      %v279 = vld [vmem:[%s251 + $0x20] sm:$0xff]
      %v280 = vld [vmem:[%s251 + $0x28] sm:$0xff]
      %v281 = vld [vmem:[%s251 + $0x30] sm:$0xff]
      %v282 = vld [vmem:[%s251 + $0x38] sm:$0xff]
      %v283 = vld [vmem:[%s251 + $0x40] sm:$0xff]
      %v284 = vld [vmem:[%s2] sm:$0xff]
      %286 = vset.pattern.permute.xlu0 0
      %287 = vperm.xlu0 %286, %v284
      %v288 = vpop.permute.xlu0 %287
      %v299 = vunpack.c.l.b16 %v275
      %v300 = vunpack.c.h.b16 %v275
      %v301 = vunpack.c.l.b16 %v276
      %v302 = vunpack.c.h.b16 %v276
      %v303 = vunpack.c.l.b16 %v277
      %v304 = vunpack.c.h.b16 %v277
      %v305 = vunpack.c.l.b16 %v278
      %v306 = vunpack.c.h.b16 %v278
      %v307 = vunpack.c.l.b16 %v279
      %v308 = vunpack.c.h.b16 %v279
      %v309 = vunpack.c.l.b16 %v280
      %v310 = vunpack.c.h.b16 %v280
      %v311 = vunpack.c.l.b16 %v281
      %v312 = vunpack.c.h.b16 %v281
      %v313 = vunpack.c.l.b16 %v282
      %v314 = vunpack.c.h.b16 %v282
      %v315 = vunpack.c.l.b16 %v283
      %v316 = vunpack.c.h.b16 %v283
      %v317 = vpack.c.b16 %v301, %v299
      %v318 = vpack.c.b16 %v302, %v300
      %v319 = vpack.c.b16 %v305, %v303
      %v320 = vpack.c.b16 %v306, %v304
      %v321 = vpack.c.b16 %v309, %v307
      %v322 = vpack.c.b16 %v310, %v308
      %v323 = vpack.c.b16 %v313, %v311
      %v324 = vpack.c.b16 %v314, %v312
      %v325 = vpack.c.b16 %v315, %v315
      %v326 = vpack.c.b16 %v316, %v316
      %vm335 = vcmask 588800
      %v337 = vsel %vm335, %v274, 0
      %vm339 = vcmask 1043456
      %v341 = vsel %vm339, %v325, 0
      %v344 = vsel %vm339, %v326, 0
      %346 = vmatprep.subr.bf16.mxu0 %v318
      %347 = vmatpush1.bf16.msra.mxu0 %v317
      %348 = vmatprep.subr.bf16.mxu0 %v320
      %349 = vmatpush1.bf16.msra.mxu0 %v319
      %350 = vmatprep.subr.bf16.mxu0 %v322
      %351 = vmatpush1.bf16.msra.mxu0 %v321
      %352 = vmatprep.subr.bf16.mxu0 %v324
      %353 = vmatpush1.bf16.msra.mxu0 %v323
      %354 = vmatprep.subr.bf16.mxu0 %v344
      %355 = vmatpush1.bf16.msra.mxu0 %v341
      %356 = vmatprep.subr.bf16.mxu0 0
      %357 = vmatpush1.bf16.msra.mxu0 0
      %358 = vmatprep.subr.bf16.mxu0 0
      %359 = vmatpush1.bf16.msra.mxu0 0
      %360 = vmatprep.subr.bf16.mxu0 0
      %361 = vmatpush1.bf16.msra.mxu0 0
      %362 = vmatprep.subr.bf16.mxu0 0
      %363 = vmatpush1.bf16.msra.mxu0 0
      %364 = vmatprep.subr.bf16.mxu0 0
      %365 = vmatpush1.bf16.msra.mxu0 0
      %366 = vmatprep.subr.bf16.mxu0 0
      %367 = vmatpush1.bf16.msra.mxu0 0
      %368 = vmatprep.subr.bf16.mxu0 0
      %369 = vmatpush1.bf16.msra.mxu0 0
      %370 = vmatprep.subr.bf16.mxu0 0
      %371 = vmatpush1.bf16.msra.mxu0 0
      %372 = vmatprep.subr.bf16.mxu0 0
      %373 = vmatpush1.bf16.msra.mxu0 0
      %374 = vmatprep.subr.bf16.mxu0 0
      %375 = vmatpush1.bf16.msra.mxu0 0
      %376 = vmatprep.subr.bf16.mxu0 0
      %377 = vmatpush1.bf16.msra.mxu0 0
      %378 = vmatprep.mubr.bf16.mxu0 0
      %379 = vmatmul.mubr.bf16.gmra.mrb[0].mxu0 %v337
      %v380 = vpop.f32.mrb[0].mxu0
      %v381 = vadd.f32 %v288, %v380
      %v382 = vpop.f32.mrb[0].mxu0
      %v383 = vadd.f32 %v288, %v382
      %v384 = vpop.f32.mrb[0].mxu0
      %v385 = vpop.f32.mrb[0].mxu0
      %386 = vdwg.mxu0
      %vm387 = vcmp.ge.f32.partialorder %v381, 0.0
      %vm388 = vcmp.ge.f32.partialorder %v383, 0.0
      %v389 = vmul.f32 %v381, 0.2
      %v390 = vmul.f32 %v383, 0.2
      %v391 = vsel %vm387, %v381, %v389
      %v392 = vsel %vm388, %v383, %v390
      %v393 = vmul.f32 %v391, 0.2
      %v394 = vmul.f32 %v392, 0.2
      %v395 = vld [vmem:[%s261] sm:$0xff]
      %v396 = vld [vmem:[%s261 + $0x8] sm:$0xff]
      %v397 = vadd.f32 %v393, %v395
      %v398 = vadd.f32 %v394, %v396
      %399 = vst [vmem:[%s271] sm:$0xff] %v397
      %400 = vst [vmem:[%s271 + $0x8] sm:$0xff] %v398
      %s401 = smul.u32 2, %s20
      %p402 = scmp.lt.s32.totalorder %s19, 1
      %s403 = scalar_select %p402, %s19, 1
      %p404 = scmp.lt.s32.totalorder %s401, 1
      %s405 = scalar_select %p404, %s401, 1
      %s406 = smul.addr %s403, 2
      %s407 = sadd.s32 %s405, %s406
      %s408 = smul.addr %s407, 8
      %s409 = scalar_lea.vmem %s4, %s408
      // Predicated region
      $region37: #{sgn_forward.33} parent=35 // pred_check
        %p410 = pneg %p145
      $region38: #{sgn_forward.33} parent=35 // pred_check_branch
        %412 = sbr.rel (%p410) target = $region40
      $region39: #{sgn_forward.33} parent=35 // pred_region
        %s413 = smul.u32 2, %s20
      $region40: #{sgn_forward.33} parent=35 // pred_fallthru
        _
    $region36: #{sgn_forward.33} parent=5 // pred_fallthru
      _
    %p414 = scmp.le.s32.totalorder 2, %s10
    // Predicated region
    $region41: #{sgn_forward.33} parent=5 // pred_check
      %p415 = pneg %p414
    $region42: #{sgn_forward.33} parent=5 // pred_check_branch
      %417 = sbr.rel (%p415) target = $region44
    $region43: #{sgn_forward.33} parent=5 // pred_region
      %s418 = ssub.s32 %s10, 2
      // Predicated region
      $region45: #{sgn_forward.33} parent=43 // pred_check
        %p419 = pneg %p151
      $region46: #{sgn_forward.33} parent=43 // pred_check_branch
        %421 = sbr.rel (%p419) target = $region48
      $region47: #{sgn_forward.33} parent=43 // pred_region
        %s422 = smul.u32 2, %s22
        %p423 = scmp.lt.s32.totalorder %s21, 1
        %s424 = scalar_select %p423, %s21, 1
        %p425 = scmp.lt.s32.totalorder %s422, 1
        %s426 = scalar_select %p425, %s422, 1
        %s427 = smul.addr %s424, 2
        %s428 = sadd.s32 %s426, %s427
        %s429 = smul.addr %s428, 8
        %s430 = scalar_lea.vmem %s4, %s429
      $region48: #{sgn_forward.33} parent=43 // pred_fallthru
        _
    $region44: #{sgn_forward.33} parent=5 // pred_fallthru
      _
  $region6: #{sgn_forward.33} parent=0 // loop_footer
    %s14 = sadd.s32 1, %s10
  $region7: #{sgn_forward.33} parent=0 // loop_footer_branch
    %9 = sbr.rel target = $region3
  $region8: #{sgn_forward.33} parent=0 // loop_exit
    _

// kernel: sgn_forward.40
$region0: #{sgn_forward.40}
  #allocation0 [shape = 'u32[]', space=smem, size = 0x4, offset = 0x4, fixed_abs, tag = 'smem constant byte address 0x4 - core index']
  #allocation1 [shape = 'u32[144,128]{1,0:T(1,128)}', space=vmem, size = 0x12000, scoped, tag = 'internal scratch']
  %s0 = inlined_call_operand.vmem [shape: bf16[2,144,256], index: 0, kind: input, shape index: {}]
  %s1 = inlined_call_operand.vmem [shape: bf16[18,144], index: 1, kind: input, shape index: {}]
  %s2 = inlined_call_operand.vmem [shape: f32[18,1], index: 2, kind: input, shape index: {}]
  %s3 = inlined_call_operand.vmem [shape: f32[2,18,256], index: 3, kind: output, shape index: {}]
  %s4 = sld [smem:[#allocation0]]
  $region45: #{sgn_forward.40} parent=0
    _
  %s6 = ssub.s32 1, %s4
  %s7 = scalar_select 0, %s6, %s4
  loop: start=0, step=1, limit=4
  $region2: #{sgn_forward.40} parent=0 // loop_pre_header
    _
  $region3: #{sgn_forward.40} parent=0 // loop_header
    %s9 = sphi 0, %s13
    %p10 = scmp.ge.s32.totalorder %s9, 4
    %s16 = sphi 0, %s28
    %s17 = sphi 0, %s24
    %s18 = sphi 0, %s16
    %s19 = sphi 0, %s17
    %s20 = sphi 0, %s18
    %s21 = sphi 0, %s19
    %s33 = sphi 0, %s35
    %s36 = sphi 0, %s33
    %s37 = sphi 0, %s36
    %s53 = sphi 0, %s37
    %s57 = sphi 0, %s57
    %s59 = sphi 0, %s57
    %s60 = sphi 0, %s59
    %s74 = sphi 0, %s60
    %s78 = sphi 0, %s78
    %s80 = sphi 0, %s78
    %s81 = sphi 0, %s80
    %s95 = sphi 0, %s81
    %s103 = sphi 0, %s105
    %s106 = sphi 0, %s103
    %s107 = sphi 0, %s106
    %s123 = sphi 0, %s107
  $region4: #{sgn_forward.40} parent=0 // loop_header_branch
    %12 = sbr.rel (%p10) target = $region8
  $region5: #{sgn_forward.40} parent=0 // loop_body
    %s14 = ssub.s32 %s9, 1
    %s15 = ssub.s32 %s9, 2
    %s22 = sadd.s32 1, %s17
    %p23 = scmp.ge.s32.totalorder %s22, 1
    %s24 = scalar_select %p23, 0, %s22
    %s25 = sadd.s32 1, %s16
    %s26 = scalar_select %p23, %s25, %s16
    %p27 = scmp.ge.s32.totalorder %s26, 2
    %s28 = scalar_select %p27, 0, %s26
    %s29 = ssub.s32 %s16, %s28
    %s30 = ssub.s32 %s17, %s24
    %s31 = sor.u32 %s29, %s30
    %p32 = scmp.eq.s32.totalorder %s31, 0
    %s34 = sadd.s32 %s33, 1
    %s35 = scalar_select %p32, %s33, %s34
    %p38 = pneg %p32
    %p39 = scmp.eq.s32.totalorder %s9, 1
    %p40 = por %p38, %p39
    %p41 = scmp.ne.s32.totalorder %s33, %s36
    %p42 = scmp.eq.s32.totalorder %s9, 0
    %p43 = por %p41, %p42
    %p44 = scmp.ne.s32.totalorder %s33, %s36
    %p45 = scmp.eq.s32.totalorder %s14, 1
    %p46 = por %p44, %p45
    %p47 = scmp.ne.s32.totalorder %s36, %s37
    %p48 = scmp.eq.s32.totalorder %s14, 0
    %p49 = por %p47, %p48
    %p50 = scmp.ne.s32.totalorder %s36, %s37
    %p51 = scmp.eq.s32.totalorder %s15, 1
    %p52 = por %p50, %p51
    %p54 = scmp.ne.s32.totalorder %s37, %s53
    %p55 = scmp.eq.s32.totalorder %s15, 0
    %p56 = por %p54, %p55
    %s58 = sadd.s32 %s57, 1
    %p61 = scmp.eq.s32.totalorder %s9, 1
    %p62 = scmp.ne.s32.totalorder %s57, %s59
    %p63 = scmp.eq.s32.totalorder %s9, 0
    %p64 = por %p62, %p63
    %p65 = scmp.ne.s32.totalorder %s57, %s59
    %p66 = scmp.eq.s32.totalorder %s14, 1
    %p67 = por %p65, %p66
    %p68 = scmp.ne.s32.totalorder %s59, %s60
    %p69 = scmp.eq.s32.totalorder %s14, 0
    %p70 = por %p68, %p69
    %p71 = scmp.ne.s32.totalorder %s59, %s60
    %p72 = scmp.eq.s32.totalorder %s15, 1
    %p73 = por %p71, %p72
    %p75 = scmp.ne.s32.totalorder %s60, %s74
    %p76 = scmp.eq.s32.totalorder %s15, 0
    %p77 = por %p75, %p76
    %s79 = sadd.s32 %s78, 1
    %p82 = scmp.eq.s32.totalorder %s9, 1
    %p83 = scmp.ne.s32.totalorder %s78, %s80
    %p84 = scmp.eq.s32.totalorder %s9, 0
    %p85 = por %p83, %p84
    %p86 = scmp.ne.s32.totalorder %s78, %s80
    %p87 = scmp.eq.s32.totalorder %s14, 1
    %p88 = por %p86, %p87
    %p89 = scmp.ne.s32.totalorder %s80, %s81
    %p90 = scmp.eq.s32.totalorder %s14, 0
    %p91 = por %p89, %p90
    %p92 = scmp.ne.s32.totalorder %s80, %s81
    %p93 = scmp.eq.s32.totalorder %s15, 1
    %p94 = por %p92, %p93
    %p96 = scmp.ne.s32.totalorder %s81, %s95
    %p97 = scmp.eq.s32.totalorder %s15, 0
    %p98 = por %p96, %p97
    %s99 = ssub.s32 %s16, %s28
    %s100 = ssub.s32 %s17, %s24
    %s101 = sor.u32 %s99, %s100
    %p102 = scmp.eq.s32.totalorder %s101, 0
    %s104 = sadd.s32 %s103, 1
    %s105 = scalar_select %p102, %s103, %s104
    %p108 = pneg %p102
    %p109 = scmp.eq.s32.totalorder %s9, 1
    %p110 = por %p108, %p109
    %p111 = scmp.ne.s32.totalorder %s103, %s106
    %p112 = scmp.eq.s32.totalorder %s9, 0
    %p113 = por %p111, %p112
    %p114 = scmp.ne.s32.totalorder %s103, %s106
    %p115 = scmp.eq.s32.totalorder %s14, 1
    %p116 = por %p114, %p115
    %p117 = scmp.ne.s32.totalorder %s106, %s107
    %p118 = scmp.eq.s32.totalorder %s14, 0
    %p119 = por %p117, %p118
    %p120 = scmp.ne.s32.totalorder %s106, %s107
    %p121 = scmp.eq.s32.totalorder %s15, 1
    %p122 = por %p120, %p121
    %p124 = scmp.ne.s32.totalorder %s107, %s123
    %p125 = scmp.eq.s32.totalorder %s15, 0
    %p126 = por %p124, %p125
    %p127 = scmp.le.s32.totalorder 1, %s9
    %p128 = scmp.lt.s32.totalorder %s9, 3
    %p129 = pnand %p127, %p128
    %p130 = pneg %p129
    // Predicated region
    $region9: #{sgn_forward.40} parent=5 // pred_check
      _
    $region10: #{sgn_forward.40} parent=5 // pred_check_branch
      %132 = sbr.rel (%p129) target = $region12
    $region11: #{sgn_forward.40} parent=5 // pred_region
      %s133 = ssub.s32 %s9, 1
      // Predicated region
      $region13: #{sgn_forward.40} parent=11 // pred_check
        %p134 = pneg %p70
      $region14: #{sgn_forward.40} parent=11 // pred_check_branch
        %136 = sbr.rel (%p134) target = $region16
      $region15: #{sgn_forward.40} parent=11 // pred_region
        _
      $region16: #{sgn_forward.40} parent=11 // pred_fallthru
        _
      // Predicated region
      $region17: #{sgn_forward.40} parent=11 // pred_check
        %p137 = pneg %p91
      $region18: #{sgn_forward.40} parent=11 // pred_check_branch
        %139 = sbr.rel (%p137) target = $region20
      $region19: #{sgn_forward.40} parent=11 // pred_region
        _
      $region20: #{sgn_forward.40} parent=11 // pred_fallthru
        _
    $region12: #{sgn_forward.40} parent=5 // pred_fallthru
      _
    %p140 = scmp.lt.s32.totalorder %s9, 2
    // Predicated region
    $region21: #{sgn_forward.40} parent=5 // pred_check
      %p141 = pneg %p140
    $region22: #{sgn_forward.40} parent=5 // pred_check_branch
      %143 = sbr.rel (%p141) target = $region24
    $region23: #{sgn_forward.40} parent=5 // pred_region
      // Predicated region
      $region25: #{sgn_forward.40} parent=23 // pred_check
        %p144 = pneg %p43
      $region26: #{sgn_forward.40} parent=23 // pred_check_branch
        %146 = sbr.rel (%p144) target = $region28
      $region27: #{sgn_forward.40} parent=23 // pred_region
        %s147 = smul.u32 2, %s17
        %p148 = scmp.lt.s32.totalorder %s16, 1
        %s149 = scalar_select %p148, %s16, 1
        %p150 = scmp.lt.s32.totalorder %s147, 1
        %s151 = scalar_select %p150, %s147, 1
        %s152 = smul.addr %s149, 36
        %s153 = sadd.s32 %s151, %s152
        %s154 = smul.addr %s153, 4
        %s155 = scalar_lea.vmem %s0, %s154
        %s156 = smul.u32 2, %s17
      $region28: #{sgn_forward.40} parent=23 // pred_fallthru
        _
    $region24: #{sgn_forward.40} parent=5 // pred_fallthru
      _
    %p157 = scmp.le.s32.totalorder 1, %s9
    %p158 = scmp.lt.s32.totalorder %s9, 3
    %p159 = pnand %p157, %p158
    %p160 = pneg %p159
    // Predicated region
    $region29: #{sgn_forward.40} parent=5 // pred_check
      _
    $region30: #{sgn_forward.40} parent=5 // pred_check_branch
      %162 = sbr.rel (%p159) target = $region32
    $region31: #{sgn_forward.40} parent=5 // pred_region
      %s163 = ssub.s32 %s9, 1
      %s164 = smul.u32 2, %s19
      %p165 = scmp.lt.s32.totalorder %s18, 1
      %s166 = scalar_select %p165, %s18, 1
      %p167 = scmp.lt.s32.totalorder %s164, 1
      %s168 = scalar_select %p167, %s164, 1
      %s169 = smul.addr %s166, 36
      %s170 = sadd.s32 %s168, %s169
      %s171 = smul.addr %s170, 4
      %s172 = scalar_lea.vmem %s0, %s171
      %p173 = pneg %p49
      %p174 = pneg %p46
      %p175 = pneg %p70
      %p176 = pneg %p67
      %p177 = pneg %p91
      %p178 = pneg %p88
      %p179 = pneg %p119
      %p180 = pneg %p116
      %s181 = smul.u32 2, %s19
      %p182 = scmp.lt.s32.totalorder %s18, 1
      %s183 = scalar_select %p182, %s18, 1
      %p184 = scmp.lt.s32.totalorder %s181, 1
      %s185 = scalar_select %p184, %s181, 1
      %s186 = smul.addr %s183, 6
      %s187 = sadd.s32 %s185, %s186
      %s188 = smul.addr %s187, 8
      %s189 = scalar_lea.vmem %s3, %s188
      %s190 = smul.u32 2, %s19
      %p191 = scmp.lt.s32.totalorder %s18, 1
      %s192 = scalar_select %p191, %s18, 1
      %p193 = scmp.lt.s32.totalorder %s190, 1
      %s194 = scalar_select %p193, %s190, 1
      %s195 = smul.addr %s192, 36
      %s196 = sadd.s32 %s194, %s195
      %s197 = smul.addr %s196, 4
      %s198 = scalar_lea.vmem %s0, %s197
      %s199 = smul.u32 2, %s19
      %s200 = smul.u32 2, %s19
      %p201 = scmp.lt.s32.totalorder %s18, 1
      %s202 = scalar_select %p201, %s18, 1
      %p203 = scmp.lt.s32.totalorder %s200, 1
      %s204 = scalar_select %p203, %s200, 1
      %s205 = smul.addr %s202, 6
      %s206 = sadd.s32 %s204, %s205
      %s207 = smul.addr %s206, 8
      %s208 = scalar_lea.vmem %s3, %s207
      %s209 = smul.u32 2, %s19
      %v211 = vld [vmem:[%s1] sm:$0xff]
      %v212 = vld [vmem:[%s1 + $0x8] sm:$0xff]
      %v213 = vld [vmem:[%s1 + $0x10] sm:$0x11]
      %v214 = vld [vmem:[%s198] sm:$0xff]
      %v215 = vld [vmem:[%s198 + $0x8] sm:$0xff]
      %v216 = vld [vmem:[%s198 + $0x10] sm:$0xff]
      %v217 = vld [vmem:[%s198 + $0x18] sm:$0xff]
      %v218 = vld [vmem:[%s198 + $0x20] sm:$0xff]
      %v219 = vld [vmem:[%s198 + $0x28] sm:$0xff]
      %v220 = vld [vmem:[%s198 + $0x30] sm:$0xff]
      %v221 = vld [vmem:[%s198 + $0x38] sm:$0xff]
      %v222 = vld [vmem:[%s198 + $0x40] sm:$0xff]
      %v223 = vld [vmem:[%s198 + $0x48] sm:$0xff]
      %v224 = vld [vmem:[%s198 + $0x50] sm:$0xff]
      %v225 = vld [vmem:[%s198 + $0x58] sm:$0xff]
      %v226 = vld [vmem:[%s198 + $0x60] sm:$0xff]
      %v227 = vld [vmem:[%s198 + $0x68] sm:$0xff]
      %v228 = vld [vmem:[%s198 + $0x70] sm:$0xff]
      %v229 = vld [vmem:[%s198 + $0x78] sm:$0xff]
      %v230 = vld [vmem:[%s198 + $0x80] sm:$0xff]
      %v231 = vld [vmem:[%s198 + $0x88] sm:$0xff]
      %v232 = vld [vmem:[%s2] sm:$0xff]
      %v233 = vld [vmem:[%s2 + $0x8] sm:$0xff]
      %v234 = vld [vmem:[%s2 + $0x10] sm:$0x3]
      %236 = vset.pattern.permute.xlu0 0
      %237 = vperm.xlu0 %236, %v232
      %v238 = vpop.permute.xlu0 %237
      %241 = vset.pattern.permute.xlu0 0
      %242 = vperm.xlu0 %241, %v233
      %v243 = vpop.permute.xlu0 %242
      %246 = vset.pattern.permute.xlu0 0
      %247 = vperm.xlu0 %246, %v234
      %v248 = vpop.permute.xlu0 %247
      %v253 = vunpack.c.l.b16 %v211
      %v254 = vunpack.c.h.b16 %v211
      %v255 = vunpack.c.l.b16 %v212
      %v256 = vunpack.c.h.b16 %v212
      %v257 = vunpack.c.l.b16 %v213
      %v258 = vunpack.c.h.b16 %v213
      %v259 = vpack.c.b16 %v255, %v253
      %v260 = vpack.c.b16 %v256, %v254
      %v261 = vpack.c.b16 %v257, %v257
      %v262 = vpack.c.b16 %v258, %v258
      %v283 = vunpack.c.l.b16 %v214
      %v284 = vunpack.c.h.b16 %v214
      %v285 = vunpack.c.l.b16 %v215
      %v286 = vunpack.c.h.b16 %v215
      %v287 = vunpack.c.l.b16 %v216
      %v288 = vunpack.c.h.b16 %v216
      %v289 = vunpack.c.l.b16 %v217
      %v290 = vunpack.c.h.b16 %v217
      %v291 = vunpack.c.l.b16 %v218
      %v292 = vunpack.c.h.b16 %v218
      %v293 = vunpack.c.l.b16 %v219
      %v294 = vunpack.c.h.b16 %v219
      %v295 = vunpack.c.l.b16 %v220
      %v296 = vunpack.c.h.b16 %v220
      %v297 = vunpack.c.l.b16 %v221
      %v298 = vunpack.c.h.b16 %v221
      %v299 = vunpack.c.l.b16 %v222
      %v300 = vunpack.c.h.b16 %v222
      %v301 = vunpack.c.l.b16 %v223
      %v302 = vunpack.c.h.b16 %v223
      %v303 = vunpack.c.l.b16 %v224
      %v304 = vunpack.c.h.b16 %v224
      %v305 = vunpack.c.l.b16 %v225
      %v306 = vunpack.c.h.b16 %v225
      %v307 = vunpack.c.l.b16 %v226
      %v308 = vunpack.c.h.b16 %v226
      %v309 = vunpack.c.l.b16 %v227
      %v310 = vunpack.c.h.b16 %v227
      %v311 = vunpack.c.l.b16 %v228
      %v312 = vunpack.c.h.b16 %v228
      %v313 = vunpack.c.l.b16 %v229
      %v314 = vunpack.c.h.b16 %v229
      %v315 = vunpack.c.l.b16 %v230
      %v316 = vunpack.c.h.b16 %v230
      %v317 = vunpack.c.l.b16 %v231
      %v318 = vunpack.c.h.b16 %v231
      %v319 = vpack.c.b16 %v285, %v283
      %v320 = vpack.c.b16 %v286, %v284
      %v321 = vpack.c.b16 %v289, %v287
      %v322 = vpack.c.b16 %v290, %v288
      %v323 = vpack.c.b16 %v293, %v291
      %v324 = vpack.c.b16 %v294, %v292
      %v325 = vpack.c.b16 %v297, %v295
      %v326 = vpack.c.b16 %v298, %v296
      %v327 = vpack.c.b16 %v301, %v299
      %v328 = vpack.c.b16 %v302, %v300
      %v329 = vpack.c.b16 %v305, %v303
      %v330 = vpack.c.b16 %v306, %v304
      %v331 = vpack.c.b16 %v309, %v307
      %v332 = vpack.c.b16 %v310, %v308
      %v333 = vpack.c.b16 %v313, %v311
      %v334 = vpack.c.b16 %v314, %v312
      %v335 = vpack.c.b16 %v317, %v315
      %v336 = vpack.c.b16 %v318, %v316
      %vm355 = vcmask 130048
      %v357 = vsel %vm355, %v260, 0
      %v360 = vsel %vm355, %v262, 0
      %362 = vmatprep.subr.bf16.mxu0 %v320
      %363 = vmatpush1.bf16.msra.mxu0 %v319
      %364 = vmatprep.subr.bf16.mxu0 %v322
      %365 = vmatpush1.bf16.msra.mxu0 %v321
      %366 = vmatprep.subr.bf16.mxu0 %v324
      %367 = vmatpush1.bf16.msra.mxu0 %v323
      %368 = vmatprep.subr.bf16.mxu0 %v326
      %369 = vmatpush1.bf16.msra.mxu0 %v325
      %370 = vmatprep.subr.bf16.mxu0 %v328
      %371 = vmatpush1.bf16.msra.mxu0 %v327
      %372 = vmatprep.subr.bf16.mxu0 %v330
      %373 = vmatpush1.bf16.msra.mxu0 %v329
      %374 = vmatprep.subr.bf16.mxu0 %v332
      %375 = vmatpush1.bf16.msra.mxu0 %v331
      %376 = vmatprep.subr.bf16.mxu0 %v334
      %377 = vmatpush1.bf16.msra.mxu0 %v333
      %378 = vmatprep.subr.bf16.mxu0 %v336
      %379 = vmatpush1.bf16.msra.mxu0 %v335
      %380 = vmatprep.subr.bf16.mxu0 0
      %381 = vmatpush1.bf16.msra.mxu0 0
      %382 = vmatprep.subr.bf16.mxu0 0
      %383 = vmatpush1.bf16.msra.mxu0 0
      %384 = vmatprep.subr.bf16.mxu0 0
      %385 = vmatpush1.bf16.msra.mxu0 0
      %386 = vmatprep.subr.bf16.mxu0 0
      %387 = vmatpush1.bf16.msra.mxu0 0
      %388 = vmatprep.subr.bf16.mxu0 0
      %389 = vmatpush1.bf16.msra.mxu0 0
      %390 = vmatprep.subr.bf16.mxu0 0
      %391 = vmatpush1.bf16.msra.mxu0 0
      %392 = vmatprep.subr.bf16.mxu0 0
      %393 = vmatpush1.bf16.msra.mxu0 0
      %394 = vmatprep.mubr.bf16.mxu0 %v357
      %395 = vmatmul.mubr.bf16.gmra.mrb[0].mxu0 %v259
      %v396 = vpop.f32.mrb[0].mxu0
      %v397 = vadd.f32 %v238, %v396
      %v398 = vpop.f32.mrb[0].mxu0
      %v399 = vadd.f32 %v238, %v398
      %v400 = vpop.f32.mrb[0].mxu0
      %v401 = vadd.f32 %v243, %v400
      %v402 = vpop.f32.mrb[0].mxu0
      %v403 = vadd.f32 %v243, %v402
      %404 = vmatprep.mubr.bf16.mxu0 %v360
      %405 = vmatmul.mubr.bf16.gmra.mrb[0].mxu0 %v261
      %v406 = vpop.f32.mrb[0].mxu0
      %v407 = vadd.f32 %v248, %v406
      %v408 = vpop.f32.mrb[0].mxu0
      %v409 = vadd.f32 %v248, %v408
      %v410 = vpop.f32.mrb[0].mxu0
      %v411 = vpop.f32.mrb[0].mxu0
      %412 = vdwg.mxu0
      %413 = vst [vmem:[%s208] sm:$0xff] %v397
      %414 = vst [vmem:[%s208 + $0x8] sm:$0xff] %v399
      %415 = vst [vmem:[%s208 + $0x10] sm:$0xff] %v401
      %416 = vst [vmem:[%s208 + $0x18] sm:$0xff] %v403
      %417 = vst [vmem:[%s208 + $0x20] sm:$0x3] %v407
      %418 = vst [vmem:[%s208 + $0x28] sm:$0x3] %v409
      %s419 = smul.u32 2, %s19
      %p420 = scmp.lt.s32.totalorder %s18, 1
      %s421 = scalar_select %p420, %s18, 1
      %p422 = scmp.lt.s32.totalorder %s419, 1
      %s423 = scalar_select %p422, %s419, 1
      %s424 = smul.addr %s421, 6
      %s425 = sadd.s32 %s423, %s424
      %s426 = smul.addr %s425, 8
      %s427 = scalar_lea.vmem %s3, %s426
      // Predicated region
      $region33: #{sgn_forward.40} parent=31 // pred_check
        %p428 = pneg %p116
      $region34: #{sgn_forward.40} parent=31 // pred_check_branch
        %430 = sbr.rel (%p428) target = $region36
      $region35: #{sgn_forward.40} parent=31 // pred_region
        %s431 = smul.u32 2, %s19
      $region36: #{sgn_forward.40} parent=31 // pred_fallthru
        _
    $region32: #{sgn_forward.40} parent=5 // pred_fallthru
      _
    %p432 = scmp.le.s32.totalorder 2, %s9
    // Predicated region
    $region37: #{sgn_forward.40} parent=5 // pred_check
      %p433 = pneg %p432
    $region38: #{sgn_forward.40} parent=5 // pred_check_branch
      %435 = sbr.rel (%p433) target = $region40
    $region39: #{sgn_forward.40} parent=5 // pred_region
      %s436 = ssub.s32 %s9, 2
      // Predicated region
      $region41: #{sgn_forward.40} parent=39 // pred_check
        %p437 = pneg %p122
      $region42: #{sgn_forward.40} parent=39 // pred_check_branch
        %439 = sbr.rel (%p437) target = $region44
      $region43: #{sgn_forward.40} parent=39 // pred_region
        %s440 = smul.u32 2, %s21
        %p441 = scmp.lt.s32.totalorder %s20, 1
        %s442 = scalar_select %p441, %s20, 1
        %p443 = scmp.lt.s32.totalorder %s440, 1
        %s444 = scalar_select %p443, %s440, 1
        %s445 = smul.addr %s442, 6
        %s446 = sadd.s32 %s444, %s445
        %s447 = smul.addr %s446, 8
        %s448 = scalar_lea.vmem %s3, %s447
      $region44: #{sgn_forward.40} parent=39 // pred_fallthru
        _
    $region40: #{sgn_forward.40} parent=5 // pred_fallthru
      _
  $region6: #{sgn_forward.40} parent=0 // loop_footer
    %s13 = sadd.s32 1, %s9
  $region7: #{sgn_forward.40} parent=0 // loop_footer_branch
    %8 = sbr.rel target = $region3
  $region8: #{sgn_forward.40} parent=0 // loop_exit
    _

// kernel: sgn_forward.41
$region0: #{sgn_forward.41}
  #allocation0 [shape = 'u32[]', space=smem, size = 0x4, offset = 0x4, fixed_abs, tag = 'smem constant byte address 0x4 - core index']
  #allocation1 [shape = 'u32[144,128]{1,0:T(1,128)}', space=vmem, size = 0x12000, scoped, tag = 'internal scratch']
  %s0 = inlined_call_operand.vmem [shape: bf16[2,72,256], index: 0, kind: input, shape index: {}]
  %s1 = inlined_call_operand.vmem [shape: bf16[8,72], index: 1, kind: input, shape index: {}]
  %s2 = inlined_call_operand.vmem [shape: f32[8,1], index: 2, kind: input, shape index: {}]
  %s3 = inlined_call_operand.vmem [shape: f32[2,8,256], index: 3, kind: output, shape index: {}]
  %s4 = sld [smem:[#allocation0]]
  $region45: #{sgn_forward.41} parent=0
    _
  %s6 = ssub.s32 1, %s4
  %s7 = scalar_select 0, %s6, %s4
  loop: start=0, step=1, limit=4
  $region2: #{sgn_forward.41} parent=0 // loop_pre_header
    _
  $region3: #{sgn_forward.41} parent=0 // loop_header
    %s9 = sphi 0, %s13
    %p10 = scmp.ge.s32.totalorder %s9, 4
    %s16 = sphi 0, %s28
    %s17 = sphi 0, %s24
    %s18 = sphi 0, %s16
    %s19 = sphi 0, %s17
    %s20 = sphi 0, %s18
    %s21 = sphi 0, %s19
    %s33 = sphi 0, %s35
    %s36 = sphi 0, %s33
    %s37 = sphi 0, %s36
    %s53 = sphi 0, %s37
    %s57 = sphi 0, %s57
    %s59 = sphi 0, %s57
    %s60 = sphi 0, %s59
    %s74 = sphi 0, %s60
    %s78 = sphi 0, %s78
    %s80 = sphi 0, %s78
    %s81 = sphi 0, %s80
    %s95 = sphi 0, %s81
    %s103 = sphi 0, %s105
    %s106 = sphi 0, %s103
    %s107 = sphi 0, %s106
    %s123 = sphi 0, %s107
  $region4: #{sgn_forward.41} parent=0 // loop_header_branch
    %12 = sbr.rel (%p10) target = $region8
  $region5: #{sgn_forward.41} parent=0 // loop_body
    %s14 = ssub.s32 %s9, 1
    %s15 = ssub.s32 %s9, 2
    %s22 = sadd.s32 1, %s17
    %p23 = scmp.ge.s32.totalorder %s22, 1
    %s24 = scalar_select %p23, 0, %s22
    %s25 = sadd.s32 1, %s16
    %s26 = scalar_select %p23, %s25, %s16
    %p27 = scmp.ge.s32.totalorder %s26, 2
    %s28 = scalar_select %p27, 0, %s26
    %s29 = ssub.s32 %s16, %s28
    %s30 = ssub.s32 %s17, %s24
    %s31 = sor.u32 %s29, %s30
    %p32 = scmp.eq.s32.totalorder %s31, 0
    %s34 = sadd.s32 %s33, 1
    %s35 = scalar_select %p32, %s33, %s34
    %p38 = pneg %p32
    %p39 = scmp.eq.s32.totalorder %s9, 1
    %p40 = por %p38, %p39
    %p41 = scmp.ne.s32.totalorder %s33, %s36
    %p42 = scmp.eq.s32.totalorder %s9, 0
    %p43 = por %p41, %p42
    %p44 = scmp.ne.s32.totalorder %s33, %s36
    %p45 = scmp.eq.s32.totalorder %s14, 1
    %p46 = por %p44, %p45
    %p47 = scmp.ne.s32.totalorder %s36, %s37
    %p48 = scmp.eq.s32.totalorder %s14, 0
    %p49 = por %p47, %p48
    %p50 = scmp.ne.s32.totalorder %s36, %s37
    %p51 = scmp.eq.s32.totalorder %s15, 1
    %p52 = por %p50, %p51
    %p54 = scmp.ne.s32.totalorder %s37, %s53
    %p55 = scmp.eq.s32.totalorder %s15, 0
    %p56 = por %p54, %p55
    %s58 = sadd.s32 %s57, 1
    %p61 = scmp.eq.s32.totalorder %s9, 1
    %p62 = scmp.ne.s32.totalorder %s57, %s59
    %p63 = scmp.eq.s32.totalorder %s9, 0
    %p64 = por %p62, %p63
    %p65 = scmp.ne.s32.totalorder %s57, %s59
    %p66 = scmp.eq.s32.totalorder %s14, 1
    %p67 = por %p65, %p66
    %p68 = scmp.ne.s32.totalorder %s59, %s60
    %p69 = scmp.eq.s32.totalorder %s14, 0
    %p70 = por %p68, %p69
    %p71 = scmp.ne.s32.totalorder %s59, %s60
    %p72 = scmp.eq.s32.totalorder %s15, 1
    %p73 = por %p71, %p72
    %p75 = scmp.ne.s32.totalorder %s60, %s74
    %p76 = scmp.eq.s32.totalorder %s15, 0
    %p77 = por %p75, %p76
    %s79 = sadd.s32 %s78, 1
    %p82 = scmp.eq.s32.totalorder %s9, 1
    %p83 = scmp.ne.s32.totalorder %s78, %s80
    %p84 = scmp.eq.s32.totalorder %s9, 0
    %p85 = por %p83, %p84
    %p86 = scmp.ne.s32.totalorder %s78, %s80
    %p87 = scmp.eq.s32.totalorder %s14, 1
    %p88 = por %p86, %p87
    %p89 = scmp.ne.s32.totalorder %s80, %s81
    %p90 = scmp.eq.s32.totalorder %s14, 0
    %p91 = por %p89, %p90
    %p92 = scmp.ne.s32.totalorder %s80, %s81
    %p93 = scmp.eq.s32.totalorder %s15, 1
    %p94 = por %p92, %p93
    %p96 = scmp.ne.s32.totalorder %s81, %s95
    %p97 = scmp.eq.s32.totalorder %s15, 0
    %p98 = por %p96, %p97
    %s99 = ssub.s32 %s16, %s28
    %s100 = ssub.s32 %s17, %s24
    %s101 = sor.u32 %s99, %s100
    %p102 = scmp.eq.s32.totalorder %s101, 0
    %s104 = sadd.s32 %s103, 1
    %s105 = scalar_select %p102, %s103, %s104
    %p108 = pneg %p102
    %p109 = scmp.eq.s32.totalorder %s9, 1
    %p110 = por %p108, %p109
    %p111 = scmp.ne.s32.totalorder %s103, %s106
    %p112 = scmp.eq.s32.totalorder %s9, 0
    %p113 = por %p111, %p112
    %p114 = scmp.ne.s32.totalorder %s103, %s106
    %p115 = scmp.eq.s32.totalorder %s14, 1
    %p116 = por %p114, %p115
    %p117 = scmp.ne.s32.totalorder %s106, %s107
    %p118 = scmp.eq.s32.totalorder %s14, 0
    %p119 = por %p117, %p118
    %p120 = scmp.ne.s32.totalorder %s106, %s107
    %p121 = scmp.eq.s32.totalorder %s15, 1
    %p122 = por %p120, %p121
    %p124 = scmp.ne.s32.totalorder %s107, %s123
    %p125 = scmp.eq.s32.totalorder %s15, 0
    %p126 = por %p124, %p125
    %p127 = scmp.le.s32.totalorder 1, %s9
    %p128 = scmp.lt.s32.totalorder %s9, 3
    %p129 = pnand %p127, %p128
    %p130 = pneg %p129
    // Predicated region
    $region9: #{sgn_forward.41} parent=5 // pred_check
      _
    $region10: #{sgn_forward.41} parent=5 // pred_check_branch
      %132 = sbr.rel (%p129) target = $region12
    $region11: #{sgn_forward.41} parent=5 // pred_region
      %s133 = ssub.s32 %s9, 1
      // Predicated region
      $region13: #{sgn_forward.41} parent=11 // pred_check
        %p134 = pneg %p70
      $region14: #{sgn_forward.41} parent=11 // pred_check_branch
        %136 = sbr.rel (%p134) target = $region16
      $region15: #{sgn_forward.41} parent=11 // pred_region
        _
      $region16: #{sgn_forward.41} parent=11 // pred_fallthru
        _
      // Predicated region
      $region17: #{sgn_forward.41} parent=11 // pred_check
        %p137 = pneg %p91
      $region18: #{sgn_forward.41} parent=11 // pred_check_branch
        %139 = sbr.rel (%p137) target = $region20
      $region19: #{sgn_forward.41} parent=11 // pred_region
        _
      $region20: #{sgn_forward.41} parent=11 // pred_fallthru
        _
    $region12: #{sgn_forward.41} parent=5 // pred_fallthru
      _
    %p140 = scmp.lt.s32.totalorder %s9, 2
    // Predicated region
    $region21: #{sgn_forward.41} parent=5 // pred_check
      %p141 = pneg %p140
    $region22: #{sgn_forward.41} parent=5 // pred_check_branch
      %143 = sbr.rel (%p141) target = $region24
    $region23: #{sgn_forward.41} parent=5 // pred_region
      // Predicated region
      $region25: #{sgn_forward.41} parent=23 // pred_check
        %p144 = pneg %p43
      $region26: #{sgn_forward.41} parent=23 // pred_check_branch
        %146 = sbr.rel (%p144) target = $region28
      $region27: #{sgn_forward.41} parent=23 // pred_region
        %s147 = smul.u32 2, %s17
        %p148 = scmp.lt.s32.totalorder %s16, 1
        %s149 = scalar_select %p148, %s16, 1
        %p150 = scmp.lt.s32.totalorder %s147, 1
        %s151 = scalar_select %p150, %s147, 1
        %s152 = smul.addr %s149, 18
        %s153 = sadd.s32 %s151, %s152
        %s154 = smul.addr %s153, 4
        %s155 = scalar_lea.vmem %s0, %s154
        %s156 = smul.u32 2, %s17
      $region28: #{sgn_forward.41} parent=23 // pred_fallthru
        _
    $region24: #{sgn_forward.41} parent=5 // pred_fallthru
      _
    %p157 = scmp.le.s32.totalorder 1, %s9
    %p158 = scmp.lt.s32.totalorder %s9, 3
    %p159 = pnand %p157, %p158
    %p160 = pneg %p159
    // Predicated region
    $region29: #{sgn_forward.41} parent=5 // pred_check
      _
    $region30: #{sgn_forward.41} parent=5 // pred_check_branch
      %162 = sbr.rel (%p159) target = $region32
    $region31: #{sgn_forward.41} parent=5 // pred_region
      %s163 = ssub.s32 %s9, 1
      %s164 = smul.u32 2, %s19
      %p165 = scmp.lt.s32.totalorder %s18, 1
      %s166 = scalar_select %p165, %s18, 1
      %p167 = scmp.lt.s32.totalorder %s164, 1
      %s168 = scalar_select %p167, %s164, 1
      %s169 = smul.addr %s166, 18
      %s170 = sadd.s32 %s168, %s169
      %s171 = smul.addr %s170, 4
      %s172 = scalar_lea.vmem %s0, %s171
      %p173 = pneg %p49
      %p174 = pneg %p46
      %p175 = pneg %p70
      %p176 = pneg %p67
      %p177 = pneg %p91
      %p178 = pneg %p88
      %p179 = pneg %p119
      %p180 = pneg %p116
      %s181 = smul.u32 2, %s19
      %p182 = scmp.lt.s32.totalorder %s18, 1
      %s183 = scalar_select %p182, %s18, 1
      %p184 = scmp.lt.s32.totalorder %s181, 1
      %s185 = scalar_select %p184, %s181, 1
      %s186 = smul.addr %s183, 2
      %s187 = sadd.s32 %s185, %s186
      %s188 = smul.addr %s187, 8
      %s189 = scalar_lea.vmem %s3, %s188
      %s190 = smul.u32 2, %s19
      %p191 = scmp.lt.s32.totalorder %s18, 1
      %s192 = scalar_select %p191, %s18, 1
      %p193 = scmp.lt.s32.totalorder %s190, 1
      %s194 = scalar_select %p193, %s190, 1
      %s195 = smul.addr %s192, 18
      %s196 = sadd.s32 %s194, %s195
      %s197 = smul.addr %s196, 4
      %s198 = scalar_lea.vmem %s0, %s197
      %s199 = smul.u32 2, %s19
      %s200 = smul.u32 2, %s19
      %p201 = scmp.lt.s32.totalorder %s18, 1
      %s202 = scalar_select %p201, %s18, 1
      %p203 = scmp.lt.s32.totalorder %s200, 1
      %s204 = scalar_select %p203, %s200, 1
      %s205 = smul.addr %s202, 2
      %s206 = sadd.s32 %s204, %s205
      %s207 = smul.addr %s206, 8
      %s208 = scalar_lea.vmem %s3, %s207
      %s209 = smul.u32 2, %s19
      %v211 = vld [vmem:[%s1] sm:$0xf]
      %v212 = vld [vmem:[%s198] sm:$0xff]
      %v213 = vld [vmem:[%s198 + $0x8] sm:$0xff]
      %v214 = vld [vmem:[%s198 + $0x10] sm:$0xff]
      %v215 = vld [vmem:[%s198 + $0x18] sm:$0xff]
      %v216 = vld [vmem:[%s198 + $0x20] sm:$0xff]
      %v217 = vld [vmem:[%s198 + $0x28] sm:$0xff]
      %v218 = vld [vmem:[%s198 + $0x30] sm:$0xff]
      %v219 = vld [vmem:[%s198 + $0x38] sm:$0xff]
      %v220 = vld [vmem:[%s198 + $0x40] sm:$0xff]
      %v221 = vld [vmem:[%s2] sm:$0xff]
      %223 = vset.pattern.permute.xlu0 0
      %224 = vperm.xlu0 %223, %v221
      %v225 = vpop.permute.xlu0 %224
      %v236 = vunpack.c.l.b16 %v212
      %v237 = vunpack.c.h.b16 %v212
      %v238 = vunpack.c.l.b16 %v213
      %v239 = vunpack.c.h.b16 %v213
      %v240 = vunpack.c.l.b16 %v214
      %v241 = vunpack.c.h.b16 %v214
      %v242 = vunpack.c.l.b16 %v215
      %v243 = vunpack.c.h.b16 %v215
      %v244 = vunpack.c.l.b16 %v216
      %v245 = vunpack.c.h.b16 %v216
      %v246 = vunpack.c.l.b16 %v217
      %v247 = vunpack.c.h.b16 %v217
      %v248 = vunpack.c.l.b16 %v218
      %v249 = vunpack.c.h.b16 %v218
      %v250 = vunpack.c.l.b16 %v219
      %v251 = vunpack.c.h.b16 %v219
      %v252 = vunpack.c.l.b16 %v220
      %v253 = vunpack.c.h.b16 %v220
      %v254 = vpack.c.b16 %v238, %v236
      %v255 = vpack.c.b16 %v239, %v237
      %v256 = vpack.c.b16 %v242, %v240
      %v257 = vpack.c.b16 %v243, %v241
      %v258 = vpack.c.b16 %v246, %v244
      %v259 = vpack.c.b16 %v247, %v245
      %v260 = vpack.c.b16 %v250, %v248
      %v261 = vpack.c.b16 %v251, %v249
      %v262 = vpack.c.b16 %v252, %v252
      %v263 = vpack.c.b16 %v253, %v253
      %vm272 = vcmask 588800
      %v274 = vsel %vm272, %v211, 0
      %vm276 = vcmask 1043456
      %v278 = vsel %vm276, %v262, 0
      %v281 = vsel %vm276, %v263, 0
      %283 = vmatprep.subr.bf16.mxu0 %v255
      %284 = vmatpush1.bf16.msra.mxu0 %v254
      %285 = vmatprep.subr.bf16.mxu0 %v257
      %286 = vmatpush1.bf16.msra.mxu0 %v256
      %287 = vmatprep.subr.bf16.mxu0 %v259
      %288 = vmatpush1.bf16.msra.mxu0 %v258
      %289 = vmatprep.subr.bf16.mxu0 %v261
      %290 = vmatpush1.bf16.msra.mxu0 %v260
      %291 = vmatprep.subr.bf16.mxu0 %v281
      %292 = vmatpush1.bf16.msra.mxu0 %v278
      %293 = vmatprep.subr.bf16.mxu0 0
      %294 = vmatpush1.bf16.msra.mxu0 0
      %295 = vmatprep.subr.bf16.mxu0 0
      %296 = vmatpush1.bf16.msra.mxu0 0
      %297 = vmatprep.subr.bf16.mxu0 0
      %298 = vmatpush1.bf16.msra.mxu0 0
      %299 = vmatprep.subr.bf16.mxu0 0
      %300 = vmatpush1.bf16.msra.mxu0 0
      %301 = vmatprep.subr.bf16.mxu0 0
      %302 = vmatpush1.bf16.msra.mxu0 0
      %303 = vmatprep.subr.bf16.mxu0 0
      %304 = vmatpush1.bf16.msra.mxu0 0
      %305 = vmatprep.subr.bf16.mxu0 0
      %306 = vmatpush1.bf16.msra.mxu0 0
      %307 = vmatprep.subr.bf16.mxu0 0
      %308 = vmatpush1.bf16.msra.mxu0 0
      %309 = vmatprep.subr.bf16.mxu0 0
      %310 = vmatpush1.bf16.msra.mxu0 0
      %311 = vmatprep.subr.bf16.mxu0 0
      %312 = vmatpush1.bf16.msra.mxu0 0
      %313 = vmatprep.subr.bf16.mxu0 0
      %314 = vmatpush1.bf16.msra.mxu0 0
      %315 = vmatprep.mubr.bf16.mxu0 0
      %316 = vmatmul.mubr.bf16.gmra.mrb[0].mxu0 %v274
      %v317 = vpop.f32.mrb[0].mxu0
      %v318 = vadd.f32 %v225, %v317
      %v319 = vpop.f32.mrb[0].mxu0
      %v320 = vadd.f32 %v225, %v319
      %v321 = vpop.f32.mrb[0].mxu0
      %v322 = vpop.f32.mrb[0].mxu0
      %323 = vdwg.mxu0
      %324 = vst [vmem:[%s208] sm:$0xff] %v318
      %325 = vst [vmem:[%s208 + $0x8] sm:$0xff] %v320
      %s326 = smul.u32 2, %s19
      %p327 = scmp.lt.s32.totalorder %s18, 1
      %s328 = scalar_select %p327, %s18, 1
      %p329 = scmp.lt.s32.totalorder %s326, 1
      %s330 = scalar_select %p329, %s326, 1
      %s331 = smul.addr %s328, 2
      %s332 = sadd.s32 %s330, %s331
      %s333 = smul.addr %s332, 8
      %s334 = scalar_lea.vmem %s3, %s333
      // Predicated region
      $region33: #{sgn_forward.41} parent=31 // pred_check
        %p335 = pneg %p116
      $region34: #{sgn_forward.41} parent=31 // pred_check_branch
        %337 = sbr.rel (%p335) target = $region36
      $region35: #{sgn_forward.41} parent=31 // pred_region
        %s338 = smul.u32 2, %s19
      $region36: #{sgn_forward.41} parent=31 // pred_fallthru
        _
    $region32: #{sgn_forward.41} parent=5 // pred_fallthru
      _
    %p339 = scmp.le.s32.totalorder 2, %s9
    // Predicated region
    $region37: #{sgn_forward.41} parent=5 // pred_check
      %p340 = pneg %p339
    $region38: #{sgn_forward.41} parent=5 // pred_check_branch
      %342 = sbr.rel (%p340) target = $region40
    $region39: #{sgn_forward.41} parent=5 // pred_region
      %s343 = ssub.s32 %s9, 2
      // Predicated region
      $region41: #{sgn_forward.41} parent=39 // pred_check
        %p344 = pneg %p122
      $region42: #{sgn_forward.41} parent=39 // pred_check_branch
        %346 = sbr.rel (%p344) target = $region44
      $region43: #{sgn_forward.41} parent=39 // pred_region
        %s347 = smul.u32 2, %s21
        %p348 = scmp.lt.s32.totalorder %s20, 1
        %s349 = scalar_select %p348, %s20, 1
        %p350 = scmp.lt.s32.totalorder %s347, 1
        %s351 = scalar_select %p350, %s347, 1
        %s352 = smul.addr %s349, 2
        %s353 = sadd.s32 %s351, %s352
        %s354 = smul.addr %s353, 8
        %s355 = scalar_lea.vmem %s3, %s354
      $region44: #{sgn_forward.41} parent=39 // pred_fallthru
        _
    $region40: #{sgn_forward.41} parent=5 // pred_fallthru
      _
  $region6: #{sgn_forward.41} parent=0 // loop_footer
    %s13 = sadd.s32 1, %s9
  $region7: #{sgn_forward.41} parent=0 // loop_footer_branch
    %8 = sbr.rel target = $region3
  $region8: #{sgn_forward.41} parent=0 // loop_exit
    _

// kernel: sgn_forward.63
$region0: #{sgn_forward.63}
  #allocation0 [shape = 'u32[]', space=smem, size = 0x4, offset = 0x4, fixed_abs, tag = 'smem constant byte address 0x4 - core index']
  #allocation1 [shape = 'u32[144,128]{1,0:T(1,128)}', space=vmem, size = 0x12000, scoped, tag = 'internal scratch']
  %s0 = inlined_call_operand.vmem [shape: bf16[2,72,256], index: 0, kind: input, shape index: {}]
  %s1 = inlined_call_operand.vmem [shape: bf16[4,72], index: 1, kind: input, shape index: {}]
  %s2 = inlined_call_operand.vmem [shape: f32[4,1], index: 2, kind: input, shape index: {}]
  %s3 = inlined_call_operand.vmem [shape: f32[2,4,256], index: 3, kind: input, shape index: {}]
  %s4 = inlined_call_operand.vmem [shape: f32[2,4,256], index: 4, kind: output, shape index: {}]
  %s5 = sld [smem:[#allocation0]]
  $region49: #{sgn_forward.63} parent=0
    _
  %s7 = ssub.s32 1, %s5
  %s8 = scalar_select 0, %s7, %s5
  loop: start=0, step=1, limit=4
  $region2: #{sgn_forward.63} parent=0 // loop_pre_header
    _
  $region3: #{sgn_forward.63} parent=0 // loop_header
    %s10 = sphi 0, %s14
    %p11 = scmp.ge.s32.totalorder %s10, 4
    %s17 = sphi 0, %s29
    %s18 = sphi 0, %s25
    %s19 = sphi 0, %s17
    %s20 = sphi 0, %s18
    %s21 = sphi 0, %s19
    %s22 = sphi 0, %s20
    %s34 = sphi 0, %s36
    %s37 = sphi 0, %s34
    %s38 = sphi 0, %s37
    %s54 = sphi 0, %s38
    %s58 = sphi 0, %s58
    %s60 = sphi 0, %s58
    %s61 = sphi 0, %s60
    %s75 = sphi 0, %s61
    %s79 = sphi 0, %s79
    %s81 = sphi 0, %s79
    %s82 = sphi 0, %s81
    %s96 = sphi 0, %s82
    %s104 = sphi 0, %s106
    %s107 = sphi 0, %s104
    %s108 = sphi 0, %s107
    %s124 = sphi 0, %s108
    %s132 = sphi 0, %s134
    %s135 = sphi 0, %s132
    %s136 = sphi 0, %s135
    %s152 = sphi 0, %s136
  $region4: #{sgn_forward.63} parent=0 // loop_header_branch
    %13 = sbr.rel (%p11) target = $region8
  $region5: #{sgn_forward.63} parent=0 // loop_body
    %s15 = ssub.s32 %s10, 1
    %s16 = ssub.s32 %s10, 2
    %s23 = sadd.s32 1, %s18
    %p24 = scmp.ge.s32.totalorder %s23, 1
    %s25 = scalar_select %p24, 0, %s23
    %s26 = sadd.s32 1, %s17
    %s27 = scalar_select %p24, %s26, %s17
    %p28 = scmp.ge.s32.totalorder %s27, 2
    %s29 = scalar_select %p28, 0, %s27
    %s30 = ssub.s32 %s17, %s29
    %s31 = ssub.s32 %s18, %s25
    %s32 = sor.u32 %s30, %s31
    %p33 = scmp.eq.s32.totalorder %s32, 0
    %s35 = sadd.s32 %s34, 1
    %s36 = scalar_select %p33, %s34, %s35
    %p39 = pneg %p33
    %p40 = scmp.eq.s32.totalorder %s10, 1
    %p41 = por %p39, %p40
    %p42 = scmp.ne.s32.totalorder %s34, %s37
    %p43 = scmp.eq.s32.totalorder %s10, 0
    %p44 = por %p42, %p43
    %p45 = scmp.ne.s32.totalorder %s34, %s37
    %p46 = scmp.eq.s32.totalorder %s15, 1
    %p47 = por %p45, %p46
    %p48 = scmp.ne.s32.totalorder %s37, %s38
    %p49 = scmp.eq.s32.totalorder %s15, 0
    %p50 = por %p48, %p49
    %p51 = scmp.ne.s32.totalorder %s37, %s38
    %p52 = scmp.eq.s32.totalorder %s16, 1
    %p53 = por %p51, %p52
    %p55 = scmp.ne.s32.totalorder %s38, %s54
    %p56 = scmp.eq.s32.totalorder %s16, 0
    %p57 = por %p55, %p56
    %s59 = sadd.s32 %s58, 1
    %p62 = scmp.eq.s32.totalorder %s10, 1
    %p63 = scmp.ne.s32.totalorder %s58, %s60
    %p64 = scmp.eq.s32.totalorder %s10, 0
    %p65 = por %p63, %p64
    %p66 = scmp.ne.s32.totalorder %s58, %s60
    %p67 = scmp.eq.s32.totalorder %s15, 1
    %p68 = por %p66, %p67
    %p69 = scmp.ne.s32.totalorder %s60, %s61
    %p70 = scmp.eq.s32.totalorder %s15, 0
    %p71 = por %p69, %p70
    %p72 = scmp.ne.s32.totalorder %s60, %s61
    %p73 = scmp.eq.s32.totalorder %s16, 1
    %p74 = por %p72, %p73
    %p76 = scmp.ne.s32.totalorder %s61, %s75
    %p77 = scmp.eq.s32.totalorder %s16, 0
    %p78 = por %p76, %p77
    %s80 = sadd.s32 %s79, 1
    %p83 = scmp.eq.s32.totalorder %s10, 1
    %p84 = scmp.ne.s32.totalorder %s79, %s81
    %p85 = scmp.eq.s32.totalorder %s10, 0
    %p86 = por %p84, %p85
    %p87 = scmp.ne.s32.totalorder %s79, %s81
    %p88 = scmp.eq.s32.totalorder %s15, 1
    %p89 = por %p87, %p88
    %p90 = scmp.ne.s32.totalorder %s81, %s82
    %p91 = scmp.eq.s32.totalorder %s15, 0
    %p92 = por %p90, %p91
    %p93 = scmp.ne.s32.totalorder %s81, %s82
    %p94 = scmp.eq.s32.totalorder %s16, 1
    %p95 = por %p93, %p94
    %p97 = scmp.ne.s32.totalorder %s82, %s96
    %p98 = scmp.eq.s32.totalorder %s16, 0
    %p99 = por %p97, %p98
    %s100 = ssub.s32 %s17, %s29
    %s101 = ssub.s32 %s18, %s25
    %s102 = sor.u32 %s100, %s101
    %p103 = scmp.eq.s32.totalorder %s102, 0
    %s105 = sadd.s32 %s104, 1
    %s106 = scalar_select %p103, %s104, %s105
    %p109 = pneg %p103
    %p110 = scmp.eq.s32.totalorder %s10, 1
    %p111 = por %p109, %p110
    %p112 = scmp.ne.s32.totalorder %s104, %s107
    %p113 = scmp.eq.s32.totalorder %s10, 0
    %p114 = por %p112, %p113
    %p115 = scmp.ne.s32.totalorder %s104, %s107
    %p116 = scmp.eq.s32.totalorder %s15, 1
    %p117 = por %p115, %p116
    %p118 = scmp.ne.s32.totalorder %s107, %s108
    %p119 = scmp.eq.s32.totalorder %s15, 0
    %p120 = por %p118, %p119
    %p121 = scmp.ne.s32.totalorder %s107, %s108
    %p122 = scmp.eq.s32.totalorder %s16, 1
    %p123 = por %p121, %p122
    %p125 = scmp.ne.s32.totalorder %s108, %s124
    %p126 = scmp.eq.s32.totalorder %s16, 0
    %p127 = por %p125, %p126
    %s128 = ssub.s32 %s17, %s29
    %s129 = ssub.s32 %s18, %s25
    %s130 = sor.u32 %s128, %s129
    %p131 = scmp.eq.s32.totalorder %s130, 0
    %s133 = sadd.s32 %s132, 1
    %s134 = scalar_select %p131, %s132, %s133
    %p137 = pneg %p131
    %p138 = scmp.eq.s32.totalorder %s10, 1
    %p139 = por %p137, %p138
    %p140 = scmp.ne.s32.totalorder %s132, %s135
    %p141 = scmp.eq.s32.totalorder %s10, 0
    %p142 = por %p140, %p141
    %p143 = scmp.ne.s32.totalorder %s132, %s135
    %p144 = scmp.eq.s32.totalorder %s15, 1
    %p145 = por %p143, %p144
    %p146 = scmp.ne.s32.totalorder %s135, %s136
    %p147 = scmp.eq.s32.totalorder %s15, 0
    %p148 = por %p146, %p147
    %p149 = scmp.ne.s32.totalorder %s135, %s136
    %p150 = scmp.eq.s32.totalorder %s16, 1
    %p151 = por %p149, %p150
    %p153 = scmp.ne.s32.totalorder %s136, %s152
    %p154 = scmp.eq.s32.totalorder %s16, 0
    %p155 = por %p153, %p154
    %p156 = scmp.le.s32.totalorder 1, %s10
    %p157 = scmp.lt.s32.totalorder %s10, 3
    %p158 = pnand %p156, %p157
    %p159 = pneg %p158
    // Predicated region
    $region9: #{sgn_forward.63} parent=5 // pred_check
      _
    $region10: #{sgn_forward.63} parent=5 // pred_check_branch
      %161 = sbr.rel (%p158) target = $region12
    $region11: #{sgn_forward.63} parent=5 // pred_region
      %s162 = ssub.s32 %s10, 1
      // Predicated region
      $region13: #{sgn_forward.63} parent=11 // pred_check
        %p163 = pneg %p71
      $region14: #{sgn_forward.63} parent=11 // pred_check_branch
        %165 = sbr.rel (%p163) target = $region16
      $region15: #{sgn_forward.63} parent=11 // pred_region
        _
      $region16: #{sgn_forward.63} parent=11 // pred_fallthru
        _
      // Predicated region
      $region17: #{sgn_forward.63} parent=11 // pred_check
        %p166 = pneg %p92
      $region18: #{sgn_forward.63} parent=11 // pred_check_branch
        %168 = sbr.rel (%p166) target = $region20
      $region19: #{sgn_forward.63} parent=11 // pred_region
        _
      $region20: #{sgn_forward.63} parent=11 // pred_fallthru
        _
    $region12: #{sgn_forward.63} parent=5 // pred_fallthru
      _
    %p169 = scmp.lt.s32.totalorder %s10, 2
    // Predicated region
    $region21: #{sgn_forward.63} parent=5 // pred_check
      %p170 = pneg %p169
    $region22: #{sgn_forward.63} parent=5 // pred_check_branch
      %172 = sbr.rel (%p170) target = $region24
    $region23: #{sgn_forward.63} parent=5 // pred_region
      // Predicated region
      $region25: #{sgn_forward.63} parent=23 // pred_check
        %p173 = pneg %p44
      $region26: #{sgn_forward.63} parent=23 // pred_check_branch
        %175 = sbr.rel (%p173) target = $region28
      $region27: #{sgn_forward.63} parent=23 // pred_region
        %s176 = smul.u32 2, %s18
        %p177 = scmp.lt.s32.totalorder %s17, 1
        %s178 = scalar_select %p177, %s17, 1
        %p179 = scmp.lt.s32.totalorder %s176, 1
        %s180 = scalar_select %p179, %s176, 1
        %s181 = smul.addr %s178, 18
        %s182 = sadd.s32 %s180, %s181
        %s183 = smul.addr %s182, 4
        %s184 = scalar_lea.vmem %s0, %s183
        %s185 = smul.u32 2, %s18
      $region28: #{sgn_forward.63} parent=23 // pred_fallthru
        _
      // Predicated region
      $region29: #{sgn_forward.63} parent=23 // pred_check
        %p186 = pneg %p114
      $region30: #{sgn_forward.63} parent=23 // pred_check_branch
        %188 = sbr.rel (%p186) target = $region32
      $region31: #{sgn_forward.63} parent=23 // pred_region
        %s189 = smul.u32 2, %s18
        %p190 = scmp.lt.s32.totalorder %s17, 1
        %s191 = scalar_select %p190, %s17, 1
        %p192 = scmp.lt.s32.totalorder %s189, 1
        %s193 = scalar_select %p192, %s189, 1
        %s194 = smul.addr %s191, 2
        %s195 = sadd.s32 %s193, %s194
        %s196 = smul.addr %s195, 4
        %s197 = scalar_lea.vmem %s3, %s196
        %s198 = smul.u32 2, %s18
      $region32: #{sgn_forward.63} parent=23 // pred_fallthru
        _
    $region24: #{sgn_forward.63} parent=5 // pred_fallthru
      _
    %p199 = scmp.le.s32.totalorder 1, %s10
    %p200 = scmp.lt.s32.totalorder %s10, 3
    %p201 = pnand %p199, %p200
    %p202 = pneg %p201
    // Predicated region
    $region33: #{sgn_forward.63} parent=5 // pred_check
      _
    $region34: #{sgn_forward.63} parent=5 // pred_check_branch
      %204 = sbr.rel (%p201) target = $region36
    $region35: #{sgn_forward.63} parent=5 // pred_region
      %s205 = ssub.s32 %s10, 1
      %s206 = smul.u32 2, %s20
      %p207 = scmp.lt.s32.totalorder %s19, 1
      %s208 = scalar_select %p207, %s19, 1
      %p209 = scmp.lt.s32.totalorder %s206, 1
      %s210 = scalar_select %p209, %s206, 1
      %s211 = smul.addr %s208, 18
      %s212 = sadd.s32 %s210, %s211
      %s213 = smul.addr %s212, 4
      %s214 = scalar_lea.vmem %s0, %s213
      %p215 = pneg %p50
      %p216 = pneg %p47
      %p217 = pneg %p71
      %p218 = pneg %p68
      %p219 = pneg %p92
      %p220 = pneg %p89
      %s221 = smul.u32 2, %s20
      %p222 = scmp.lt.s32.totalorder %s19, 1
      %s223 = scalar_select %p222, %s19, 1
      %p224 = scmp.lt.s32.totalorder %s221, 1
      %s225 = scalar_select %p224, %s221, 1
      %s226 = smul.addr %s223, 2
      %s227 = sadd.s32 %s225, %s226
      %s228 = smul.addr %s227, 4
      %s229 = scalar_lea.vmem %s3, %s228
      %p230 = pneg %p120
      %p231 = pneg %p117
      %p232 = pneg %p148
      %p233 = pneg %p145
      %s234 = smul.u32 2, %s20
      %p235 = scmp.lt.s32.totalorder %s19, 1
      %s236 = scalar_select %p235, %s19, 1
      %p237 = scmp.lt.s32.totalorder %s234, 1
      %s238 = scalar_select %p237, %s234, 1
      %s239 = smul.addr %s236, 2
      %s240 = sadd.s32 %s238, %s239
      %s241 = smul.addr %s240, 4
      %s242 = scalar_lea.vmem %s4, %s241
      %s243 = smul.u32 2, %s20
      %p244 = scmp.lt.s32.totalorder %s19, 1
      %s245 = scalar_select %p244, %s19, 1
      %p246 = scmp.lt.s32.totalorder %s243, 1
      %s247 = scalar_select %p246, %s243, 1
      %s248 = smul.addr %s245, 18
      %s249 = sadd.s32 %s247, %s248
      %s250 = smul.addr %s249, 4
      %s251 = scalar_lea.vmem %s0, %s250
      %s252 = smul.u32 2, %s20
      %s253 = smul.u32 2, %s20
      %p254 = scmp.lt.s32.totalorder %s19, 1
      %s255 = scalar_select %p254, %s19, 1
      %p256 = scmp.lt.s32.totalorder %s253, 1
      %s257 = scalar_select %p256, %s253, 1
      %s258 = smul.addr %s255, 2
      %s259 = sadd.s32 %s257, %s258
      %s260 = smul.addr %s259, 4
      %s261 = scalar_lea.vmem %s3, %s260
      %s262 = smul.u32 2, %s20
      %s263 = smul.u32 2, %s20
      %p264 = scmp.lt.s32.totalorder %s19, 1
      %s265 = scalar_select %p264, %s19, 1
      %p266 = scmp.lt.s32.totalorder %s263, 1
      %s267 = scalar_select %p266, %s263, 1
      %s268 = smul.addr %s265, 2
      %s269 = sadd.s32 %s267, %s268
      %s270 = smul.addr %s269, 4
      %s271 = scalar_lea.vmem %s4, %s270
      %s272 = smul.u32 2, %s20
      %v274 = vld [vmem:[%s1] sm:$0x3]
      %v275 = vld [vmem:[%s251] sm:$0xff]
      %v276 = vld [vmem:[%s251 + $0x8] sm:$0xff]
      %v277 = vld [vmem:[%s251 + $0x10] sm:$0xff]
      %v278 = vld [vmem:[%s251 + $0x18] sm:$0xff]
      %v279 = vld [vmem:[%s251 + $0x20] sm:$0xff]
      %v280 = vld [vmem:[%s251 + $0x28] sm:$0xff]
      %v281 = vld [vmem:[%s251 + $0x30] sm:$0xff]
      %v282 = vld [vmem:[%s251 + $0x38] sm:$0xff]
      %v283 = vld [vmem:[%s251 + $0x40] sm:$0xff]
      %v284 = vld [vmem:[%s2] sm:$0xf]
      %286 = vset.pattern.permute.xlu0 0
      %287 = vperm.xlu0 %286, %v284
      %v288 = vpop.permute.xlu0 %287
      %v299 = vunpack.c.l.b16 %v275
      %v300 = vunpack.c.h.b16 %v275
      %v301 = vunpack.c.l.b16 %v276
      %v302 = vunpack.c.h.b16 %v276
      %v303 = vunpack.c.l.b16 %v277
      %v304 = vunpack.c.h.b16 %v277
      %v305 = vunpack.c.l.b16 %v278
      %v306 = vunpack.c.h.b16 %v278
      %v307 = vunpack.c.l.b16 %v279
      %v308 = vunpack.c.h.b16 %v279
      %v309 = vunpack.c.l.b16 %v280
      %v310 = vunpack.c.h.b16 %v280
      %v311 = vunpack.c.l.b16 %v281
      %v312 = vunpack.c.h.b16 %v281
      %v313 = vunpack.c.l.b16 %v282
      %v314 = vunpack.c.h.b16 %v282
      %v315 = vunpack.c.l.b16 %v283
      %v316 = vunpack.c.h.b16 %v283
      %v317 = vpack.c.b16 %v301, %v299
      %v318 = vpack.c.b16 %v302, %v300
      %v319 = vpack.c.b16 %v305, %v303
      %v320 = vpack.c.b16 %v306, %v304
      %v321 = vpack.c.b16 %v309, %v307
      %v322 = vpack.c.b16 %v310, %v308
      %v323 = vpack.c.b16 %v313, %v311
      %v324 = vpack.c.b16 %v314, %v312
      %v325 = vpack.c.b16 %v315, %v315
      %v326 = vpack.c.b16 %v316, %v316
      %vm335 = vcmask 588800
      %v337 = vsel %vm335, %v274, 0
      %vm339 = vcmask 1043456
      %v341 = vsel %vm339, %v325, 0
      %v344 = vsel %vm339, %v326, 0
      %346 = vmatprep.subr.bf16.mxu0 %v318
      %347 = vmatpush1.bf16.msra.mxu0 %v317
      %348 = vmatprep.subr.bf16.mxu0 %v320
      %349 = vmatpush1.bf16.msra.mxu0 %v319
      %350 = vmatprep.subr.bf16.mxu0 %v322
      %351 = vmatpush1.bf16.msra.mxu0 %v321
      %352 = vmatprep.subr.bf16.mxu0 %v324
      %353 = vmatpush1.bf16.msra.mxu0 %v323
      %354 = vmatprep.subr.bf16.mxu0 %v344
      %355 = vmatpush1.bf16.msra.mxu0 %v341
      %356 = vmatprep.subr.bf16.mxu0 0
      %357 = vmatpush1.bf16.msra.mxu0 0
      %358 = vmatprep.subr.bf16.mxu0 0
      %359 = vmatpush1.bf16.msra.mxu0 0
      %360 = vmatprep.subr.bf16.mxu0 0
      %361 = vmatpush1.bf16.msra.mxu0 0
      %362 = vmatprep.subr.bf16.mxu0 0
      %363 = vmatpush1.bf16.msra.mxu0 0
      %364 = vmatprep.subr.bf16.mxu0 0
      %365 = vmatpush1.bf16.msra.mxu0 0
      %366 = vmatprep.subr.bf16.mxu0 0
      %367 = vmatpush1.bf16.msra.mxu0 0
      %368 = vmatprep.subr.bf16.mxu0 0
      %369 = vmatpush1.bf16.msra.mxu0 0
      %370 = vmatprep.subr.bf16.mxu0 0
      %371 = vmatpush1.bf16.msra.mxu0 0
      %372 = vmatprep.subr.bf16.mxu0 0
      %373 = vmatpush1.bf16.msra.mxu0 0
      %374 = vmatprep.subr.bf16.mxu0 0
      %375 = vmatpush1.bf16.msra.mxu0 0
      %376 = vmatprep.subr.bf16.mxu0 0
      %377 = vmatpush1.bf16.msra.mxu0 0
      %378 = vmatprep.mubr.bf16.mxu0 0
      %379 = vmatmul.mubr.bf16.gmra.mrb[0].mxu0 %v337
      %v380 = vpop.f32.mrb[0].mxu0
      %v381 = vadd.f32 %v288, %v380
      %v382 = vpop.f32.mrb[0].mxu0
      %v383 = vadd.f32 %v288, %v382
      %v384 = vpop.f32.mrb[0].mxu0
      %v385 = vpop.f32.mrb[0].mxu0
      %386 = vdwg.mxu0
      %vm387 = vcmp.ge.f32.partialorder %v381, 0.0
      %vm388 = vcmp.ge.f32.partialorder %v383, 0.0
      %v389 = vmul.f32 %v381, 0.2
      %v390 = vmul.f32 %v383, 0.2
      %v391 = vsel %vm387, %v381, %v389
      %v392 = vsel %vm388, %v383, %v390
      %v393 = vld [vmem:[%s261] sm:$0xff]
      %v395 = vcombine.high %v393, %v393
      %v397 = vadd.f32 %v391, %v393
      %v398 = vadd.f32 %v392, %v395
      %v401 = vcombine.low %v397, %v398
      %403 = vst [vmem:[%s271] sm:$0xff] %v401
      %s404 = smul.u32 2, %s20
      %p405 = scmp.lt.s32.totalorder %s19, 1
      %s406 = scalar_select %p405, %s19, 1
      %p407 = scmp.lt.s32.totalorder %s404, 1
      %s408 = scalar_select %p407, %s404, 1
      %s409 = smul.addr %s406, 2
      %s410 = sadd.s32 %s408, %s409
      %s411 = smul.addr %s410, 4
      %s412 = scalar_lea.vmem %s4, %s411
      // Predicated region
      $region37: #{sgn_forward.63} parent=35 // pred_check
        %p413 = pneg %p145
      $region38: #{sgn_forward.63} parent=35 // pred_check_branch
        %415 = sbr.rel (%p413) target = $region40
      $region39: #{sgn_forward.63} parent=35 // pred_region
        %s416 = smul.u32 2, %s20
      $region40: #{sgn_forward.63} parent=35 // pred_fallthru
        _
    $region36: #{sgn_forward.63} parent=5 // pred_fallthru
      _
    %p417 = scmp.le.s32.totalorder 2, %s10
    // Predicated region
    $region41: #{sgn_forward.63} parent=5 // pred_check
      %p418 = pneg %p417
    $region42: #{sgn_forward.63} parent=5 // pred_check_branch
      %420 = sbr.rel (%p418) target = $region44
    $region43: #{sgn_forward.63} parent=5 // pred_region
      %s421 = ssub.s32 %s10, 2
      // Predicated region
      $region45: #{sgn_forward.63} parent=43 // pred_check
        %p422 = pneg %p151
      $region46: #{sgn_forward.63} parent=43 // pred_check_branch
        %424 = sbr.rel (%p422) target = $region48
      $region47: #{sgn_forward.63} parent=43 // pred_region
        %s425 = smul.u32 2, %s22
        %p426 = scmp.lt.s32.totalorder %s21, 1
        %s427 = scalar_select %p426, %s21, 1
        %p428 = scmp.lt.s32.totalorder %s425, 1
        %s429 = scalar_select %p428, %s425, 1
        %s430 = smul.addr %s427, 2
        %s431 = sadd.s32 %s429, %s430
        %s432 = smul.addr %s431, 4
        %s433 = scalar_lea.vmem %s4, %s432
      $region48: #{sgn_forward.63} parent=43 // pred_fallthru
        _
    $region44: #{sgn_forward.63} parent=5 // pred_fallthru
      _
  $region6: #{sgn_forward.63} parent=0 // loop_footer
    %s14 = sadd.s32 1, %s10
  $region7: #{sgn_forward.63} parent=0 // loop_footer_branch
    %9 = sbr.rel target = $region3
  $region8: #{sgn_forward.63} parent=0 // loop_exit
    _

</llo_original>
